<compile_context>
chip_gen: v7x
topology: tpu7x:2x2x1
jax: 0.10.0
libtpu: 0.0.40
codegen_flags: <defaults>
</compile_context>

<pallas_src>
import math

import jax
import jax.numpy as jnp
from jax import lax
from jax.experimental import pallas as pl
from jax.experimental.pallas import tpu as pltpu

LSTM_DIM = 32          # H, hidden per direction
EMBED_DIM = 300        # D, LSTM input size (layer 0)
NUM_LAYERS = 2
FC1_DIM = 64
NUM_CLASSES = 2

H = LSTM_DIM           # 32
H2 = 2 * H             # 64   (bidirectional hidden width)
G = 4 * H              # 128  (gate width, one direction)
G2 = 8 * H             # 256  (gate width, both directions stacked)


# ---------------------------------------------------------------------------
# One fused kernel: 2 x (bi-LSTM layer) + tanh-attention pooling + fc1 + fc.
#
# x_ref      : (T*B, D)   time-major-flat input rows (row = t*B + b)
# wih{0,1}   : (d_in, 8H) column-stacked [W_ih_fwd^T | W_ih_bwd^T]
# whh{0,1}   : (2H, 8H)   block-diagonal [[W_hh_f^T, 0], [0, W_hh_b^T]]
# b{0,1}     : (1, 8H)    [b_ih_f+b_hh_f | b_ih_b+b_hh_b]
# watt       : (1, 2H)    attention vector
# agg        : (B, T*B)   one-hot per-batch aggregation matrix (A[b, t*B+b]=1)
# fc1w/fc1b  : (2H, 64) / (1, 64)
# fcw/fcb    : (64, 2)  / (1, 2)
# out_ref    : (B, 2)
# gx_scr     : (T*B, 8H)  hoisted input-gate projections (VMEM)
# h_scr      : (T*B, 2H)  per-layer bidirectional hidden states (VMEM)
# ---------------------------------------------------------------------------
def textrnn_att_kernel(x_ref, wih0_ref, whh0_ref, b0_ref,
                       wih1_ref, whh1_ref, b1_ref,
                       watt_ref, agg_ref,
                       fc1w_ref, fc1b_ref, fcw_ref, fcb_ref,
                       out_ref,
                       gx_scr, h_scr):
    TB = x_ref.shape[0]
    B = agg_ref.shape[0]
    T = TB // B

    def bilstm_layer(x_flat, wih_ref, whh_ref, b_ref):
        # Hoisted input projection: one GEMM for all T steps, both directions.
        gx_scr[...] = (jnp.dot(x_flat, wih_ref[...],
                               preferred_element_type=jnp.float32)
                       + b_ref[...])                              # (T*B, 8H)
        whh = whh_ref[...]                                        # (2H, 8H)

        def cell(gates_d, c_d):                                   # (B,4H),(B,H)
            i = jax.nn.sigmoid(gates_d[:, 0:H])
            f = jax.nn.sigmoid(gates_d[:, H:2 * H])
            g = jnp.tanh(gates_d[:, 2 * H:3 * H])
            o = jax.nn.sigmoid(gates_d[:, 3 * H:4 * H])
            c = f * c_d + i * g
            h = o * jnp.tanh(c)
            return h, c

        h_both = jnp.zeros((B, H2), jnp.float32)                  # [h_f | h_b]
        c_both = jnp.zeros((B, H2), jnp.float32)
        # Fully (statically) unrolled time loop: only the tiny recurrent
        # matmul + element-wise cell update sit on the sequential path.
        for t in range(T):
            tr = T - 1 - t
            rec = jnp.dot(h_both, whh,
                          preferred_element_type=jnp.float32)     # (B, 8H)
            g_f = gx_scr[t * B:(t + 1) * B, 0:G] + rec[:, 0:G]
            g_b = gx_scr[tr * B:(tr + 1) * B, G:G2] + rec[:, G:G2]
            h_f, c_f = cell(g_f, c_both[:, 0:H])
            h_b, c_b = cell(g_b, c_both[:, H:H2])
            h_scr[t * B:(t + 1) * B, 0:H] = h_f
            h_scr[tr * B:(tr + 1) * B, H:H2] = h_b
            h_both = jnp.concatenate([h_f, h_b], axis=-1)
            c_both = jnp.concatenate([c_f, c_b], axis=-1)

    # --- 2-layer bidirectional LSTM, activations never leave VMEM ----------
    bilstm_layer(x_ref[...], wih0_ref, whh0_ref, b0_ref)
    # Layer 1 consumes layer-0 output (read fully into its GEMM) and then
    # overwrites h_scr with its own hidden states.
    bilstm_layer(h_scr[...], wih1_ref, whh1_ref, b1_ref)

    # --- tanh attention over time + relu + fc1 + fc -------------------------
    h_all = h_scr[...]                                            # (T*B, 2H)
    m = jnp.tanh(h_all)
    scores = jnp.sum(m * watt_ref[...], axis=-1, keepdims=True)   # (T*B, 1)
    # global max shift (softmax is invariant to any per-batch constant shift)
    scores = scores - jnp.max(scores, axis=0, keepdims=True)
    e = jnp.exp(scores)                                           # (T*B, 1)
    num = jnp.dot(agg_ref[...], e * h_all,
                  preferred_element_type=jnp.float32)             # (B, 2H)
    den = jnp.dot(agg_ref[...], jnp.broadcast_to(e, h_all.shape),
                  preferred_element_type=jnp.float32)             # (B, 2H) cols identical
    pooled = jnp.maximum(num / den, 0.0)                          # ReLU
    z = jnp.dot(pooled, fc1w_ref[...],
                preferred_element_type=jnp.float32) + fc1b_ref[...]
    z = jnp.dot(z, fcw_ref[...],
                preferred_element_type=jnp.float32) + fcb_ref[...]
    out_ref[...] = z


# ---------------------------------------------------------------------------
# Wrapper: one pallas_call for the whole forward pass.
# ---------------------------------------------------------------------------
def textrnn_att_forward(x, kp):
    B, T, D = x.shape
    TB = T * B
    # time-major flat rows (row = t*B + b); tiny one-off XLA layout change.
    x2d = jnp.transpose(x, (1, 0, 2)).reshape(TB, D).astype(jnp.float32)

    flops = (2 * TB * D * G2                      # layer-0 input GEMM
             + 2 * TB * H2 * G2                   # layer-1 input GEMM
             + 2 * NUM_LAYERS * TB * H2 * G2      # recurrent GEMMs
             + 2 * 2 * B * TB * H2                # attention aggregation matmuls
             + 2 * B * H2 * FC1_DIM
             + 2 * B * FC1_DIM * NUM_CLASSES)
    transcendentals = 5 * B * H * T * 2 * NUM_LAYERS + TB * H2 + TB
    bytes_accessed = 4 * (x2d.size + sum(int(v.size) for v in kp.values())
                          + B * NUM_CLASSES)

    fwd = pl.pallas_call(
        textrnn_att_kernel,
        out_shape=jax.ShapeDtypeStruct((B, NUM_CLASSES), jnp.float32),
        in_specs=[pl.BlockSpec(memory_space=pltpu.MemorySpace.VMEM)] * 13,
        out_specs=pl.BlockSpec(memory_space=pltpu.MemorySpace.VMEM),
        scratch_shapes=[pltpu.VMEM((TB, G2), jnp.float32),
                        pltpu.VMEM((TB, H2), jnp.float32)],
        cost_estimate=pl.CostEstimate(flops=int(flops),
                                      transcendentals=int(transcendentals),
                                      bytes_accessed=int(bytes_accessed)),
    )
    return fwd(x2d, kp["wih0"], kp["whh0"], kp["b0"],
               kp["wih1"], kp["whh1"], kp["b1"],
               kp["w_att"], kp["agg"],
               kp["fc1_w"], kp["fc1_b"], kp["fc_w"], kp["fc_b"])


# ---------------------------------------------------------------------------
# Parameter construction (PyTorch nn.Module shapes) + kernel-layout packing.
# ---------------------------------------------------------------------------
def init_params(key):
    params = {"lstm": []}
    k = 1.0 / math.sqrt(LSTM_DIM)
    for layer in range(NUM_LAYERS):
        d_in = EMBED_DIM if layer == 0 else H2
        dirs = []
        for _ in range(2):  # forward, backward
            key, k1, k2, k3, k4 = jax.random.split(key, 5)
            w_ih = jax.random.uniform(k1, (4 * H, d_in), minval=-k, maxval=k,
                                      dtype=jnp.float32)
            w_hh = jax.random.uniform(k2, (4 * H, H), minval=-k, maxval=k,
                                      dtype=jnp.float32)
            b_ih = jax.random.uniform(k3, (4 * H,), minval=-k, maxval=k,
                                      dtype=jnp.float32)
            b_hh = jax.random.uniform(k4, (4 * H,), minval=-k, maxval=k,
                                      dtype=jnp.float32)
            dirs.append((w_ih, w_hh, b_ih, b_hh))
        params["lstm"].append(dirs)

    key, kw, kf1, kb1, kf2, kb2 = jax.random.split(key, 6)
    # TODO(synk): PyTorch initializes w to zeros (uniform softmax); small random
    # values keep the softmax path non-trivial — forward math is identical.
    params["w"] = 0.1 * jax.random.normal(kw, (H2,), dtype=jnp.float32)
    params["fc1_w"] = 0.1 * jax.random.normal(kf1, (FC1_DIM, H2), dtype=jnp.float32)
    params["fc1_b"] = 0.1 * jax.random.normal(kb1, (FC1_DIM,), dtype=jnp.float32)
    params["fc_w"] = 0.1 * jax.random.normal(kf2, (NUM_CLASSES, FC1_DIM),
                                             dtype=jnp.float32)
    params["fc_b"] = 0.1 * jax.random.normal(kb2, (NUM_CLASSES,), dtype=jnp.float32)
    return params


def pack_kernel_params(params, B, T):
    kp = {}
    for layer in range(NUM_LAYERS):
        (wif, whf, bif, bhf), (wib, whb, bib, bhb) = params["lstm"][layer]
        kp[f"wih{layer}"] = jnp.concatenate([wif.T, wib.T], axis=1)   # (d_in, 8H)
        whh = jnp.zeros((H2, G2), jnp.float32)
        whh = whh.at[0:H, 0:G].set(whf.T)
        whh = whh.at[H:H2, G:G2].set(whb.T)
        kp[f"whh{layer}"] = whh                                       # (2H, 8H)
        kp[f"b{layer}"] = jnp.concatenate([bif + bhf, bib + bhb])[None, :]
    kp["w_att"] = params["w"][None, :]                                # (1, 2H)
    rows = jnp.arange(T * B)
    kp["agg"] = (rows[None, :] % B == jnp.arange(B)[:, None]).astype(jnp.float32)
    kp["fc1_w"] = params["fc1_w"].T                                   # (2H, 64)
    kp["fc1_b"] = params["fc1_b"][None, :]
    kp["fc_w"] = params["fc_w"].T                                     # (64, 2)
    kp["fc_b"] = params["fc_b"][None, :]
    return kp


# ---------------------------------------------------------------------------
# Pure-JAX reference (same math, no Pallas) for the correctness check.
# ---------------------------------------------------------------------------
def _lstm_layer_ref(x_tm, wih_t, whh_t, b):
    T, B, _ = x_tm.shape

    def step(carry, x_t):
        hh, cc = carry
        gates = x_t @ wih_t + hh @ whh_t + b
        i = jax.nn.sigmoid(gates[:, 0:H])
        f = jax.nn.sigmoid(gates[:, H:2 * H])
        g = jnp.tanh(gates[:, 2 * H:3 * H])
        o = jax.nn.sigmoid(gates[:, 3 * H:4 * H])
        cc = f * cc + i * g
        hh = o * jnp.tanh(cc)
        return (hh, cc), hh

    init = (jnp.zeros((B, H), jnp.float32), jnp.zeros((B, H), jnp.float32))
    _, hs = lax.scan(step, init, x_tm)
    return hs


def textrnn_att_reference(x, params):
    h = jnp.transpose(x, (1, 0, 2)).astype(jnp.float32)               # (T, B, D)
    for layer in range(NUM_LAYERS):
        (wif, whf, bif, bhf), (wib, whb, bib, bhb) = params["lstm"][layer]
        h_fwd = _lstm_layer_ref(h, wif.T, whf.T, (bif + bhf)[None, :])
        h_bwd = _lstm_layer_ref(h[::-1], wib.T, whb.T, (bib + bhb)[None, :])[::-1]
        h = jnp.concatenate([h_fwd, h_bwd], axis=-1)
    Hm = jnp.transpose(h, (1, 0, 2))                                  # (B, T, 2H)
    M = jnp.tanh(Hm)
    alpha = jax.nn.softmax(M @ params["w"], axis=1)[..., None]
    out = jnp.sum(Hm * alpha, axis=1)
    out = jax.nn.relu(out)
    out = out @ params["fc1_w"].T + params["fc1_b"]
    out = out @ params["fc_w"].T + params["fc_b"]
    return out


if __name__ == "__main__":
    B, T = 2, 8
    key = jax.random.PRNGKey(0)
    key, kx, kparam = jax.random.split(key, 3)
    x = jax.random.normal(kx, (B, T, EMBED_DIM), dtype=jnp.float32)
    params = init_params(kparam)
    kp = pack_kernel_params(params, B, T)

    forward = jax.jit(textrnn_att_forward)
    out = jax.block_until_ready(forward(x, kp))
    ref = jax.block_until_ready(textrnn_att_reference(x, params))

    assert out.shape == (B, NUM_CLASSES), out.shape
    assert jnp.allclose(out, ref, atol=1e-4, rtol=1e-4), (out, ref)
    print("KERNEL_OK")
</pallas_src>

<mosaic_0001>
module attributes {stable_mosaic.version = 11 : i64} {
  func.func @textrnn_att_kernel(%arg0: memref<16x300xf32, #tpu.memory_space<vmem>>, %arg1: memref<300x256xf32, #tpu.memory_space<vmem>>, %arg2: memref<64x256xf32, #tpu.memory_space<vmem>>, %arg3: memref<1x256xf32, #tpu.memory_space<vmem>>, %arg4: memref<64x256xf32, #tpu.memory_space<vmem>>, %arg5: memref<64x256xf32, #tpu.memory_space<vmem>>, %arg6: memref<1x256xf32, #tpu.memory_space<vmem>>, %arg7: memref<1x64xf32, #tpu.memory_space<vmem>>, %arg8: memref<2x16xf32, #tpu.memory_space<vmem>>, %arg9: memref<64x64xf32, #tpu.memory_space<vmem>>, %arg10: memref<1x64xf32, #tpu.memory_space<vmem>>, %arg11: memref<64x2xf32, #tpu.memory_space<vmem>>, %arg12: memref<1x2xf32, #tpu.memory_space<vmem>>, %arg13: memref<2x2xf32, #tpu.memory_space<vmem>>, %arg14: memref<16x256xf32, #tpu.memory_space<vmem>>, %arg15: memref<16x64xf32, #tpu.memory_space<vmem>>) attributes {dimension_semantics = [], scalar_prefetch = 0 : i64, scratch_operands = 2 : i64, tpu.core_type = #tpu.core_type<tc>} {
    %c0 = arith.constant 0 : index
    %c0_0 = arith.constant 0 : index
    %0 = vector.load %arg0[%c0, %c0_0] : memref<16x300xf32, #tpu.memory_space<vmem>>, vector<16x300xf32>
    %c0_1 = arith.constant 0 : index
    %c0_2 = arith.constant 0 : index
    %1 = vector.load %arg1[%c0_1, %c0_2] : memref<300x256xf32, #tpu.memory_space<vmem>>, vector<300x256xf32>
    %cst = arith.constant dense<0.000000e+00> : vector<16x256xf32>
    %2 = tpu.matmul %0, %1, %cst {dimension_numbers = #tpu.dot_dimension_numbers<[1], [0], [0], [1], [0, 0, 1, 1], [], []>} : vector<16x300xf32>, vector<300x256xf32>, vector<16x256xf32> -> vector<16x256xf32>
    %c0_3 = arith.constant 0 : index
    %c0_4 = arith.constant 0 : index
    %3 = vector.load %arg3[%c0_3, %c0_4] : memref<1x256xf32, #tpu.memory_space<vmem>>, vector<1x256xf32>
    %4 = vector.broadcast %3 : vector<1x256xf32> to vector<16x256xf32>
    %5 = arith.addf %2, %4 : vector<16x256xf32>
    %c0_5 = arith.constant 0 : index
    %c0_6 = arith.constant 0 : index
    %6 = vector.load %arg14[%c0_5, %c0_6] : memref<16x256xf32, #tpu.memory_space<vmem>>, vector<16x256xf32>
    tpu.vector_store %arg14[%c0_5, %c0_6], %5 {strides = array<i32>} : memref<16x256xf32, #tpu.memory_space<vmem>>, vector<16x256xf32>,
    %c0_7 = arith.constant 0 : index
    %c0_8 = arith.constant 0 : index
    %7 = vector.load %arg2[%c0_7, %c0_8] : memref<64x256xf32, #tpu.memory_space<vmem>>, vector<64x256xf32>
    %cst_9 = arith.constant 0.000000e+00 : f32
    %8 = vector.broadcast %cst_9 : f32 to vector<2x64xf32>
    %cst_10 = arith.constant 0.000000e+00 : f32
    %9 = vector.broadcast %cst_10 : f32 to vector<2x64xf32>
    %cst_11 = arith.constant dense<0.000000e+00> : vector<2x256xf32>
    %10 = tpu.matmul %8, %7, %cst_11 {dimension_numbers = #tpu.dot_dimension_numbers<[1], [0], [0], [1], [0, 0, 1, 1], [], []>} : vector<2x64xf32>, vector<64x256xf32>, vector<2x256xf32> -> vector<2x256xf32>
    %c0_12 = arith.constant 0 : index
    %c0_13 = arith.constant 0 : index
    %11 = vector.load %arg14[%c0_12, %c0_13] : memref<16x256xf32, #tpu.memory_space<vmem>>, vector<2x128xf32>
    %12 = vector.extract_strided_slice %10 {offsets = [0, 0], sizes = [2, 128], strides = [1, 1]} : vector<2x256xf32> to vector<2x128xf32>
    %13 = arith.addf %11, %12 : vector<2x128xf32>
    %c14 = arith.constant 14 : index
    %c128 = arith.constant 128 : index
    %14 = vector.load %arg14[%c14, %c128] : memref<16x256xf32, #tpu.memory_space<vmem>>, vector<2x128xf32>
    %15 = vector.extract_strided_slice %10 {offsets = [0, 128], sizes = [2, 128], strides = [1, 1]} : vector<2x256xf32> to vector<2x128xf32>
    %16 = arith.addf %14, %15 : vector<2x128xf32>
    %17 = vector.extract_strided_slice %9 {offsets = [0, 0], sizes = [2, 32], strides = [1, 1]} : vector<2x64xf32> to vector<2x32xf32>
    %18 = vector.extract_strided_slice %13 {offsets = [0, 0], sizes = [2, 32], strides = [1, 1]} : vector<2x128xf32> to vector<2x32xf32>
    %19 = arith.negf %18 : vector<2x32xf32>
    %20 = math.exp %19 : vector<2x32xf32>
    %cst_14 = arith.constant 1.000000e+00 : f32
    %21 = vector.broadcast %cst_14 : f32 to vector<2x32xf32>
    %22 = arith.addf %21, %20 : vector<2x32xf32>
    %23 = arith.divf %21, %22 : vector<2x32xf32>
    %24 = vector.extract_strided_slice %13 {offsets = [0, 32], sizes = [2, 32], strides = [1, 1]} : vector<2x128xf32> to vector<2x32xf32>
    %25 = arith.negf %24 : vector<2x32xf32>
    %26 = math.exp %25 : vector<2x32xf32>
    %cst_15 = arith.constant 1.000000e+00 : f32
    %27 = vector.broadcast %cst_15 : f32 to vector<2x32xf32>
    %28 = arith.addf %27, %26 : vector<2x32xf32>
    %29 = arith.divf %27, %28 : vector<2x32xf32>
    %30 = vector.extract_strided_slice %13 {offsets = [0, 64], sizes = [2, 32], strides = [1, 1]} : vector<2x128xf32> to vector<2x32xf32>
    %31 = math.tanh %30 : vector<2x32xf32>
    %32 = vector.extract_strided_slice %13 {offsets = [0, 96], sizes = [2, 32], strides = [1, 1]} : vector<2x128xf32> to vector<2x32xf32>
    %33 = arith.negf %32 : vector<2x32xf32>
    %34 = math.exp %33 : vector<2x32xf32>
    %cst_16 = arith.constant 1.000000e+00 : f32
    %35 = vector.broadcast %cst_16 : f32 to vector<2x32xf32>
    %36 = arith.addf %35, %34 : vector<2x32xf32>
    %37 = arith.divf %35, %36 : vector<2x32xf32>
    %38 = arith.mulf %29, %17 : vector<2x32xf32>
    %39 = arith.mulf %23, %31 : vector<2x32xf32>
    %40 = arith.addf %38, %39 : vector<2x32xf32>
    %41 = math.tanh %40 : vector<2x32xf32>
    %42 = arith.mulf %37, %41 : vector<2x32xf32>
    %43 = vector.extract_strided_slice %9 {offsets = [0, 32], sizes = [2, 32], strides = [1, 1]} : vector<2x64xf32> to vector<2x32xf32>
    %44 = vector.extract_strided_slice %16 {offsets = [0, 0], sizes = [2, 32], strides = [1, 1]} : vector<2x128xf32> to vector<2x32xf32>
    %45 = arith.negf %44 : vector<2x32xf32>
    %46 = math.exp %45 : vector<2x32xf32>
    %cst_17 = arith.constant 1.000000e+00 : f32
    %47 = vector.broadcast %cst_17 : f32 to vector<2x32xf32>
    %48 = arith.addf %47, %46 : vector<2x32xf32>
    %49 = arith.divf %47, %48 : vector<2x32xf32>
    %50 = vector.extract_strided_slice %16 {offsets = [0, 32], sizes = [2, 32], strides = [1, 1]} : vector<2x128xf32> to vector<2x32xf32>
    %51 = arith.negf %50 : vector<2x32xf32>
    %52 = math.exp %51 : vector<2x32xf32>
    %cst_18 = arith.constant 1.000000e+00 : f32
    %53 = vector.broadcast %cst_18 : f32 to vector<2x32xf32>
    %54 = arith.addf %53, %52 : vector<2x32xf32>
    %55 = arith.divf %53, %54 : vector<2x32xf32>
    %56 = vector.extract_strided_slice %16 {offsets = [0, 64], sizes = [2, 32], strides = [1, 1]} : vector<2x128xf32> to vector<2x32xf32>
    %57 = math.tanh %56 : vector<2x32xf32>
    %58 = vector.extract_strided_slice %16 {offsets = [0, 96], sizes = [2, 32], strides = [1, 1]} : vector<2x128xf32> to vector<2x32xf32>
    %59 = arith.negf %58 : vector<2x32xf32>
    %60 = math.exp %59 : vector<2x32xf32>
    %cst_19 = arith.constant 1.000000e+00 : f32
    %61 = vector.broadcast %cst_19 : f32 to vector<2x32xf32>
    %62 = arith.addf %61, %60 : vector<2x32xf32>
    %63 = arith.divf %61, %62 : vector<2x32xf32>
    %64 = arith.mulf %55, %43 : vector<2x32xf32>
    %65 = arith.mulf %49, %57 : vector<2x32xf32>
    %66 = arith.addf %64, %65 : vector<2x32xf32>
    %67 = math.tanh %66 : vector<2x32xf32>
    %68 = arith.mulf %63, %67 : vector<2x32xf32>
    %c0_20 = arith.constant 0 : index
    %c0_21 = arith.constant 0 : index
    %69 = vector.load %arg15[%c0_20, %c0_21] : memref<16x64xf32, #tpu.memory_space<vmem>>, vector<2x32xf32>
    tpu.vector_store %arg15[%c0_20, %c0_21], %42 {strides = array<i32>} : memref<16x64xf32, #tpu.memory_space<vmem>>, vector<2x32xf32>,
    %c14_22 = arith.constant 14 : index
    %c32 = arith.constant 32 : index
    %70 = vector.load %arg15[%c14_22, %c32] : memref<16x64xf32, #tpu.memory_space<vmem>>, vector<2x32xf32>
    tpu.vector_store %arg15[%c14_22, %c32], %68 {strides = array<i32>} : memref<16x64xf32, #tpu.memory_space<vmem>>, vector<2x32xf32>,
    %71 = tpu.concatenate %42, %68 in 1 : vector<2x32xf32>, vector<2x32xf32> -> vector<2x64xf32>
    %72 = tpu.concatenate %40, %66 in 1 : vector<2x32xf32>, vector<2x32xf32> -> vector<2x64xf32>
    %cst_23 = arith.constant dense<0.000000e+00> : vector<2x256xf32>
    %73 = tpu.matmul %71, %7, %cst_23 {dimension_numbers = #tpu.dot_dimension_numbers<[1], [0], [0], [1], [0, 0, 1, 1], [], []>} : vector<2x64xf32>, vector<64x256xf32>, vector<2x256xf32> -> vector<2x256xf32>
    %c2 = arith.constant 2 : index
    %c0_24 = arith.constant 0 : index
    %74 = vector.load %arg14[%c2, %c0_24] : memref<16x256xf32, #tpu.memory_space<vmem>>, vector<2x128xf32>
    %75 = vector.extract_strided_slice %73 {offsets = [0, 0], sizes = [2, 128], strides = [1, 1]} : vector<2x256xf32> to vector<2x128xf32>
    %76 = arith.addf %74, %75 : vector<2x128xf32>
    %c12 = arith.constant 12 : index
    %c128_25 = arith.constant 128 : index
    %77 = vector.load %arg14[%c12, %c128_25] : memref<16x256xf32, #tpu.memory_space<vmem>>, vector<2x128xf32>
    %78 = vector.extract_strided_slice %73 {offsets = [0, 128], sizes = [2, 128], strides = [1, 1]} : vector<2x256xf32> to vector<2x128xf32>
    %79 = arith.addf %77, %78 : vector<2x128xf32>
    %80 = vector.extract_strided_slice %72 {offsets = [0, 0], sizes = [2, 32], strides = [1, 1]} : vector<2x64xf32> to vector<2x32xf32>
    %81 = vector.extract_strided_slice %76 {offsets = [0, 0], sizes = [2, 32], strides = [1, 1]} : vector<2x128xf32> to vector<2x32xf32>
    %82 = arith.negf %81 : vector<2x32xf32>
    %83 = math.exp %82 : vector<2x32xf32>
    %cst_26 = arith.constant 1.000000e+00 : f32
    %84 = vector.broadcast %cst_26 : f32 to vector<2x32xf32>
    %85 = arith.addf %84, %83 : vector<2x32xf32>
    %86 = arith.divf %84, %85 : vector<2x32xf32>
    %87 = vector.extract_strided_slice %76 {offsets = [0, 32], sizes = [2, 32], strides = [1, 1]} : vector<2x128xf32> to vector<2x32xf32>
    %88 = arith.negf %87 : vector<2x32xf32>
    %89 = math.exp %88 : vector<2x32xf32>
    %cst_27 = arith.constant 1.000000e+00 : f32
    %90 = vector.broadcast %cst_27 : f32 to vector<2x32xf32>
    %91 = arith.addf %90, %89 : vector<2x32xf32>
    %92 = arith.divf %90, %91 : vector<2x32xf32>
    %93 = vector.extract_strided_slice %76 {offsets = [0, 64], sizes = [2, 32], strides = [1, 1]} : vector<2x128xf32> to vector<2x32xf32>
    %94 = math.tanh %93 : vector<2x32xf32>
    %95 = vector.extract_strided_slice %76 {offsets = [0, 96], sizes = [2, 32], strides = [1, 1]} : vector<2x128xf32> to vector<2x32xf32>
    %96 = arith.negf %95 : vector<2x32xf32>
    %97 = math.exp %96 : vector<2x32xf32>
    %cst_28 = arith.constant 1.000000e+00 : f32
    %98 = vector.broadcast %cst_28 : f32 to vector<2x32xf32>
    %99 = arith.addf %98, %97 : vector<2x32xf32>
    %100 = arith.divf %98, %99 : vector<2x32xf32>
    %101 = arith.mulf %92, %80 : vector<2x32xf32>
    %102 = arith.mulf %86, %94 : vector<2x32xf32>
    %103 = arith.addf %101, %102 : vector<2x32xf32>
    %104 = math.tanh %103 : vector<2x32xf32>
    %105 = arith.mulf %100, %104 : vector<2x32xf32>
    %106 = vector.extract_strided_slice %72 {offsets = [0, 32], sizes = [2, 32], strides = [1, 1]} : vector<2x64xf32> to vector<2x32xf32>
    %107 = vector.extract_strided_slice %79 {offsets = [0, 0], sizes = [2, 32], strides = [1, 1]} : vector<2x128xf32> to vector<2x32xf32>
    %108 = arith.negf %107 : vector<2x32xf32>
    %109 = math.exp %108 : vector<2x32xf32>
    %cst_29 = arith.constant 1.000000e+00 : f32
    %110 = vector.broadcast %cst_29 : f32 to vector<2x32xf32>
    %111 = arith.addf %110, %109 : vector<2x32xf32>
    %112 = arith.divf %110, %111 : vector<2x32xf32>
    %113 = vector.extract_strided_slice %79 {offsets = [0, 32], sizes = [2, 32], strides = [1, 1]} : vector<2x128xf32> to vector<2x32xf32>
    %114 = arith.negf %113 : vector<2x32xf32>
    %115 = math.exp %114 : vector<2x32xf32>
    %cst_30 = arith.constant 1.000000e+00 : f32
    %116 = vector.broadcast %cst_30 : f32 to vector<2x32xf32>
    %117 = arith.addf %116, %115 : vector<2x32xf32>
    %118 = arith.divf %116, %117 : vector<2x32xf32>
    %119 = vector.extract_strided_slice %79 {offsets = [0, 64], sizes = [2, 32], strides = [1, 1]} : vector<2x128xf32> to vector<2x32xf32>
    %120 = math.tanh %119 : vector<2x32xf32>
    %121 = vector.extract_strided_slice %79 {offsets = [0, 96], sizes = [2, 32], strides = [1, 1]} : vector<2x128xf32> to vector<2x32xf32>
    %122 = arith.negf %121 : vector<2x32xf32>
    %123 = math.exp %122 : vector<2x32xf32>
    %cst_31 = arith.constant 1.000000e+00 : f32
    %124 = vector.broadcast %cst_31 : f32 to vector<2x32xf32>
    %125 = arith.addf %124, %123 : vector<2x32xf32>
    %126 = arith.divf %124, %125 : vector<2x32xf32>
    %127 = arith.mulf %118, %106 : vector<2x32xf32>
    %128 = arith.mulf %112, %120 : vector<2x32xf32>
    %129 = arith.addf %127, %128 : vector<2x32xf32>
    %130 = math.tanh %129 : vector<2x32xf32>
    %131 = arith.mulf %126, %130 : vector<2x32xf32>
    %c2_32 = arith.constant 2 : index
    %c0_33 = arith.constant 0 : index
    %132 = vector.load %arg15[%c2_32, %c0_33] : memref<16x64xf32, #tpu.memory_space<vmem>>, vector<2x32xf32>
    tpu.vector_store %arg15[%c2_32, %c0_33], %105 {strides = array<i32>} : memref<16x64xf32, #tpu.memory_space<vmem>>, vector<2x32xf32>,
    %c12_34 = arith.constant 12 : index
    %c32_35 = arith.constant 32 : index
    %133 = vector.load %arg15[%c12_34, %c32_35] : memref<16x64xf32, #tpu.memory_space<vmem>>, vector<2x32xf32>
    tpu.vector_store %arg15[%c12_34, %c32_35], %131 {strides = array<i32>} : memref<16x64xf32, #tpu.memory_space<vmem>>, vector<2x32xf32>,
    %134 = tpu.concatenate %105, %131 in 1 : vector<2x32xf32>, vector<2x32xf32> -> vector<2x64xf32>
    %135 = tpu.concatenate %103, %129 in 1 : vector<2x32xf32>, vector<2x32xf32> -> vector<2x64xf32>
    %cst_36 = arith.constant dense<0.000000e+00> : vector<2x256xf32>
    %136 = tpu.matmul %134, %7, %cst_36 {dimension_numbers = #tpu.dot_dimension_numbers<[1], [0], [0], [1], [0, 0, 1, 1], [], []>} : vector<2x64xf32>, vector<64x256xf32>, vector<2x256xf32> -> vector<2x256xf32>
    %c4 = arith.constant 4 : index
    %c0_37 = arith.constant 0 : index
    %137 = vector.load %arg14[%c4, %c0_37] : memref<16x256xf32, #tpu.memory_space<vmem>>, vector<2x128xf32>
    %138 = vector.extract_strided_slice %136 {offsets = [0, 0], sizes = [2, 128], strides = [1, 1]} : vector<2x256xf32> to vector<2x128xf32>
    %139 = arith.addf %137, %138 : vector<2x128xf32>
    %c10 = arith.constant 10 : index
    %c128_38 = arith.constant 128 : index
    %140 = vector.load %arg14[%c10, %c128_38] : memref<16x256xf32, #tpu.memory_space<vmem>>, vector<2x128xf32>
    %141 = vector.extract_strided_slice %136 {offsets = [0, 128], sizes = [2, 128], strides = [1, 1]} : vector<2x256xf32> to vector<2x128xf32>
    %142 = arith.addf %140, %141 : vector<2x128xf32>
    %143 = vector.extract_strided_slice %135 {offsets = [0, 0], sizes = [2, 32], strides = [1, 1]} : vector<2x64xf32> to vector<2x32xf32>
    %144 = vector.extract_strided_slice %139 {offsets = [0, 0], sizes = [2, 32], strides = [1, 1]} : vector<2x128xf32> to vector<2x32xf32>
    %145 = arith.negf %144 : vector<2x32xf32>
    %146 = math.exp %145 : vector<2x32xf32>
    %cst_39 = arith.constant 1.000000e+00 : f32
    %147 = vector.broadcast %cst_39 : f32 to vector<2x32xf32>
    %148 = arith.addf %147, %146 : vector<2x32xf32>
    %149 = arith.divf %147, %148 : vector<2x32xf32>
    %150 = vector.extract_strided_slice %139 {offsets = [0, 32], sizes = [2, 32], strides = [1, 1]} : vector<2x128xf32> to vector<2x32xf32>
    %151 = arith.negf %150 : vector<2x32xf32>
    %152 = math.exp %151 : vector<2x32xf32>
    %cst_40 = arith.constant 1.000000e+00 : f32
    %153 = vector.broadcast %cst_40 : f32 to vector<2x32xf32>
    %154 = arith.addf %153, %152 : vector<2x32xf32>
    %155 = arith.divf %153, %154 : vector<2x32xf32>
    %156 = vector.extract_strided_slice %139 {offsets = [0, 64], sizes = [2, 32], strides = [1, 1]} : vector<2x128xf32> to vector<2x32xf32>
    %157 = math.tanh %156 : vector<2x32xf32>
    %158 = vector.extract_strided_slice %139 {offsets = [0, 96], sizes = [2, 32], strides = [1, 1]} : vector<2x128xf32> to vector<2x32xf32>
    %159 = arith.negf %158 : vector<2x32xf32>
    %160 = math.exp %159 : vector<2x32xf32>
    %cst_41 = arith.constant 1.000000e+00 : f32
    %161 = vector.broadcast %cst_41 : f32 to vector<2x32xf32>
    %162 = arith.addf %161, %160 : vector<2x32xf32>
    %163 = arith.divf %161, %162 : vector<2x32xf32>
    %164 = arith.mulf %155, %143 : vector<2x32xf32>
    %165 = arith.mulf %149, %157 : vector<2x32xf32>
    %166 = arith.addf %164, %165 : vector<2x32xf32>
    %167 = math.tanh %166 : vector<2x32xf32>
    %168 = arith.mulf %163, %167 : vector<2x32xf32>
    %169 = vector.extract_strided_slice %135 {offsets = [0, 32], sizes = [2, 32], strides = [1, 1]} : vector<2x64xf32> to vector<2x32xf32>
    %170 = vector.extract_strided_slice %142 {offsets = [0, 0], sizes = [2, 32], strides = [1, 1]} : vector<2x128xf32> to vector<2x32xf32>
    %171 = arith.negf %170 : vector<2x32xf32>
    %172 = math.exp %171 : vector<2x32xf32>
    %cst_42 = arith.constant 1.000000e+00 : f32
    %173 = vector.broadcast %cst_42 : f32 to vector<2x32xf32>
    %174 = arith.addf %173, %172 : vector<2x32xf32>
    %175 = arith.divf %173, %174 : vector<2x32xf32>
    %176 = vector.extract_strided_slice %142 {offsets = [0, 32], sizes = [2, 32], strides = [1, 1]} : vector<2x128xf32> to vector<2x32xf32>
    %177 = arith.negf %176 : vector<2x32xf32>
    %178 = math.exp %177 : vector<2x32xf32>
    %cst_43 = arith.constant 1.000000e+00 : f32
    %179 = vector.broadcast %cst_43 : f32 to vector<2x32xf32>
    %180 = arith.addf %179, %178 : vector<2x32xf32>
    %181 = arith.divf %179, %180 : vector<2x32xf32>
    %182 = vector.extract_strided_slice %142 {offsets = [0, 64], sizes = [2, 32], strides = [1, 1]} : vector<2x128xf32> to vector<2x32xf32>
    %183 = math.tanh %182 : vector<2x32xf32>
    %184 = vector.extract_strided_slice %142 {offsets = [0, 96], sizes = [2, 32], strides = [1, 1]} : vector<2x128xf32> to vector<2x32xf32>
    %185 = arith.negf %184 : vector<2x32xf32>
    %186 = math.exp %185 : vector<2x32xf32>
    %cst_44 = arith.constant 1.000000e+00 : f32
    %187 = vector.broadcast %cst_44 : f32 to vector<2x32xf32>
    %188 = arith.addf %187, %186 : vector<2x32xf32>
    %189 = arith.divf %187, %188 : vector<2x32xf32>
    %190 = arith.mulf %181, %169 : vector<2x32xf32>
    %191 = arith.mulf %175, %183 : vector<2x32xf32>
    %192 = arith.addf %190, %191 : vector<2x32xf32>
    %193 = math.tanh %192 : vector<2x32xf32>
    %194 = arith.mulf %189, %193 : vector<2x32xf32>
    %c4_45 = arith.constant 4 : index
    %c0_46 = arith.constant 0 : index
    %195 = vector.load %arg15[%c4_45, %c0_46] : memref<16x64xf32, #tpu.memory_space<vmem>>, vector<2x32xf32>
    tpu.vector_store %arg15[%c4_45, %c0_46], %168 {strides = array<i32>} : memref<16x64xf32, #tpu.memory_space<vmem>>, vector<2x32xf32>,
    %c10_47 = arith.constant 10 : index
    %c32_48 = arith.constant 32 : index
    %196 = vector.load %arg15[%c10_47, %c32_48] : memref<16x64xf32, #tpu.memory_space<vmem>>, vector<2x32xf32>
    tpu.vector_store %arg15[%c10_47, %c32_48], %194 {strides = array<i32>} : memref<16x64xf32, #tpu.memory_space<vmem>>, vector<2x32xf32>,
    %197 = tpu.concatenate %168, %194 in 1 : vector<2x32xf32>, vector<2x32xf32> -> vector<2x64xf32>
    %198 = tpu.concatenate %166, %192 in 1 : vector<2x32xf32>, vector<2x32xf32> -> vector<2x64xf32>
    %cst_49 = arith.constant dense<0.000000e+00> : vector<2x256xf32>
    %199 = tpu.matmul %197, %7, %cst_49 {dimension_numbers = #tpu.dot_dimension_numbers<[1], [0], [0], [1], [0, 0, 1, 1], [], []>} : vector<2x64xf32>, vector<64x256xf32>, vector<2x256xf32> -> vector<2x256xf32>
    %c6 = arith.constant 6 : index
    %c0_50 = arith.constant 0 : index
    %200 = vector.load %arg14[%c6, %c0_50] : memref<16x256xf32, #tpu.memory_space<vmem>>, vector<2x128xf32>
    %201 = vector.extract_strided_slice %199 {offsets = [0, 0], sizes = [2, 128], strides = [1, 1]} : vector<2x256xf32> to vector<2x128xf32>
    %202 = arith.addf %200, %201 : vector<2x128xf32>
    %c8 = arith.constant 8 : index
    %c128_51 = arith.constant 128 : index
    %203 = vector.load %arg14[%c8, %c128_51] : memref<16x256xf32, #tpu.memory_space<vmem>>, vector<2x128xf32>
    %204 = vector.extract_strided_slice %199 {offsets = [0, 128], sizes = [2, 128], strides = [1, 1]} : vector<2x256xf32> to vector<2x128xf32>
    %205 = arith.addf %203, %204 : vector<2x128xf32>
    %206 = vector.extract_strided_slice %198 {offsets = [0, 0], sizes = [2, 32], strides = [1, 1]} : vector<2x64xf32> to vector<2x32xf32>
    %207 = vector.extract_strided_slice %202 {offsets = [0, 0], sizes = [2, 32], strides = [1, 1]} : vector<2x128xf32> to vector<2x32xf32>
    %208 = arith.negf %207 : vector<2x32xf32>
    %209 = math.exp %208 : vector<2x32xf32>
    %cst_52 = arith.constant 1.000000e+00 : f32
    %210 = vector.broadcast %cst_52 : f32 to vector<2x32xf32>
    %211 = arith.addf %210, %209 : vector<2x32xf32>
    %212 = arith.divf %210, %211 : vector<2x32xf32>
    %213 = vector.extract_strided_slice %202 {offsets = [0, 32], sizes = [2, 32], strides = [1, 1]} : vector<2x128xf32> to vector<2x32xf32>
    %214 = arith.negf %213 : vector<2x32xf32>
    %215 = math.exp %214 : vector<2x32xf32>
    %cst_53 = arith.constant 1.000000e+00 : f32
    %216 = vector.broadcast %cst_53 : f32 to vector<2x32xf32>
    %217 = arith.addf %216, %215 : vector<2x32xf32>
    %218 = arith.divf %216, %217 : vector<2x32xf32>
    %219 = vector.extract_strided_slice %202 {offsets = [0, 64], sizes = [2, 32], strides = [1, 1]} : vector<2x128xf32> to vector<2x32xf32>
    %220 = math.tanh %219 : vector<2x32xf32>
    %221 = vector.extract_strided_slice %202 {offsets = [0, 96], sizes = [2, 32], strides = [1, 1]} : vector<2x128xf32> to vector<2x32xf32>
    %222 = arith.negf %221 : vector<2x32xf32>
    %223 = math.exp %222 : vector<2x32xf32>
    %cst_54 = arith.constant 1.000000e+00 : f32
    %224 = vector.broadcast %cst_54 : f32 to vector<2x32xf32>
    %225 = arith.addf %224, %223 : vector<2x32xf32>
    %226 = arith.divf %224, %225 : vector<2x32xf32>
    %227 = arith.mulf %218, %206 : vector<2x32xf32>
    %228 = arith.mulf %212, %220 : vector<2x32xf32>
    %229 = arith.addf %227, %228 : vector<2x32xf32>
    %230 = math.tanh %229 : vector<2x32xf32>
    %231 = arith.mulf %226, %230 : vector<2x32xf32>
    %232 = vector.extract_strided_slice %198 {offsets = [0, 32], sizes = [2, 32], strides = [1, 1]} : vector<2x64xf32> to vector<2x32xf32>
    %233 = vector.extract_strided_slice %205 {offsets = [0, 0], sizes = [2, 32], strides = [1, 1]} : vector<2x128xf32> to vector<2x32xf32>
    %234 = arith.negf %233 : vector<2x32xf32>
    %235 = math.exp %234 : vector<2x32xf32>
    %cst_55 = arith.constant 1.000000e+00 : f32
    %236 = vector.broadcast %cst_55 : f32 to vector<2x32xf32>
    %237 = arith.addf %236, %235 : vector<2x32xf32>
    %238 = arith.divf %236, %237 : vector<2x32xf32>
    %239 = vector.extract_strided_slice %205 {offsets = [0, 32], sizes = [2, 32], strides = [1, 1]} : vector<2x128xf32> to vector<2x32xf32>
    %240 = arith.negf %239 : vector<2x32xf32>
    %241 = math.exp %240 : vector<2x32xf32>
    %cst_56 = arith.constant 1.000000e+00 : f32
    %242 = vector.broadcast %cst_56 : f32 to vector<2x32xf32>
    %243 = arith.addf %242, %241 : vector<2x32xf32>
    %244 = arith.divf %242, %243 : vector<2x32xf32>
    %245 = vector.extract_strided_slice %205 {offsets = [0, 64], sizes = [2, 32], strides = [1, 1]} : vector<2x128xf32> to vector<2x32xf32>
    %246 = math.tanh %245 : vector<2x32xf32>
    %247 = vector.extract_strided_slice %205 {offsets = [0, 96], sizes = [2, 32], strides = [1, 1]} : vector<2x128xf32> to vector<2x32xf32>
    %248 = arith.negf %247 : vector<2x32xf32>
    %249 = math.exp %248 : vector<2x32xf32>
    %cst_57 = arith.constant 1.000000e+00 : f32
    %250 = vector.broadcast %cst_57 : f32 to vector<2x32xf32>
    %251 = arith.addf %250, %249 : vector<2x32xf32>
    %252 = arith.divf %250, %251 : vector<2x32xf32>
    %253 = arith.mulf %244, %232 : vector<2x32xf32>
    %254 = arith.mulf %238, %246 : vector<2x32xf32>
    %255 = arith.addf %253, %254 : vector<2x32xf32>
    %256 = math.tanh %255 : vector<2x32xf32>
    %257 = arith.mulf %252, %256 : vector<2x32xf32>
    %c6_58 = arith.constant 6 : index
    %c0_59 = arith.constant 0 : index
    %258 = vector.load %arg15[%c6_58, %c0_59] : memref<16x64xf32, #tpu.memory_space<vmem>>, vector<2x32xf32>
    tpu.vector_store %arg15[%c6_58, %c0_59], %231 {strides = array<i32>} : memref<16x64xf32, #tpu.memory_space<vmem>>, vector<2x32xf32>,
    %c8_60 = arith.constant 8 : index
    %c32_61 = arith.constant 32 : index
    %259 = vector.load %arg15[%c8_60, %c32_61] : memref<16x64xf32, #tpu.memory_space<vmem>>, vector<2x32xf32>
    tpu.vector_store %arg15[%c8_60, %c32_61], %257 {strides = array<i32>} : memref<16x64xf32, #tpu.memory_space<vmem>>, vector<2x32xf32>,
    %260 = tpu.concatenate %231, %257 in 1 : vector<2x32xf32>, vector<2x32xf32> -> vector<2x64xf32>
    %261 = tpu.concatenate %229, %255 in 1 : vector<2x32xf32>, vector<2x32xf32> -> vector<2x64xf32>
    %cst_62 = arith.constant dense<0.000000e+00> : vector<2x256xf32>
    %262 = tpu.matmul %260, %7, %cst_62 {dimension_numbers = #tpu.dot_dimension_numbers<[1], [0], [0], [1], [0, 0, 1, 1], [], []>} : vector<2x64xf32>, vector<64x256xf32>, vector<2x256xf32> -> vector<2x256xf32>
    %c8_63 = arith.constant 8 : index
    %c0_64 = arith.constant 0 : index
    %263 = vector.load %arg14[%c8_63, %c0_64] : memref<16x256xf32, #tpu.memory_space<vmem>>, vector<2x128xf32>
    %264 = vector.extract_strided_slice %262 {offsets = [0, 0], sizes = [2, 128], strides = [1, 1]} : vector<2x256xf32> to vector<2x128xf32>
    %265 = arith.addf %263, %264 : vector<2x128xf32>
    %c6_65 = arith.constant 6 : index
    %c128_66 = arith.constant 128 : index
    %266 = vector.load %arg14[%c6_65, %c128_66] : memref<16x256xf32, #tpu.memory_space<vmem>>, vector<2x128xf32>
    %267 = vector.extract_strided_slice %262 {offsets = [0, 128], sizes = [2, 128], strides = [1, 1]} : vector<2x256xf32> to vector<2x128xf32>
    %268 = arith.addf %266, %267 : vector<2x128xf32>
    %269 = vector.extract_strided_slice %261 {offsets = [0, 0], sizes = [2, 32], strides = [1, 1]} : vector<2x64xf32> to vector<2x32xf32>
    %270 = vector.extract_strided_slice %265 {offsets = [0, 0], sizes = [2, 32], strides = [1, 1]} : vector<2x128xf32> to vector<2x32xf32>
    %271 = arith.negf %270 : vector<2x32xf32>
    %272 = math.exp %271 : vector<2x32xf32>
    %cst_67 = arith.constant 1.000000e+00 : f32
    %273 = vector.broadcast %cst_67 : f32 to vector<2x32xf32>
    %274 = arith.addf %273, %272 : vector<2x32xf32>
    %275 = arith.divf %273, %274 : vector<2x32xf32>
    %276 = vector.extract_strided_slice %265 {offsets = [0, 32], sizes = [2, 32], strides = [1, 1]} : vector<2x128xf32> to vector<2x32xf32>
    %277 = arith.negf %276 : vector<2x32xf32>
    %278 = math.exp %277 : vector<2x32xf32>
    %cst_68 = arith.constant 1.000000e+00 : f32
    %279 = vector.broadcast %cst_68 : f32 to vector<2x32xf32>
    %280 = arith.addf %279, %278 : vector<2x32xf32>
    %281 = arith.divf %279, %280 : vector<2x32xf32>
    %282 = vector.extract_strided_slice %265 {offsets = [0, 64], sizes = [2, 32], strides = [1, 1]} : vector<2x128xf32> to vector<2x32xf32>
    %283 = math.tanh %282 : vector<2x32xf32>
    %284 = vector.extract_strided_slice %265 {offsets = [0, 96], sizes = [2, 32], strides = [1, 1]} : vector<2x128xf32> to vector<2x32xf32>
    %285 = arith.negf %284 : vector<2x32xf32>
    %286 = math.exp %285 : vector<2x32xf32>
    %cst_69 = arith.constant 1.000000e+00 : f32
    %287 = vector.broadcast %cst_69 : f32 to vector<2x32xf32>
    %288 = arith.addf %287, %286 : vector<2x32xf32>
    %289 = arith.divf %287, %288 : vector<2x32xf32>
    %290 = arith.mulf %281, %269 : vector<2x32xf32>
    %291 = arith.mulf %275, %283 : vector<2x32xf32>
    %292 = arith.addf %290, %291 : vector<2x32xf32>
    %293 = math.tanh %292 : vector<2x32xf32>
    %294 = arith.mulf %289, %293 : vector<2x32xf32>
    %295 = vector.extract_strided_slice %261 {offsets = [0, 32], sizes = [2, 32], strides = [1, 1]} : vector<2x64xf32> to vector<2x32xf32>
    %296 = vector.extract_strided_slice %268 {offsets = [0, 0], sizes = [2, 32], strides = [1, 1]} : vector<2x128xf32> to vector<2x32xf32>
    %297 = arith.negf %296 : vector<2x32xf32>
    %298 = math.exp %297 : vector<2x32xf32>
    %cst_70 = arith.constant 1.000000e+00 : f32
    %299 = vector.broadcast %cst_70 : f32 to vector<2x32xf32>
    %300 = arith.addf %299, %298 : vector<2x32xf32>
    %301 = arith.divf %299, %300 : vector<2x32xf32>
    %302 = vector.extract_strided_slice %268 {offsets = [0, 32], sizes = [2, 32], strides = [1, 1]} : vector<2x128xf32> to vector<2x32xf32>
    %303 = arith.negf %302 : vector<2x32xf32>
    %304 = math.exp %303 : vector<2x32xf32>
    %cst_71 = arith.constant 1.000000e+00 : f32
    %305 = vector.broadcast %cst_71 : f32 to vector<2x32xf32>
    %306 = arith.addf %305, %304 : vector<2x32xf32>
    %307 = arith.divf %305, %306 : vector<2x32xf32>
    %308 = vector.extract_strided_slice %268 {offsets = [0, 64], sizes = [2, 32], strides = [1, 1]} : vector<2x128xf32> to vector<2x32xf32>
    %309 = math.tanh %308 : vector<2x32xf32>
    %310 = vector.extract_strided_slice %268 {offsets = [0, 96], sizes = [2, 32], strides = [1, 1]} : vector<2x128xf32> to vector<2x32xf32>
    %311 = arith.negf %310 : vector<2x32xf32>
    %312 = math.exp %311 : vector<2x32xf32>
    %cst_72 = arith.constant 1.000000e+00 : f32
    %313 = vector.broadcast %cst_72 : f32 to vector<2x32xf32>
    %314 = arith.addf %313, %312 : vector<2x32xf32>
    %315 = arith.divf %313, %314 : vector<2x32xf32>
    %316 = arith.mulf %307, %295 : vector<2x32xf32>
    %317 = arith.mulf %301, %309 : vector<2x32xf32>
    %318 = arith.addf %316, %317 : vector<2x32xf32>
    %319 = math.tanh %318 : vector<2x32xf32>
    %320 = arith.mulf %315, %319 : vector<2x32xf32>
    %c8_73 = arith.constant 8 : index
    %c0_74 = arith.constant 0 : index
    %321 = vector.load %arg15[%c8_73, %c0_74] : memref<16x64xf32, #tpu.memory_space<vmem>>, vector<2x32xf32>
    tpu.vector_store %arg15[%c8_73, %c0_74], %294 {strides = array<i32>} : memref<16x64xf32, #tpu.memory_space<vmem>>, vector<2x32xf32>,
    %c6_75 = arith.constant 6 : index
    %c32_76 = arith.constant 32 : index
    %322 = vector.load %arg15[%c6_75, %c32_76] : memref<16x64xf32, #tpu.memory_space<vmem>>, vector<2x32xf32>
    tpu.vector_store %arg15[%c6_75, %c32_76], %320 {strides = array<i32>} : memref<16x64xf32, #tpu.memory_space<vmem>>, vector<2x32xf32>,
    %323 = tpu.concatenate %294, %320 in 1 : vector<2x32xf32>, vector<2x32xf32> -> vector<2x64xf32>
    %324 = tpu.concatenate %292, %318 in 1 : vector<2x32xf32>, vector<2x32xf32> -> vector<2x64xf32>
    %cst_77 = arith.constant dense<0.000000e+00> : vector<2x256xf32>
    %325 = tpu.matmul %323, %7, %cst_77 {dimension_numbers = #tpu.dot_dimension_numbers<[1], [0], [0], [1], [0, 0, 1, 1], [], []>} : vector<2x64xf32>, vector<64x256xf32>, vector<2x256xf32> -> vector<2x256xf32>
    %c10_78 = arith.constant 10 : index
    %c0_79 = arith.constant 0 : index
    %326 = vector.load %arg14[%c10_78, %c0_79] : memref<16x256xf32, #tpu.memory_space<vmem>>, vector<2x128xf32>
    %327 = vector.extract_strided_slice %325 {offsets = [0, 0], sizes = [2, 128], strides = [1, 1]} : vector<2x256xf32> to vector<2x128xf32>
    %328 = arith.addf %326, %327 : vector<2x128xf32>
    %c4_80 = arith.constant 4 : index
    %c128_81 = arith.constant 128 : index
    %329 = vector.load %arg14[%c4_80, %c128_81] : memref<16x256xf32, #tpu.memory_space<vmem>>, vector<2x128xf32>
    %330 = vector.extract_strided_slice %325 {offsets = [0, 128], sizes = [2, 128], strides = [1, 1]} : vector<2x256xf32> to vector<2x128xf32>
    %331 = arith.addf %329, %330 : vector<2x128xf32>
    %332 = vector.extract_strided_slice %324 {offsets = [0, 0], sizes = [2, 32], strides = [1, 1]} : vector<2x64xf32> to vector<2x32xf32>
    %333 = vector.extract_strided_slice %328 {offsets = [0, 0], sizes = [2, 32], strides = [1, 1]} : vector<2x128xf32> to vector<2x32xf32>
    %334 = arith.negf %333 : vector<2x32xf32>
    %335 = math.exp %334 : vector<2x32xf32>
    %cst_82 = arith.constant 1.000000e+00 : f32
    %336 = vector.broadcast %cst_82 : f32 to vector<2x32xf32>
    %337 = arith.addf %336, %335 : vector<2x32xf32>
    %338 = arith.divf %336, %337 : vector<2x32xf32>
    %339 = vector.extract_strided_slice %328 {offsets = [0, 32], sizes = [2, 32], strides = [1, 1]} : vector<2x128xf32> to vector<2x32xf32>
    %340 = arith.negf %339 : vector<2x32xf32>
    %341 = math.exp %340 : vector<2x32xf32>
    %cst_83 = arith.constant 1.000000e+00 : f32
    %342 = vector.broadcast %cst_83 : f32 to vector<2x32xf32>
    %343 = arith.addf %342, %341 : vector<2x32xf32>
    %344 = arith.divf %342, %343 : vector<2x32xf32>
    %345 = vector.extract_strided_slice %328 {offsets = [0, 64], sizes = [2, 32], strides = [1, 1]} : vector<2x128xf32> to vector<2x32xf32>
    %346 = math.tanh %345 : vector<2x32xf32>
    %347 = vector.extract_strided_slice %328 {offsets = [0, 96], sizes = [2, 32], strides = [1, 1]} : vector<2x128xf32> to vector<2x32xf32>
    %348 = arith.negf %347 : vector<2x32xf32>
    %349 = math.exp %348 : vector<2x32xf32>
    %cst_84 = arith.constant 1.000000e+00 : f32
    %350 = vector.broadcast %cst_84 : f32 to vector<2x32xf32>
    %351 = arith.addf %350, %349 : vector<2x32xf32>
    %352 = arith.divf %350, %351 : vector<2x32xf32>
    %353 = arith.mulf %344, %332 : vector<2x32xf32>
    %354 = arith.mulf %338, %346 : vector<2x32xf32>
    %355 = arith.addf %353, %354 : vector<2x32xf32>
    %356 = math.tanh %355 : vector<2x32xf32>
    %357 = arith.mulf %352, %356 : vector<2x32xf32>
    %358 = vector.extract_strided_slice %324 {offsets = [0, 32], sizes = [2, 32], strides = [1, 1]} : vector<2x64xf32> to vector<2x32xf32>
    %359 = vector.extract_strided_slice %331 {offsets = [0, 0], sizes = [2, 32], strides = [1, 1]} : vector<2x128xf32> to vector<2x32xf32>
    %360 = arith.negf %359 : vector<2x32xf32>
    %361 = math.exp %360 : vector<2x32xf32>
    %cst_85 = arith.constant 1.000000e+00 : f32
    %362 = vector.broadcast %cst_85 : f32 to vector<2x32xf32>
    %363 = arith.addf %362, %361 : vector<2x32xf32>
    %364 = arith.divf %362, %363 : vector<2x32xf32>
    %365 = vector.extract_strided_slice %331 {offsets = [0, 32], sizes = [2, 32], strides = [1, 1]} : vector<2x128xf32> to vector<2x32xf32>
    %366 = arith.negf %365 : vector<2x32xf32>
    %367 = math.exp %366 : vector<2x32xf32>
    %cst_86 = arith.constant 1.000000e+00 : f32
    %368 = vector.broadcast %cst_86 : f32 to vector<2x32xf32>
    %369 = arith.addf %368, %367 : vector<2x32xf32>
    %370 = arith.divf %368, %369 : vector<2x32xf32>
    %371 = vector.extract_strided_slice %331 {offsets = [0, 64], sizes = [2, 32], strides = [1, 1]} : vector<2x128xf32> to vector<2x32xf32>
    %372 = math.tanh %371 : vector<2x32xf32>
    %373 = vector.extract_strided_slice %331 {offsets = [0, 96], sizes = [2, 32], strides = [1, 1]} : vector<2x128xf32> to vector<2x32xf32>
    %374 = arith.negf %373 : vector<2x32xf32>
    %375 = math.exp %374 : vector<2x32xf32>
    %cst_87 = arith.constant 1.000000e+00 : f32
    %376 = vector.broadcast %cst_87 : f32 to vector<2x32xf32>
    %377 = arith.addf %376, %375 : vector<2x32xf32>
    %378 = arith.divf %376, %377 : vector<2x32xf32>
    %379 = arith.mulf %370, %358 : vector<2x32xf32>
    %380 = arith.mulf %364, %372 : vector<2x32xf32>
    %381 = arith.addf %379, %380 : vector<2x32xf32>
    %382 = math.tanh %381 : vector<2x32xf32>
    %383 = arith.mulf %378, %382 : vector<2x32xf32>
    %c10_88 = arith.constant 10 : index
    %c0_89 = arith.constant 0 : index
    %384 = vector.load %arg15[%c10_88, %c0_89] : memref<16x64xf32, #tpu.memory_space<vmem>>, vector<2x32xf32>
    tpu.vector_store %arg15[%c10_88, %c0_89], %357 {strides = array<i32>} : memref<16x64xf32, #tpu.memory_space<vmem>>, vector<2x32xf32>,
    %c4_90 = arith.constant 4 : index
    %c32_91 = arith.constant 32 : index
    %385 = vector.load %arg15[%c4_90, %c32_91] : memref<16x64xf32, #tpu.memory_space<vmem>>, vector<2x32xf32>
    tpu.vector_store %arg15[%c4_90, %c32_91], %383 {strides = array<i32>} : memref<16x64xf32, #tpu.memory_space<vmem>>, vector<2x32xf32>,
    %386 = tpu.concatenate %357, %383 in 1 : vector<2x32xf32>, vector<2x32xf32> -> vector<2x64xf32>
    %387 = tpu.concatenate %355, %381 in 1 : vector<2x32xf32>, vector<2x32xf32> -> vector<2x64xf32>
    %cst_92 = arith.constant dense<0.000000e+00> : vector<2x256xf32>
    %388 = tpu.matmul %386, %7, %cst_92 {dimension_numbers = #tpu.dot_dimension_numbers<[1], [0], [0], [1], [0, 0, 1, 1], [], []>} : vector<2x64xf32>, vector<64x256xf32>, vector<2x256xf32> -> vector<2x256xf32>
    %c12_93 = arith.constant 12 : index
    %c0_94 = arith.constant 0 : index
    %389 = vector.load %arg14[%c12_93, %c0_94] : memref<16x256xf32, #tpu.memory_space<vmem>>, vector<2x128xf32>
    %390 = vector.extract_strided_slice %388 {offsets = [0, 0], sizes = [2, 128], strides = [1, 1]} : vector<2x256xf32> to vector<2x128xf32>
    %391 = arith.addf %389, %390 : vector<2x128xf32>
    %c2_95 = arith.constant 2 : index
    %c128_96 = arith.constant 128 : index
    %392 = vector.load %arg14[%c2_95, %c128_96] : memref<16x256xf32, #tpu.memory_space<vmem>>, vector<2x128xf32>
    %393 = vector.extract_strided_slice %388 {offsets = [0, 128], sizes = [2, 128], strides = [1, 1]} : vector<2x256xf32> to vector<2x128xf32>
    %394 = arith.addf %392, %393 : vector<2x128xf32>
    %395 = vector.extract_strided_slice %387 {offsets = [0, 0], sizes = [2, 32], strides = [1, 1]} : vector<2x64xf32> to vector<2x32xf32>
    %396 = vector.extract_strided_slice %391 {offsets = [0, 0], sizes = [2, 32], strides = [1, 1]} : vector<2x128xf32> to vector<2x32xf32>
    %397 = arith.negf %396 : vector<2x32xf32>
    %398 = math.exp %397 : vector<2x32xf32>
    %cst_97 = arith.constant 1.000000e+00 : f32
    %399 = vector.broadcast %cst_97 : f32 to vector<2x32xf32>
    %400 = arith.addf %399, %398 : vector<2x32xf32>
    %401 = arith.divf %399, %400 : vector<2x32xf32>
    %402 = vector.extract_strided_slice %391 {offsets = [0, 32], sizes = [2, 32], strides = [1, 1]} : vector<2x128xf32> to vector<2x32xf32>
    %403 = arith.negf %402 : vector<2x32xf32>
    %404 = math.exp %403 : vector<2x32xf32>
    %cst_98 = arith.constant 1.000000e+00 : f32
    %405 = vector.broadcast %cst_98 : f32 to vector<2x32xf32>
    %406 = arith.addf %405, %404 : vector<2x32xf32>
    %407 = arith.divf %405, %406 : vector<2x32xf32>
    %408 = vector.extract_strided_slice %391 {offsets = [0, 64], sizes = [2, 32], strides = [1, 1]} : vector<2x128xf32> to vector<2x32xf32>
    %409 = math.tanh %408 : vector<2x32xf32>
    %410 = vector.extract_strided_slice %391 {offsets = [0, 96], sizes = [2, 32], strides = [1, 1]} : vector<2x128xf32> to vector<2x32xf32>
    %411 = arith.negf %410 : vector<2x32xf32>
    %412 = math.exp %411 : vector<2x32xf32>
    %cst_99 = arith.constant 1.000000e+00 : f32
    %413 = vector.broadcast %cst_99 : f32 to vector<2x32xf32>
    %414 = arith.addf %413, %412 : vector<2x32xf32>
    %415 = arith.divf %413, %414 : vector<2x32xf32>
    %416 = arith.mulf %407, %395 : vector<2x32xf32>
    %417 = arith.mulf %401, %409 : vector<2x32xf32>
    %418 = arith.addf %416, %417 : vector<2x32xf32>
    %419 = math.tanh %418 : vector<2x32xf32>
    %420 = arith.mulf %415, %419 : vector<2x32xf32>
    %421 = vector.extract_strided_slice %387 {offsets = [0, 32], sizes = [2, 32], strides = [1, 1]} : vector<2x64xf32> to vector<2x32xf32>
    %422 = vector.extract_strided_slice %394 {offsets = [0, 0], sizes = [2, 32], strides = [1, 1]} : vector<2x128xf32> to vector<2x32xf32>
    %423 = arith.negf %422 : vector<2x32xf32>
    %424 = math.exp %423 : vector<2x32xf32>
    %cst_100 = arith.constant 1.000000e+00 : f32
    %425 = vector.broadcast %cst_100 : f32 to vector<2x32xf32>
    %426 = arith.addf %425, %424 : vector<2x32xf32>
    %427 = arith.divf %425, %426 : vector<2x32xf32>
    %428 = vector.extract_strided_slice %394 {offsets = [0, 32], sizes = [2, 32], strides = [1, 1]} : vector<2x128xf32> to vector<2x32xf32>
    %429 = arith.negf %428 : vector<2x32xf32>
    %430 = math.exp %429 : vector<2x32xf32>
    %cst_101 = arith.constant 1.000000e+00 : f32
    %431 = vector.broadcast %cst_101 : f32 to vector<2x32xf32>
    %432 = arith.addf %431, %430 : vector<2x32xf32>
    %433 = arith.divf %431, %432 : vector<2x32xf32>
    %434 = vector.extract_strided_slice %394 {offsets = [0, 64], sizes = [2, 32], strides = [1, 1]} : vector<2x128xf32> to vector<2x32xf32>
    %435 = math.tanh %434 : vector<2x32xf32>
    %436 = vector.extract_strided_slice %394 {offsets = [0, 96], sizes = [2, 32], strides = [1, 1]} : vector<2x128xf32> to vector<2x32xf32>
    %437 = arith.negf %436 : vector<2x32xf32>
    %438 = math.exp %437 : vector<2x32xf32>
    %cst_102 = arith.constant 1.000000e+00 : f32
    %439 = vector.broadcast %cst_102 : f32 to vector<2x32xf32>
    %440 = arith.addf %439, %438 : vector<2x32xf32>
    %441 = arith.divf %439, %440 : vector<2x32xf32>
    %442 = arith.mulf %433, %421 : vector<2x32xf32>
    %443 = arith.mulf %427, %435 : vector<2x32xf32>
    %444 = arith.addf %442, %443 : vector<2x32xf32>
    %445 = math.tanh %444 : vector<2x32xf32>
    %446 = arith.mulf %441, %445 : vector<2x32xf32>
    %c12_103 = arith.constant 12 : index
    %c0_104 = arith.constant 0 : index
    %447 = vector.load %arg15[%c12_103, %c0_104] : memref<16x64xf32, #tpu.memory_space<vmem>>, vector<2x32xf32>
    tpu.vector_store %arg15[%c12_103, %c0_104], %420 {strides = array<i32>} : memref<16x64xf32, #tpu.memory_space<vmem>>, vector<2x32xf32>,
    %c2_105 = arith.constant 2 : index
    %c32_106 = arith.constant 32 : index
    %448 = vector.load %arg15[%c2_105, %c32_106] : memref<16x64xf32, #tpu.memory_space<vmem>>, vector<2x32xf32>
    tpu.vector_store %arg15[%c2_105, %c32_106], %446 {strides = array<i32>} : memref<16x64xf32, #tpu.memory_space<vmem>>, vector<2x32xf32>,
    %449 = tpu.concatenate %420, %446 in 1 : vector<2x32xf32>, vector<2x32xf32> -> vector<2x64xf32>
    %450 = tpu.concatenate %418, %444 in 1 : vector<2x32xf32>, vector<2x32xf32> -> vector<2x64xf32>
    %cst_107 = arith.constant dense<0.000000e+00> : vector<2x256xf32>
    %451 = tpu.matmul %449, %7, %cst_107 {dimension_numbers = #tpu.dot_dimension_numbers<[1], [0], [0], [1], [0, 0, 1, 1], [], []>} : vector<2x64xf32>, vector<64x256xf32>, vector<2x256xf32> -> vector<2x256xf32>
    %c14_108 = arith.constant 14 : index
    %c0_109 = arith.constant 0 : index
    %452 = vector.load %arg14[%c14_108, %c0_109] : memref<16x256xf32, #tpu.memory_space<vmem>>, vector<2x128xf32>
    %453 = vector.extract_strided_slice %451 {offsets = [0, 0], sizes = [2, 128], strides = [1, 1]} : vector<2x256xf32> to vector<2x128xf32>
    %454 = arith.addf %452, %453 : vector<2x128xf32>
    %c0_110 = arith.constant 0 : index
    %c128_111 = arith.constant 128 : index
    %455 = vector.load %arg14[%c0_110, %c128_111] : memref<16x256xf32, #tpu.memory_space<vmem>>, vector<2x128xf32>
    %456 = vector.extract_strided_slice %451 {offsets = [0, 128], sizes = [2, 128], strides = [1, 1]} : vector<2x256xf32> to vector<2x128xf32>
    %457 = arith.addf %455, %456 : vector<2x128xf32>
    %458 = vector.extract_strided_slice %450 {offsets = [0, 0], sizes = [2, 32], strides = [1, 1]} : vector<2x64xf32> to vector<2x32xf32>
    %459 = vector.extract_strided_slice %454 {offsets = [0, 0], sizes = [2, 32], strides = [1, 1]} : vector<2x128xf32> to vector<2x32xf32>
    %460 = arith.negf %459 : vector<2x32xf32>
    %461 = math.exp %460 : vector<2x32xf32>
    %cst_112 = arith.constant 1.000000e+00 : f32
    %462 = vector.broadcast %cst_112 : f32 to vector<2x32xf32>
    %463 = arith.addf %462, %461 : vector<2x32xf32>
    %464 = arith.divf %462, %463 : vector<2x32xf32>
    %465 = vector.extract_strided_slice %454 {offsets = [0, 32], sizes = [2, 32], strides = [1, 1]} : vector<2x128xf32> to vector<2x32xf32>
    %466 = arith.negf %465 : vector<2x32xf32>
    %467 = math.exp %466 : vector<2x32xf32>
    %cst_113 = arith.constant 1.000000e+00 : f32
    %468 = vector.broadcast %cst_113 : f32 to vector<2x32xf32>
    %469 = arith.addf %468, %467 : vector<2x32xf32>
    %470 = arith.divf %468, %469 : vector<2x32xf32>
    %471 = vector.extract_strided_slice %454 {offsets = [0, 64], sizes = [2, 32], strides = [1, 1]} : vector<2x128xf32> to vector<2x32xf32>
    %472 = math.tanh %471 : vector<2x32xf32>
    %473 = vector.extract_strided_slice %454 {offsets = [0, 96], sizes = [2, 32], strides = [1, 1]} : vector<2x128xf32> to vector<2x32xf32>
    %474 = arith.negf %473 : vector<2x32xf32>
    %475 = math.exp %474 : vector<2x32xf32>
    %cst_114 = arith.constant 1.000000e+00 : f32
    %476 = vector.broadcast %cst_114 : f32 to vector<2x32xf32>
    %477 = arith.addf %476, %475 : vector<2x32xf32>
    %478 = arith.divf %476, %477 : vector<2x32xf32>
    %479 = arith.mulf %470, %458 : vector<2x32xf32>
    %480 = arith.mulf %464, %472 : vector<2x32xf32>
    %481 = arith.addf %479, %480 : vector<2x32xf32>
    %482 = math.tanh %481 : vector<2x32xf32>
    %483 = arith.mulf %478, %482 : vector<2x32xf32>
    %484 = vector.extract_strided_slice %450 {offsets = [0, 32], sizes = [2, 32], strides = [1, 1]} : vector<2x64xf32> to vector<2x32xf32>
    %485 = vector.extract_strided_slice %457 {offsets = [0, 0], sizes = [2, 32], strides = [1, 1]} : vector<2x128xf32> to vector<2x32xf32>
    %486 = arith.negf %485 : vector<2x32xf32>
    %487 = math.exp %486 : vector<2x32xf32>
    %cst_115 = arith.constant 1.000000e+00 : f32
    %488 = vector.broadcast %cst_115 : f32 to vector<2x32xf32>
    %489 = arith.addf %488, %487 : vector<2x32xf32>
    %490 = arith.divf %488, %489 : vector<2x32xf32>
    %491 = vector.extract_strided_slice %457 {offsets = [0, 32], sizes = [2, 32], strides = [1, 1]} : vector<2x128xf32> to vector<2x32xf32>
    %492 = arith.negf %491 : vector<2x32xf32>
    %493 = math.exp %492 : vector<2x32xf32>
    %cst_116 = arith.constant 1.000000e+00 : f32
    %494 = vector.broadcast %cst_116 : f32 to vector<2x32xf32>
    %495 = arith.addf %494, %493 : vector<2x32xf32>
    %496 = arith.divf %494, %495 : vector<2x32xf32>
    %497 = vector.extract_strided_slice %457 {offsets = [0, 64], sizes = [2, 32], strides = [1, 1]} : vector<2x128xf32> to vector<2x32xf32>
    %498 = math.tanh %497 : vector<2x32xf32>
    %499 = vector.extract_strided_slice %457 {offsets = [0, 96], sizes = [2, 32], strides = [1, 1]} : vector<2x128xf32> to vector<2x32xf32>
    %500 = arith.negf %499 : vector<2x32xf32>
    %501 = math.exp %500 : vector<2x32xf32>
    %cst_117 = arith.constant 1.000000e+00 : f32
    %502 = vector.broadcast %cst_117 : f32 to vector<2x32xf32>
    %503 = arith.addf %502, %501 : vector<2x32xf32>
    %504 = arith.divf %502, %503 : vector<2x32xf32>
    %505 = arith.mulf %496, %484 : vector<2x32xf32>
    %506 = arith.mulf %490, %498 : vector<2x32xf32>
    %507 = arith.addf %505, %506 : vector<2x32xf32>
    %508 = math.tanh %507 : vector<2x32xf32>
    %509 = arith.mulf %504, %508 : vector<2x32xf32>
    %c14_118 = arith.constant 14 : index
    %c0_119 = arith.constant 0 : index
    %510 = vector.load %arg15[%c14_118, %c0_119] : memref<16x64xf32, #tpu.memory_space<vmem>>, vector<2x32xf32>
    tpu.vector_store %arg15[%c14_118, %c0_119], %483 {strides = array<i32>} : memref<16x64xf32, #tpu.memory_space<vmem>>, vector<2x32xf32>,
    %c0_120 = arith.constant 0 : index
    %c32_121 = arith.constant 32 : index
    %511 = vector.load %arg15[%c0_120, %c32_121] : memref<16x64xf32, #tpu.memory_space<vmem>>, vector<2x32xf32>
    tpu.vector_store %arg15[%c0_120, %c32_121], %509 {strides = array<i32>} : memref<16x64xf32, #tpu.memory_space<vmem>>, vector<2x32xf32>,
    %c0_122 = arith.constant 0 : index
    %c0_123 = arith.constant 0 : index
    %512 = vector.load %arg15[%c0_122, %c0_123] : memref<16x64xf32, #tpu.memory_space<vmem>>, vector<16x64xf32>
    %c0_124 = arith.constant 0 : index
    %c0_125 = arith.constant 0 : index
    %513 = vector.load %arg4[%c0_124, %c0_125] : memref<64x256xf32, #tpu.memory_space<vmem>>, vector<64x256xf32>
    %cst_126 = arith.constant dense<0.000000e+00> : vector<16x256xf32>
    %514 = tpu.matmul %512, %513, %cst_126 {dimension_numbers = #tpu.dot_dimension_numbers<[1], [0], [0], [1], [0, 0, 1, 1], [], []>} : vector<16x64xf32>, vector<64x256xf32>, vector<16x256xf32> -> vector<16x256xf32>
    %c0_127 = arith.constant 0 : index
    %c0_128 = arith.constant 0 : index
    %515 = vector.load %arg6[%c0_127, %c0_128] : memref<1x256xf32, #tpu.memory_space<vmem>>, vector<1x256xf32>
    %516 = vector.broadcast %515 : vector<1x256xf32> to vector<16x256xf32>
    %517 = arith.addf %514, %516 : vector<16x256xf32>
    %c0_129 = arith.constant 0 : index
    %c0_130 = arith.constant 0 : index
    %518 = vector.load %arg14[%c0_129, %c0_130] : memref<16x256xf32, #tpu.memory_space<vmem>>, vector<16x256xf32>
    tpu.vector_store %arg14[%c0_129, %c0_130], %517 {strides = array<i32>} : memref<16x256xf32, #tpu.memory_space<vmem>>, vector<16x256xf32>,
    %c0_131 = arith.constant 0 : index
    %c0_132 = arith.constant 0 : index
    %519 = vector.load %arg5[%c0_131, %c0_132] : memref<64x256xf32, #tpu.memory_space<vmem>>, vector<64x256xf32>
    %cst_133 = arith.constant 0.000000e+00 : f32
    %520 = vector.broadcast %cst_133 : f32 to vector<2x64xf32>
    %cst_134 = arith.constant 0.000000e+00 : f32
    %521 = vector.broadcast %cst_134 : f32 to vector<2x64xf32>
    %cst_135 = arith.constant dense<0.000000e+00> : vector<2x256xf32>
    %522 = tpu.matmul %520, %519, %cst_135 {dimension_numbers = #tpu.dot_dimension_numbers<[1], [0], [0], [1], [0, 0, 1, 1], [], []>} : vector<2x64xf32>, vector<64x256xf32>, vector<2x256xf32> -> vector<2x256xf32>
    %c0_136 = arith.constant 0 : index
    %c0_137 = arith.constant 0 : index
    %523 = vector.load %arg14[%c0_136, %c0_137] : memref<16x256xf32, #tpu.memory_space<vmem>>, vector<2x128xf32>
    %524 = vector.extract_strided_slice %522 {offsets = [0, 0], sizes = [2, 128], strides = [1, 1]} : vector<2x256xf32> to vector<2x128xf32>
    %525 = arith.addf %523, %524 : vector<2x128xf32>
    %c14_138 = arith.constant 14 : index
    %c128_139 = arith.constant 128 : index
    %526 = vector.load %arg14[%c14_138, %c128_139] : memref<16x256xf32, #tpu.memory_space<vmem>>, vector<2x128xf32>
    %527 = vector.extract_strided_slice %522 {offsets = [0, 128], sizes = [2, 128], strides = [1, 1]} : vector<2x256xf32> to vector<2x128xf32>
    %528 = arith.addf %526, %527 : vector<2x128xf32>
    %529 = vector.extract_strided_slice %521 {offsets = [0, 0], sizes = [2, 32], strides = [1, 1]} : vector<2x64xf32> to vector<2x32xf32>
    %530 = vector.extract_strided_slice %525 {offsets = [0, 0], sizes = [2, 32], strides = [1, 1]} : vector<2x128xf32> to vector<2x32xf32>
    %531 = arith.negf %530 : vector<2x32xf32>
    %532 = math.exp %531 : vector<2x32xf32>
    %cst_140 = arith.constant 1.000000e+00 : f32
    %533 = vector.broadcast %cst_140 : f32 to vector<2x32xf32>
    %534 = arith.addf %533, %532 : vector<2x32xf32>
    %535 = arith.divf %533, %534 : vector<2x32xf32>
    %536 = vector.extract_strided_slice %525 {offsets = [0, 32], sizes = [2, 32], strides = [1, 1]} : vector<2x128xf32> to vector<2x32xf32>
    %537 = arith.negf %536 : vector<2x32xf32>
    %538 = math.exp %537 : vector<2x32xf32>
    %cst_141 = arith.constant 1.000000e+00 : f32
    %539 = vector.broadcast %cst_141 : f32 to vector<2x32xf32>
    %540 = arith.addf %539, %538 : vector<2x32xf32>
    %541 = arith.divf %539, %540 : vector<2x32xf32>
    %542 = vector.extract_strided_slice %525 {offsets = [0, 64], sizes = [2, 32], strides = [1, 1]} : vector<2x128xf32> to vector<2x32xf32>
    %543 = math.tanh %542 : vector<2x32xf32>
    %544 = vector.extract_strided_slice %525 {offsets = [0, 96], sizes = [2, 32], strides = [1, 1]} : vector<2x128xf32> to vector<2x32xf32>
    %545 = arith.negf %544 : vector<2x32xf32>
    %546 = math.exp %545 : vector<2x32xf32>
    %cst_142 = arith.constant 1.000000e+00 : f32
    %547 = vector.broadcast %cst_142 : f32 to vector<2x32xf32>
    %548 = arith.addf %547, %546 : vector<2x32xf32>
    %549 = arith.divf %547, %548 : vector<2x32xf32>
    %550 = arith.mulf %541, %529 : vector<2x32xf32>
    %551 = arith.mulf %535, %543 : vector<2x32xf32>
    %552 = arith.addf %550, %551 : vector<2x32xf32>
    %553 = math.tanh %552 : vector<2x32xf32>
    %554 = arith.mulf %549, %553 : vector<2x32xf32>
    %555 = vector.extract_strided_slice %521 {offsets = [0, 32], sizes = [2, 32], strides = [1, 1]} : vector<2x64xf32> to vector<2x32xf32>
    %556 = vector.extract_strided_slice %528 {offsets = [0, 0], sizes = [2, 32], strides = [1, 1]} : vector<2x128xf32> to vector<2x32xf32>
    %557 = arith.negf %556 : vector<2x32xf32>
    %558 = math.exp %557 : vector<2x32xf32>
    %cst_143 = arith.constant 1.000000e+00 : f32
    %559 = vector.broadcast %cst_143 : f32 to vector<2x32xf32>
    %560 = arith.addf %559, %558 : vector<2x32xf32>
    %561 = arith.divf %559, %560 : vector<2x32xf32>
    %562 = vector.extract_strided_slice %528 {offsets = [0, 32], sizes = [2, 32], strides = [1, 1]} : vector<2x128xf32> to vector<2x32xf32>
    %563 = arith.negf %562 : vector<2x32xf32>
    %564 = math.exp %563 : vector<2x32xf32>
    %cst_144 = arith.constant 1.000000e+00 : f32
    %565 = vector.broadcast %cst_144 : f32 to vector<2x32xf32>
    %566 = arith.addf %565, %564 : vector<2x32xf32>
    %567 = arith.divf %565, %566 : vector<2x32xf32>
    %568 = vector.extract_strided_slice %528 {offsets = [0, 64], sizes = [2, 32], strides = [1, 1]} : vector<2x128xf32> to vector<2x32xf32>
    %569 = math.tanh %568 : vector<2x32xf32>
    %570 = vector.extract_strided_slice %528 {offsets = [0, 96], sizes = [2, 32], strides = [1, 1]} : vector<2x128xf32> to vector<2x32xf32>
    %571 = arith.negf %570 : vector<2x32xf32>
    %572 = math.exp %571 : vector<2x32xf32>
    %cst_145 = arith.constant 1.000000e+00 : f32
    %573 = vector.broadcast %cst_145 : f32 to vector<2x32xf32>
    %574 = arith.addf %573, %572 : vector<2x32xf32>
    %575 = arith.divf %573, %574 : vector<2x32xf32>
    %576 = arith.mulf %567, %555 : vector<2x32xf32>
    %577 = arith.mulf %561, %569 : vector<2x32xf32>
    %578 = arith.addf %576, %577 : vector<2x32xf32>
    %579 = math.tanh %578 : vector<2x32xf32>
    %580 = arith.mulf %575, %579 : vector<2x32xf32>
    %c0_146 = arith.constant 0 : index
    %c0_147 = arith.constant 0 : index
    %581 = vector.load %arg15[%c0_146, %c0_147] : memref<16x64xf32, #tpu.memory_space<vmem>>, vector<2x32xf32>
    tpu.vector_store %arg15[%c0_146, %c0_147], %554 {strides = array<i32>} : memref<16x64xf32, #tpu.memory_space<vmem>>, vector<2x32xf32>,
    %c14_148 = arith.constant 14 : index
    %c32_149 = arith.constant 32 : index
    %582 = vector.load %arg15[%c14_148, %c32_149] : memref<16x64xf32, #tpu.memory_space<vmem>>, vector<2x32xf32>
    tpu.vector_store %arg15[%c14_148, %c32_149], %580 {strides = array<i32>} : memref<16x64xf32, #tpu.memory_space<vmem>>, vector<2x32xf32>,
    %583 = tpu.concatenate %554, %580 in 1 : vector<2x32xf32>, vector<2x32xf32> -> vector<2x64xf32>
    %584 = tpu.concatenate %552, %578 in 1 : vector<2x32xf32>, vector<2x32xf32> -> vector<2x64xf32>
    %cst_150 = arith.constant dense<0.000000e+00> : vector<2x256xf32>
    %585 = tpu.matmul %583, %519, %cst_150 {dimension_numbers = #tpu.dot_dimension_numbers<[1], [0], [0], [1], [0, 0, 1, 1], [], []>} : vector<2x64xf32>, vector<64x256xf32>, vector<2x256xf32> -> vector<2x256xf32>
    %c2_151 = arith.constant 2 : index
    %c0_152 = arith.constant 0 : index
    %586 = vector.load %arg14[%c2_151, %c0_152] : memref<16x256xf32, #tpu.memory_space<vmem>>, vector<2x128xf32>
    %587 = vector.extract_strided_slice %585 {offsets = [0, 0], sizes = [2, 128], strides = [1, 1]} : vector<2x256xf32> to vector<2x128xf32>
    %588 = arith.addf %586, %587 : vector<2x128xf32>
    %c12_153 = arith.constant 12 : index
    %c128_154 = arith.constant 128 : index
    %589 = vector.load %arg14[%c12_153, %c128_154] : memref<16x256xf32, #tpu.memory_space<vmem>>, vector<2x128xf32>
    %590 = vector.extract_strided_slice %585 {offsets = [0, 128], sizes = [2, 128], strides = [1, 1]} : vector<2x256xf32> to vector<2x128xf32>
    %591 = arith.addf %589, %590 : vector<2x128xf32>
    %592 = vector.extract_strided_slice %584 {offsets = [0, 0], sizes = [2, 32], strides = [1, 1]} : vector<2x64xf32> to vector<2x32xf32>
    %593 = vector.extract_strided_slice %588 {offsets = [0, 0], sizes = [2, 32], strides = [1, 1]} : vector<2x128xf32> to vector<2x32xf32>
    %594 = arith.negf %593 : vector<2x32xf32>
    %595 = math.exp %594 : vector<2x32xf32>
    %cst_155 = arith.constant 1.000000e+00 : f32
    %596 = vector.broadcast %cst_155 : f32 to vector<2x32xf32>
    %597 = arith.addf %596, %595 : vector<2x32xf32>
    %598 = arith.divf %596, %597 : vector<2x32xf32>
    %599 = vector.extract_strided_slice %588 {offsets = [0, 32], sizes = [2, 32], strides = [1, 1]} : vector<2x128xf32> to vector<2x32xf32>
    %600 = arith.negf %599 : vector<2x32xf32>
    %601 = math.exp %600 : vector<2x32xf32>
    %cst_156 = arith.constant 1.000000e+00 : f32
    %602 = vector.broadcast %cst_156 : f32 to vector<2x32xf32>
    %603 = arith.addf %602, %601 : vector<2x32xf32>
    %604 = arith.divf %602, %603 : vector<2x32xf32>
    %605 = vector.extract_strided_slice %588 {offsets = [0, 64], sizes = [2, 32], strides = [1, 1]} : vector<2x128xf32> to vector<2x32xf32>
    %606 = math.tanh %605 : vector<2x32xf32>
    %607 = vector.extract_strided_slice %588 {offsets = [0, 96], sizes = [2, 32], strides = [1, 1]} : vector<2x128xf32> to vector<2x32xf32>
    %608 = arith.negf %607 : vector<2x32xf32>
    %609 = math.exp %608 : vector<2x32xf32>
    %cst_157 = arith.constant 1.000000e+00 : f32
    %610 = vector.broadcast %cst_157 : f32 to vector<2x32xf32>
    %611 = arith.addf %610, %609 : vector<2x32xf32>
    %612 = arith.divf %610, %611 : vector<2x32xf32>
    %613 = arith.mulf %604, %592 : vector<2x32xf32>
    %614 = arith.mulf %598, %606 : vector<2x32xf32>
    %615 = arith.addf %613, %614 : vector<2x32xf32>
    %616 = math.tanh %615 : vector<2x32xf32>
    %617 = arith.mulf %612, %616 : vector<2x32xf32>
    %618 = vector.extract_strided_slice %584 {offsets = [0, 32], sizes = [2, 32], strides = [1, 1]} : vector<2x64xf32> to vector<2x32xf32>
    %619 = vector.extract_strided_slice %591 {offsets = [0, 0], sizes = [2, 32], strides = [1, 1]} : vector<2x128xf32> to vector<2x32xf32>
    %620 = arith.negf %619 : vector<2x32xf32>
    %621 = math.exp %620 : vector<2x32xf32>
    %cst_158 = arith.constant 1.000000e+00 : f32
    %622 = vector.broadcast %cst_158 : f32 to vector<2x32xf32>
    %623 = arith.addf %622, %621 : vector<2x32xf32>
    %624 = arith.divf %622, %623 : vector<2x32xf32>
    %625 = vector.extract_strided_slice %591 {offsets = [0, 32], sizes = [2, 32], strides = [1, 1]} : vector<2x128xf32> to vector<2x32xf32>
    %626 = arith.negf %625 : vector<2x32xf32>
    %627 = math.exp %626 : vector<2x32xf32>
    %cst_159 = arith.constant 1.000000e+00 : f32
    %628 = vector.broadcast %cst_159 : f32 to vector<2x32xf32>
    %629 = arith.addf %628, %627 : vector<2x32xf32>
    %630 = arith.divf %628, %629 : vector<2x32xf32>
    %631 = vector.extract_strided_slice %591 {offsets = [0, 64], sizes = [2, 32], strides = [1, 1]} : vector<2x128xf32> to vector<2x32xf32>
    %632 = math.tanh %631 : vector<2x32xf32>
    %633 = vector.extract_strided_slice %591 {offsets = [0, 96], sizes = [2, 32], strides = [1, 1]} : vector<2x128xf32> to vector<2x32xf32>
    %634 = arith.negf %633 : vector<2x32xf32>
    %635 = math.exp %634 : vector<2x32xf32>
    %cst_160 = arith.constant 1.000000e+00 : f32
    %636 = vector.broadcast %cst_160 : f32 to vector<2x32xf32>
    %637 = arith.addf %636, %635 : vector<2x32xf32>
    %638 = arith.divf %636, %637 : vector<2x32xf32>
    %639 = arith.mulf %630, %618 : vector<2x32xf32>
    %640 = arith.mulf %624, %632 : vector<2x32xf32>
    %641 = arith.addf %639, %640 : vector<2x32xf32>
    %642 = math.tanh %641 : vector<2x32xf32>
    %643 = arith.mulf %638, %642 : vector<2x32xf32>
    %c2_161 = arith.constant 2 : index
    %c0_162 = arith.constant 0 : index
    %644 = vector.load %arg15[%c2_161, %c0_162] : memref<16x64xf32, #tpu.memory_space<vmem>>, vector<2x32xf32>
    tpu.vector_store %arg15[%c2_161, %c0_162], %617 {strides = array<i32>} : memref<16x64xf32, #tpu.memory_space<vmem>>, vector<2x32xf32>,
    %c12_163 = arith.constant 12 : index
    %c32_164 = arith.constant 32 : index
    %645 = vector.load %arg15[%c12_163, %c32_164] : memref<16x64xf32, #tpu.memory_space<vmem>>, vector<2x32xf32>
    tpu.vector_store %arg15[%c12_163, %c32_164], %643 {strides = array<i32>} : memref<16x64xf32, #tpu.memory_space<vmem>>, vector<2x32xf32>,
    %646 = tpu.concatenate %617, %643 in 1 : vector<2x32xf32>, vector<2x32xf32> -> vector<2x64xf32>
    %647 = tpu.concatenate %615, %641 in 1 : vector<2x32xf32>, vector<2x32xf32> -> vector<2x64xf32>
    %cst_165 = arith.constant dense<0.000000e+00> : vector<2x256xf32>
    %648 = tpu.matmul %646, %519, %cst_165 {dimension_numbers = #tpu.dot_dimension_numbers<[1], [0], [0], [1], [0, 0, 1, 1], [], []>} : vector<2x64xf32>, vector<64x256xf32>, vector<2x256xf32> -> vector<2x256xf32>
    %c4_166 = arith.constant 4 : index
    %c0_167 = arith.constant 0 : index
    %649 = vector.load %arg14[%c4_166, %c0_167] : memref<16x256xf32, #tpu.memory_space<vmem>>, vector<2x128xf32>
    %650 = vector.extract_strided_slice %648 {offsets = [0, 0], sizes = [2, 128], strides = [1, 1]} : vector<2x256xf32> to vector<2x128xf32>
    %651 = arith.addf %649, %650 : vector<2x128xf32>
    %c10_168 = arith.constant 10 : index
    %c128_169 = arith.constant 128 : index
    %652 = vector.load %arg14[%c10_168, %c128_169] : memref<16x256xf32, #tpu.memory_space<vmem>>, vector<2x128xf32>
    %653 = vector.extract_strided_slice %648 {offsets = [0, 128], sizes = [2, 128], strides = [1, 1]} : vector<2x256xf32> to vector<2x128xf32>
    %654 = arith.addf %652, %653 : vector<2x128xf32>
    %655 = vector.extract_strided_slice %647 {offsets = [0, 0], sizes = [2, 32], strides = [1, 1]} : vector<2x64xf32> to vector<2x32xf32>
    %656 = vector.extract_strided_slice %651 {offsets = [0, 0], sizes = [2, 32], strides = [1, 1]} : vector<2x128xf32> to vector<2x32xf32>
    %657 = arith.negf %656 : vector<2x32xf32>
    %658 = math.exp %657 : vector<2x32xf32>
    %cst_170 = arith.constant 1.000000e+00 : f32
    %659 = vector.broadcast %cst_170 : f32 to vector<2x32xf32>
    %660 = arith.addf %659, %658 : vector<2x32xf32>
    %661 = arith.divf %659, %660 : vector<2x32xf32>
    %662 = vector.extract_strided_slice %651 {offsets = [0, 32], sizes = [2, 32], strides = [1, 1]} : vector<2x128xf32> to vector<2x32xf32>
    %663 = arith.negf %662 : vector<2x32xf32>
    %664 = math.exp %663 : vector<2x32xf32>
    %cst_171 = arith.constant 1.000000e+00 : f32
    %665 = vector.broadcast %cst_171 : f32 to vector<2x32xf32>
    %666 = arith.addf %665, %664 : vector<2x32xf32>
    %667 = arith.divf %665, %666 : vector<2x32xf32>
    %668 = vector.extract_strided_slice %651 {offsets = [0, 64], sizes = [2, 32], strides = [1, 1]} : vector<2x128xf32> to vector<2x32xf32>
    %669 = math.tanh %668 : vector<2x32xf32>
    %670 = vector.extract_strided_slice %651 {offsets = [0, 96], sizes = [2, 32], strides = [1, 1]} : vector<2x128xf32> to vector<2x32xf32>
    %671 = arith.negf %670 : vector<2x32xf32>
    %672 = math.exp %671 : vector<2x32xf32>
    %cst_172 = arith.constant 1.000000e+00 : f32
    %673 = vector.broadcast %cst_172 : f32 to vector<2x32xf32>
    %674 = arith.addf %673, %672 : vector<2x32xf32>
    %675 = arith.divf %673, %674 : vector<2x32xf32>
    %676 = arith.mulf %667, %655 : vector<2x32xf32>
    %677 = arith.mulf %661, %669 : vector<2x32xf32>
    %678 = arith.addf %676, %677 : vector<2x32xf32>
    %679 = math.tanh %678 : vector<2x32xf32>
    %680 = arith.mulf %675, %679 : vector<2x32xf32>
    %681 = vector.extract_strided_slice %647 {offsets = [0, 32], sizes = [2, 32], strides = [1, 1]} : vector<2x64xf32> to vector<2x32xf32>
    %682 = vector.extract_strided_slice %654 {offsets = [0, 0], sizes = [2, 32], strides = [1, 1]} : vector<2x128xf32> to vector<2x32xf32>
    %683 = arith.negf %682 : vector<2x32xf32>
    %684 = math.exp %683 : vector<2x32xf32>
    %cst_173 = arith.constant 1.000000e+00 : f32
    %685 = vector.broadcast %cst_173 : f32 to vector<2x32xf32>
    %686 = arith.addf %685, %684 : vector<2x32xf32>
    %687 = arith.divf %685, %686 : vector<2x32xf32>
    %688 = vector.extract_strided_slice %654 {offsets = [0, 32], sizes = [2, 32], strides = [1, 1]} : vector<2x128xf32> to vector<2x32xf32>
    %689 = arith.negf %688 : vector<2x32xf32>
    %690 = math.exp %689 : vector<2x32xf32>
    %cst_174 = arith.constant 1.000000e+00 : f32
    %691 = vector.broadcast %cst_174 : f32 to vector<2x32xf32>
    %692 = arith.addf %691, %690 : vector<2x32xf32>
    %693 = arith.divf %691, %692 : vector<2x32xf32>
    %694 = vector.extract_strided_slice %654 {offsets = [0, 64], sizes = [2, 32], strides = [1, 1]} : vector<2x128xf32> to vector<2x32xf32>
    %695 = math.tanh %694 : vector<2x32xf32>
    %696 = vector.extract_strided_slice %654 {offsets = [0, 96], sizes = [2, 32], strides = [1, 1]} : vector<2x128xf32> to vector<2x32xf32>
    %697 = arith.negf %696 : vector<2x32xf32>
    %698 = math.exp %697 : vector<2x32xf32>
    %cst_175 = arith.constant 1.000000e+00 : f32
    %699 = vector.broadcast %cst_175 : f32 to vector<2x32xf32>
    %700 = arith.addf %699, %698 : vector<2x32xf32>
    %701 = arith.divf %699, %700 : vector<2x32xf32>
    %702 = arith.mulf %693, %681 : vector<2x32xf32>
    %703 = arith.mulf %687, %695 : vector<2x32xf32>
    %704 = arith.addf %702, %703 : vector<2x32xf32>
    %705 = math.tanh %704 : vector<2x32xf32>
    %706 = arith.mulf %701, %705 : vector<2x32xf32>
    %c4_176 = arith.constant 4 : index
    %c0_177 = arith.constant 0 : index
    %707 = vector.load %arg15[%c4_176, %c0_177] : memref<16x64xf32, #tpu.memory_space<vmem>>, vector<2x32xf32>
    tpu.vector_store %arg15[%c4_176, %c0_177], %680 {strides = array<i32>} : memref<16x64xf32, #tpu.memory_space<vmem>>, vector<2x32xf32>,
    %c10_178 = arith.constant 10 : index
    %c32_179 = arith.constant 32 : index
    %708 = vector.load %arg15[%c10_178, %c32_179] : memref<16x64xf32, #tpu.memory_space<vmem>>, vector<2x32xf32>
    tpu.vector_store %arg15[%c10_178, %c32_179], %706 {strides = array<i32>} : memref<16x64xf32, #tpu.memory_space<vmem>>, vector<2x32xf32>,
    %709 = tpu.concatenate %680, %706 in 1 : vector<2x32xf32>, vector<2x32xf32> -> vector<2x64xf32>
    %710 = tpu.concatenate %678, %704 in 1 : vector<2x32xf32>, vector<2x32xf32> -> vector<2x64xf32>
    %cst_180 = arith.constant dense<0.000000e+00> : vector<2x256xf32>
    %711 = tpu.matmul %709, %519, %cst_180 {dimension_numbers = #tpu.dot_dimension_numbers<[1], [0], [0], [1], [0, 0, 1, 1], [], []>} : vector<2x64xf32>, vector<64x256xf32>, vector<2x256xf32> -> vector<2x256xf32>
    %c6_181 = arith.constant 6 : index
    %c0_182 = arith.constant 0 : index
    %712 = vector.load %arg14[%c6_181, %c0_182] : memref<16x256xf32, #tpu.memory_space<vmem>>, vector<2x128xf32>
    %713 = vector.extract_strided_slice %711 {offsets = [0, 0], sizes = [2, 128], strides = [1, 1]} : vector<2x256xf32> to vector<2x128xf32>
    %714 = arith.addf %712, %713 : vector<2x128xf32>
    %c8_183 = arith.constant 8 : index
    %c128_184 = arith.constant 128 : index
    %715 = vector.load %arg14[%c8_183, %c128_184] : memref<16x256xf32, #tpu.memory_space<vmem>>, vector<2x128xf32>
    %716 = vector.extract_strided_slice %711 {offsets = [0, 128], sizes = [2, 128], strides = [1, 1]} : vector<2x256xf32> to vector<2x128xf32>
    %717 = arith.addf %715, %716 : vector<2x128xf32>
    %718 = vector.extract_strided_slice %710 {offsets = [0, 0], sizes = [2, 32], strides = [1, 1]} : vector<2x64xf32> to vector<2x32xf32>
    %719 = vector.extract_strided_slice %714 {offsets = [0, 0], sizes = [2, 32], strides = [1, 1]} : vector<2x128xf32> to vector<2x32xf32>
    %720 = arith.negf %719 : vector<2x32xf32>
    %721 = math.exp %720 : vector<2x32xf32>
    %cst_185 = arith.constant 1.000000e+00 : f32
    %722 = vector.broadcast %cst_185 : f32 to vector<2x32xf32>
    %723 = arith.addf %722, %721 : vector<2x32xf32>
    %724 = arith.divf %722, %723 : vector<2x32xf32>
    %725 = vector.extract_strided_slice %714 {offsets = [0, 32], sizes = [2, 32], strides = [1, 1]} : vector<2x128xf32> to vector<2x32xf32>
    %726 = arith.negf %725 : vector<2x32xf32>
    %727 = math.exp %726 : vector<2x32xf32>
    %cst_186 = arith.constant 1.000000e+00 : f32
    %728 = vector.broadcast %cst_186 : f32 to vector<2x32xf32>
    %729 = arith.addf %728, %727 : vector<2x32xf32>
    %730 = arith.divf %728, %729 : vector<2x32xf32>
    %731 = vector.extract_strided_slice %714 {offsets = [0, 64], sizes = [2, 32], strides = [1, 1]} : vector<2x128xf32> to vector<2x32xf32>
    %732 = math.tanh %731 : vector<2x32xf32>
    %733 = vector.extract_strided_slice %714 {offsets = [0, 96], sizes = [2, 32], strides = [1, 1]} : vector<2x128xf32> to vector<2x32xf32>
    %734 = arith.negf %733 : vector<2x32xf32>
    %735 = math.exp %734 : vector<2x32xf32>
    %cst_187 = arith.constant 1.000000e+00 : f32
    %736 = vector.broadcast %cst_187 : f32 to vector<2x32xf32>
    %737 = arith.addf %736, %735 : vector<2x32xf32>
    %738 = arith.divf %736, %737 : vector<2x32xf32>
    %739 = arith.mulf %730, %718 : vector<2x32xf32>
    %740 = arith.mulf %724, %732 : vector<2x32xf32>
    %741 = arith.addf %739, %740 : vector<2x32xf32>
    %742 = math.tanh %741 : vector<2x32xf32>
    %743 = arith.mulf %738, %742 : vector<2x32xf32>
    %744 = vector.extract_strided_slice %710 {offsets = [0, 32], sizes = [2, 32], strides = [1, 1]} : vector<2x64xf32> to vector<2x32xf32>
    %745 = vector.extract_strided_slice %717 {offsets = [0, 0], sizes = [2, 32], strides = [1, 1]} : vector<2x128xf32> to vector<2x32xf32>
    %746 = arith.negf %745 : vector<2x32xf32>
    %747 = math.exp %746 : vector<2x32xf32>
    %cst_188 = arith.constant 1.000000e+00 : f32
    %748 = vector.broadcast %cst_188 : f32 to vector<2x32xf32>
    %749 = arith.addf %748, %747 : vector<2x32xf32>
    %750 = arith.divf %748, %749 : vector<2x32xf32>
    %751 = vector.extract_strided_slice %717 {offsets = [0, 32], sizes = [2, 32], strides = [1, 1]} : vector<2x128xf32> to vector<2x32xf32>
    %752 = arith.negf %751 : vector<2x32xf32>
    %753 = math.exp %752 : vector<2x32xf32>
    %cst_189 = arith.constant 1.000000e+00 : f32
    %754 = vector.broadcast %cst_189 : f32 to vector<2x32xf32>
    %755 = arith.addf %754, %753 : vector<2x32xf32>
    %756 = arith.divf %754, %755 : vector<2x32xf32>
    %757 = vector.extract_strided_slice %717 {offsets = [0, 64], sizes = [2, 32], strides = [1, 1]} : vector<2x128xf32> to vector<2x32xf32>
    %758 = math.tanh %757 : vector<2x32xf32>
    %759 = vector.extract_strided_slice %717 {offsets = [0, 96], sizes = [2, 32], strides = [1, 1]} : vector<2x128xf32> to vector<2x32xf32>
    %760 = arith.negf %759 : vector<2x32xf32>
    %761 = math.exp %760 : vector<2x32xf32>
    %cst_190 = arith.constant 1.000000e+00 : f32
    %762 = vector.broadcast %cst_190 : f32 to vector<2x32xf32>
    %763 = arith.addf %762, %761 : vector<2x32xf32>
    %764 = arith.divf %762, %763 : vector<2x32xf32>
    %765 = arith.mulf %756, %744 : vector<2x32xf32>
    %766 = arith.mulf %750, %758 : vector<2x32xf32>
    %767 = arith.addf %765, %766 : vector<2x32xf32>
    %768 = math.tanh %767 : vector<2x32xf32>
    %769 = arith.mulf %764, %768 : vector<2x32xf32>
    %c6_191 = arith.constant 6 : index
    %c0_192 = arith.constant 0 : index
    %770 = vector.load %arg15[%c6_191, %c0_192] : memref<16x64xf32, #tpu.memory_space<vmem>>, vector<2x32xf32>
    tpu.vector_store %arg15[%c6_191, %c0_192], %743 {strides = array<i32>} : memref<16x64xf32, #tpu.memory_space<vmem>>, vector<2x32xf32>,
    %c8_193 = arith.constant 8 : index
    %c32_194 = arith.constant 32 : index
    %771 = vector.load %arg15[%c8_193, %c32_194] : memref<16x64xf32, #tpu.memory_space<vmem>>, vector<2x32xf32>
    tpu.vector_store %arg15[%c8_193, %c32_194], %769 {strides = array<i32>} : memref<16x64xf32, #tpu.memory_space<vmem>>, vector<2x32xf32>,
    %772 = tpu.concatenate %743, %769 in 1 : vector<2x32xf32>, vector<2x32xf32> -> vector<2x64xf32>
    %773 = tpu.concatenate %741, %767 in 1 : vector<2x32xf32>, vector<2x32xf32> -> vector<2x64xf32>
    %cst_195 = arith.constant dense<0.000000e+00> : vector<2x256xf32>
    %774 = tpu.matmul %772, %519, %cst_195 {dimension_numbers = #tpu.dot_dimension_numbers<[1], [0], [0], [1], [0, 0, 1, 1], [], []>} : vector<2x64xf32>, vector<64x256xf32>, vector<2x256xf32> -> vector<2x256xf32>
    %c8_196 = arith.constant 8 : index
    %c0_197 = arith.constant 0 : index
    %775 = vector.load %arg14[%c8_196, %c0_197] : memref<16x256xf32, #tpu.memory_space<vmem>>, vector<2x128xf32>
    %776 = vector.extract_strided_slice %774 {offsets = [0, 0], sizes = [2, 128], strides = [1, 1]} : vector<2x256xf32> to vector<2x128xf32>
    %777 = arith.addf %775, %776 : vector<2x128xf32>
    %c6_198 = arith.constant 6 : index
    %c128_199 = arith.constant 128 : index
    %778 = vector.load %arg14[%c6_198, %c128_199] : memref<16x256xf32, #tpu.memory_space<vmem>>, vector<2x128xf32>
    %779 = vector.extract_strided_slice %774 {offsets = [0, 128], sizes = [2, 128], strides = [1, 1]} : vector<2x256xf32> to vector<2x128xf32>
    %780 = arith.addf %778, %779 : vector<2x128xf32>
    %781 = vector.extract_strided_slice %773 {offsets = [0, 0], sizes = [2, 32], strides = [1, 1]} : vector<2x64xf32> to vector<2x32xf32>
    %782 = vector.extract_strided_slice %777 {offsets = [0, 0], sizes = [2, 32], strides = [1, 1]} : vector<2x128xf32> to vector<2x32xf32>
    %783 = arith.negf %782 : vector<2x32xf32>
    %784 = math.exp %783 : vector<2x32xf32>
    %cst_200 = arith.constant 1.000000e+00 : f32
    %785 = vector.broadcast %cst_200 : f32 to vector<2x32xf32>
    %786 = arith.addf %785, %784 : vector<2x32xf32>
    %787 = arith.divf %785, %786 : vector<2x32xf32>
    %788 = vector.extract_strided_slice %777 {offsets = [0, 32], sizes = [2, 32], strides = [1, 1]} : vector<2x128xf32> to vector<2x32xf32>
    %789 = arith.negf %788 : vector<2x32xf32>
    %790 = math.exp %789 : vector<2x32xf32>
    %cst_201 = arith.constant 1.000000e+00 : f32
    %791 = vector.broadcast %cst_201 : f32 to vector<2x32xf32>
    %792 = arith.addf %791, %790 : vector<2x32xf32>
    %793 = arith.divf %791, %792 : vector<2x32xf32>
    %794 = vector.extract_strided_slice %777 {offsets = [0, 64], sizes = [2, 32], strides = [1, 1]} : vector<2x128xf32> to vector<2x32xf32>
    %795 = math.tanh %794 : vector<2x32xf32>
    %796 = vector.extract_strided_slice %777 {offsets = [0, 96], sizes = [2, 32], strides = [1, 1]} : vector<2x128xf32> to vector<2x32xf32>
    %797 = arith.negf %796 : vector<2x32xf32>
    %798 = math.exp %797 : vector<2x32xf32>
    %cst_202 = arith.constant 1.000000e+00 : f32
    %799 = vector.broadcast %cst_202 : f32 to vector<2x32xf32>
    %800 = arith.addf %799, %798 : vector<2x32xf32>
    %801 = arith.divf %799, %800 : vector<2x32xf32>
    %802 = arith.mulf %793, %781 : vector<2x32xf32>
    %803 = arith.mulf %787, %795 : vector<2x32xf32>
    %804 = arith.addf %802, %803 : vector<2x32xf32>
    %805 = math.tanh %804 : vector<2x32xf32>
    %806 = arith.mulf %801, %805 : vector<2x32xf32>
    %807 = vector.extract_strided_slice %773 {offsets = [0, 32], sizes = [2, 32], strides = [1, 1]} : vector<2x64xf32> to vector<2x32xf32>
    %808 = vector.extract_strided_slice %780 {offsets = [0, 0], sizes = [2, 32], strides = [1, 1]} : vector<2x128xf32> to vector<2x32xf32>
    %809 = arith.negf %808 : vector<2x32xf32>
    %810 = math.exp %809 : vector<2x32xf32>
    %cst_203 = arith.constant 1.000000e+00 : f32
    %811 = vector.broadcast %cst_203 : f32 to vector<2x32xf32>
    %812 = arith.addf %811, %810 : vector<2x32xf32>
    %813 = arith.divf %811, %812 : vector<2x32xf32>
    %814 = vector.extract_strided_slice %780 {offsets = [0, 32], sizes = [2, 32], strides = [1, 1]} : vector<2x128xf32> to vector<2x32xf32>
    %815 = arith.negf %814 : vector<2x32xf32>
    %816 = math.exp %815 : vector<2x32xf32>
    %cst_204 = arith.constant 1.000000e+00 : f32
    %817 = vector.broadcast %cst_204 : f32 to vector<2x32xf32>
    %818 = arith.addf %817, %816 : vector<2x32xf32>
    %819 = arith.divf %817, %818 : vector<2x32xf32>
    %820 = vector.extract_strided_slice %780 {offsets = [0, 64], sizes = [2, 32], strides = [1, 1]} : vector<2x128xf32> to vector<2x32xf32>
    %821 = math.tanh %820 : vector<2x32xf32>
    %822 = vector.extract_strided_slice %780 {offsets = [0, 96], sizes = [2, 32], strides = [1, 1]} : vector<2x128xf32> to vector<2x32xf32>
    %823 = arith.negf %822 : vector<2x32xf32>
    %824 = math.exp %823 : vector<2x32xf32>
    %cst_205 = arith.constant 1.000000e+00 : f32
    %825 = vector.broadcast %cst_205 : f32 to vector<2x32xf32>
    %826 = arith.addf %825, %824 : vector<2x32xf32>
    %827 = arith.divf %825, %826 : vector<2x32xf32>
    %828 = arith.mulf %819, %807 : vector<2x32xf32>
    %829 = arith.mulf %813, %821 : vector<2x32xf32>
    %830 = arith.addf %828, %829 : vector<2x32xf32>
    %831 = math.tanh %830 : vector<2x32xf32>
    %832 = arith.mulf %827, %831 : vector<2x32xf32>
    %c8_206 = arith.constant 8 : index
    %c0_207 = arith.constant 0 : index
    %833 = vector.load %arg15[%c8_206, %c0_207] : memref<16x64xf32, #tpu.memory_space<vmem>>, vector<2x32xf32>
    tpu.vector_store %arg15[%c8_206, %c0_207], %806 {strides = array<i32>} : memref<16x64xf32, #tpu.memory_space<vmem>>, vector<2x32xf32>,
    %c6_208 = arith.constant 6 : index
    %c32_209 = arith.constant 32 : index
    %834 = vector.load %arg15[%c6_208, %c32_209] : memref<16x64xf32, #tpu.memory_space<vmem>>, vector<2x32xf32>
    tpu.vector_store %arg15[%c6_208, %c32_209], %832 {strides = array<i32>} : memref<16x64xf32, #tpu.memory_space<vmem>>, vector<2x32xf32>,
    %835 = tpu.concatenate %806, %832 in 1 : vector<2x32xf32>, vector<2x32xf32> -> vector<2x64xf32>
    %836 = tpu.concatenate %804, %830 in 1 : vector<2x32xf32>, vector<2x32xf32> -> vector<2x64xf32>
    %cst_210 = arith.constant dense<0.000000e+00> : vector<2x256xf32>
    %837 = tpu.matmul %835, %519, %cst_210 {dimension_numbers = #tpu.dot_dimension_numbers<[1], [0], [0], [1], [0, 0, 1, 1], [], []>} : vector<2x64xf32>, vector<64x256xf32>, vector<2x256xf32> -> vector<2x256xf32>
    %c10_211 = arith.constant 10 : index
    %c0_212 = arith.constant 0 : index
    %838 = vector.load %arg14[%c10_211, %c0_212] : memref<16x256xf32, #tpu.memory_space<vmem>>, vector<2x128xf32>
    %839 = vector.extract_strided_slice %837 {offsets = [0, 0], sizes = [2, 128], strides = [1, 1]} : vector<2x256xf32> to vector<2x128xf32>
    %840 = arith.addf %838, %839 : vector<2x128xf32>
    %c4_213 = arith.constant 4 : index
    %c128_214 = arith.constant 128 : index
    %841 = vector.load %arg14[%c4_213, %c128_214] : memref<16x256xf32, #tpu.memory_space<vmem>>, vector<2x128xf32>
    %842 = vector.extract_strided_slice %837 {offsets = [0, 128], sizes = [2, 128], strides = [1, 1]} : vector<2x256xf32> to vector<2x128xf32>
    %843 = arith.addf %841, %842 : vector<2x128xf32>
    %844 = vector.extract_strided_slice %836 {offsets = [0, 0], sizes = [2, 32], strides = [1, 1]} : vector<2x64xf32> to vector<2x32xf32>
    %845 = vector.extract_strided_slice %840 {offsets = [0, 0], sizes = [2, 32], strides = [1, 1]} : vector<2x128xf32> to vector<2x32xf32>
    %846 = arith.negf %845 : vector<2x32xf32>
    %847 = math.exp %846 : vector<2x32xf32>
    %cst_215 = arith.constant 1.000000e+00 : f32
    %848 = vector.broadcast %cst_215 : f32 to vector<2x32xf32>
    %849 = arith.addf %848, %847 : vector<2x32xf32>
    %850 = arith.divf %848, %849 : vector<2x32xf32>
    %851 = vector.extract_strided_slice %840 {offsets = [0, 32], sizes = [2, 32], strides = [1, 1]} : vector<2x128xf32> to vector<2x32xf32>
    %852 = arith.negf %851 : vector<2x32xf32>
    %853 = math.exp %852 : vector<2x32xf32>
    %cst_216 = arith.constant 1.000000e+00 : f32
    %854 = vector.broadcast %cst_216 : f32 to vector<2x32xf32>
    %855 = arith.addf %854, %853 : vector<2x32xf32>
    %856 = arith.divf %854, %855 : vector<2x32xf32>
    %857 = vector.extract_strided_slice %840 {offsets = [0, 64], sizes = [2, 32], strides = [1, 1]} : vector<2x128xf32> to vector<2x32xf32>
    %858 = math.tanh %857 : vector<2x32xf32>
    %859 = vector.extract_strided_slice %840 {offsets = [0, 96], sizes = [2, 32], strides = [1, 1]} : vector<2x128xf32> to vector<2x32xf32>
    %860 = arith.negf %859 : vector<2x32xf32>
    %861 = math.exp %860 : vector<2x32xf32>
    %cst_217 = arith.constant 1.000000e+00 : f32
    %862 = vector.broadcast %cst_217 : f32 to vector<2x32xf32>
    %863 = arith.addf %862, %861 : vector<2x32xf32>
    %864 = arith.divf %862, %863 : vector<2x32xf32>
    %865 = arith.mulf %856, %844 : vector<2x32xf32>
    %866 = arith.mulf %850, %858 : vector<2x32xf32>
    %867 = arith.addf %865, %866 : vector<2x32xf32>
    %868 = math.tanh %867 : vector<2x32xf32>
    %869 = arith.mulf %864, %868 : vector<2x32xf32>
    %870 = vector.extract_strided_slice %836 {offsets = [0, 32], sizes = [2, 32], strides = [1, 1]} : vector<2x64xf32> to vector<2x32xf32>
    %871 = vector.extract_strided_slice %843 {offsets = [0, 0], sizes = [2, 32], strides = [1, 1]} : vector<2x128xf32> to vector<2x32xf32>
    %872 = arith.negf %871 : vector<2x32xf32>
    %873 = math.exp %872 : vector<2x32xf32>
    %cst_218 = arith.constant 1.000000e+00 : f32
    %874 = vector.broadcast %cst_218 : f32 to vector<2x32xf32>
    %875 = arith.addf %874, %873 : vector<2x32xf32>
    %876 = arith.divf %874, %875 : vector<2x32xf32>
    %877 = vector.extract_strided_slice %843 {offsets = [0, 32], sizes = [2, 32], strides = [1, 1]} : vector<2x128xf32> to vector<2x32xf32>
    %878 = arith.negf %877 : vector<2x32xf32>
    %879 = math.exp %878 : vector<2x32xf32>
    %cst_219 = arith.constant 1.000000e+00 : f32
    %880 = vector.broadcast %cst_219 : f32 to vector<2x32xf32>
    %881 = arith.addf %880, %879 : vector<2x32xf32>
    %882 = arith.divf %880, %881 : vector<2x32xf32>
    %883 = vector.extract_strided_slice %843 {offsets = [0, 64], sizes = [2, 32], strides = [1, 1]} : vector<2x128xf32> to vector<2x32xf32>
    %884 = math.tanh %883 : vector<2x32xf32>
    %885 = vector.extract_strided_slice %843 {offsets = [0, 96], sizes = [2, 32], strides = [1, 1]} : vector<2x128xf32> to vector<2x32xf32>
    %886 = arith.negf %885 : vector<2x32xf32>
    %887 = math.exp %886 : vector<2x32xf32>
    %cst_220 = arith.constant 1.000000e+00 : f32
    %888 = vector.broadcast %cst_220 : f32 to vector<2x32xf32>
    %889 = arith.addf %888, %887 : vector<2x32xf32>
    %890 = arith.divf %888, %889 : vector<2x32xf32>
    %891 = arith.mulf %882, %870 : vector<2x32xf32>
    %892 = arith.mulf %876, %884 : vector<2x32xf32>
    %893 = arith.addf %891, %892 : vector<2x32xf32>
    %894 = math.tanh %893 : vector<2x32xf32>
    %895 = arith.mulf %890, %894 : vector<2x32xf32>
    %c10_221 = arith.constant 10 : index
    %c0_222 = arith.constant 0 : index
    %896 = vector.load %arg15[%c10_221, %c0_222] : memref<16x64xf32, #tpu.memory_space<vmem>>, vector<2x32xf32>
    tpu.vector_store %arg15[%c10_221, %c0_222], %869 {strides = array<i32>} : memref<16x64xf32, #tpu.memory_space<vmem>>, vector<2x32xf32>,
    %c4_223 = arith.constant 4 : index
    %c32_224 = arith.constant 32 : index
    %897 = vector.load %arg15[%c4_223, %c32_224] : memref<16x64xf32, #tpu.memory_space<vmem>>, vector<2x32xf32>
    tpu.vector_store %arg15[%c4_223, %c32_224], %895 {strides = array<i32>} : memref<16x64xf32, #tpu.memory_space<vmem>>, vector<2x32xf32>,
    %898 = tpu.concatenate %869, %895 in 1 : vector<2x32xf32>, vector<2x32xf32> -> vector<2x64xf32>
    %899 = tpu.concatenate %867, %893 in 1 : vector<2x32xf32>, vector<2x32xf32> -> vector<2x64xf32>
    %cst_225 = arith.constant dense<0.000000e+00> : vector<2x256xf32>
    %900 = tpu.matmul %898, %519, %cst_225 {dimension_numbers = #tpu.dot_dimension_numbers<[1], [0], [0], [1], [0, 0, 1, 1], [], []>} : vector<2x64xf32>, vector<64x256xf32>, vector<2x256xf32> -> vector<2x256xf32>
    %c12_226 = arith.constant 12 : index
    %c0_227 = arith.constant 0 : index
    %901 = vector.load %arg14[%c12_226, %c0_227] : memref<16x256xf32, #tpu.memory_space<vmem>>, vector<2x128xf32>
    %902 = vector.extract_strided_slice %900 {offsets = [0, 0], sizes = [2, 128], strides = [1, 1]} : vector<2x256xf32> to vector<2x128xf32>
    %903 = arith.addf %901, %902 : vector<2x128xf32>
    %c2_228 = arith.constant 2 : index
    %c128_229 = arith.constant 128 : index
    %904 = vector.load %arg14[%c2_228, %c128_229] : memref<16x256xf32, #tpu.memory_space<vmem>>, vector<2x128xf32>
    %905 = vector.extract_strided_slice %900 {offsets = [0, 128], sizes = [2, 128], strides = [1, 1]} : vector<2x256xf32> to vector<2x128xf32>
    %906 = arith.addf %904, %905 : vector<2x128xf32>
    %907 = vector.extract_strided_slice %899 {offsets = [0, 0], sizes = [2, 32], strides = [1, 1]} : vector<2x64xf32> to vector<2x32xf32>
    %908 = vector.extract_strided_slice %903 {offsets = [0, 0], sizes = [2, 32], strides = [1, 1]} : vector<2x128xf32> to vector<2x32xf32>
    %909 = arith.negf %908 : vector<2x32xf32>
    %910 = math.exp %909 : vector<2x32xf32>
    %cst_230 = arith.constant 1.000000e+00 : f32
    %911 = vector.broadcast %cst_230 : f32 to vector<2x32xf32>
    %912 = arith.addf %911, %910 : vector<2x32xf32>
    %913 = arith.divf %911, %912 : vector<2x32xf32>
    %914 = vector.extract_strided_slice %903 {offsets = [0, 32], sizes = [2, 32], strides = [1, 1]} : vector<2x128xf32> to vector<2x32xf32>
    %915 = arith.negf %914 : vector<2x32xf32>
    %916 = math.exp %915 : vector<2x32xf32>
    %cst_231 = arith.constant 1.000000e+00 : f32
    %917 = vector.broadcast %cst_231 : f32 to vector<2x32xf32>
    %918 = arith.addf %917, %916 : vector<2x32xf32>
    %919 = arith.divf %917, %918 : vector<2x32xf32>
    %920 = vector.extract_strided_slice %903 {offsets = [0, 64], sizes = [2, 32], strides = [1, 1]} : vector<2x128xf32> to vector<2x32xf32>
    %921 = math.tanh %920 : vector<2x32xf32>
    %922 = vector.extract_strided_slice %903 {offsets = [0, 96], sizes = [2, 32], strides = [1, 1]} : vector<2x128xf32> to vector<2x32xf32>
    %923 = arith.negf %922 : vector<2x32xf32>
    %924 = math.exp %923 : vector<2x32xf32>
    %cst_232 = arith.constant 1.000000e+00 : f32
    %925 = vector.broadcast %cst_232 : f32 to vector<2x32xf32>
    %926 = arith.addf %925, %924 : vector<2x32xf32>
    %927 = arith.divf %925, %926 : vector<2x32xf32>
    %928 = arith.mulf %919, %907 : vector<2x32xf32>
    %929 = arith.mulf %913, %921 : vector<2x32xf32>
    %930 = arith.addf %928, %929 : vector<2x32xf32>
    %931 = math.tanh %930 : vector<2x32xf32>
    %932 = arith.mulf %927, %931 : vector<2x32xf32>
    %933 = vector.extract_strided_slice %899 {offsets = [0, 32], sizes = [2, 32], strides = [1, 1]} : vector<2x64xf32> to vector<2x32xf32>
    %934 = vector.extract_strided_slice %906 {offsets = [0, 0], sizes = [2, 32], strides = [1, 1]} : vector<2x128xf32> to vector<2x32xf32>
    %935 = arith.negf %934 : vector<2x32xf32>
    %936 = math.exp %935 : vector<2x32xf32>
    %cst_233 = arith.constant 1.000000e+00 : f32
    %937 = vector.broadcast %cst_233 : f32 to vector<2x32xf32>
    %938 = arith.addf %937, %936 : vector<2x32xf32>
    %939 = arith.divf %937, %938 : vector<2x32xf32>
    %940 = vector.extract_strided_slice %906 {offsets = [0, 32], sizes = [2, 32], strides = [1, 1]} : vector<2x128xf32> to vector<2x32xf32>
    %941 = arith.negf %940 : vector<2x32xf32>
    %942 = math.exp %941 : vector<2x32xf32>
    %cst_234 = arith.constant 1.000000e+00 : f32
    %943 = vector.broadcast %cst_234 : f32 to vector<2x32xf32>
    %944 = arith.addf %943, %942 : vector<2x32xf32>
    %945 = arith.divf %943, %944 : vector<2x32xf32>
    %946 = vector.extract_strided_slice %906 {offsets = [0, 64], sizes = [2, 32], strides = [1, 1]} : vector<2x128xf32> to vector<2x32xf32>
    %947 = math.tanh %946 : vector<2x32xf32>
    %948 = vector.extract_strided_slice %906 {offsets = [0, 96], sizes = [2, 32], strides = [1, 1]} : vector<2x128xf32> to vector<2x32xf32>
    %949 = arith.negf %948 : vector<2x32xf32>
    %950 = math.exp %949 : vector<2x32xf32>
    %cst_235 = arith.constant 1.000000e+00 : f32
    %951 = vector.broadcast %cst_235 : f32 to vector<2x32xf32>
    %952 = arith.addf %951, %950 : vector<2x32xf32>
    %953 = arith.divf %951, %952 : vector<2x32xf32>
    %954 = arith.mulf %945, %933 : vector<2x32xf32>
    %955 = arith.mulf %939, %947 : vector<2x32xf32>
    %956 = arith.addf %954, %955 : vector<2x32xf32>
    %957 = math.tanh %956 : vector<2x32xf32>
    %958 = arith.mulf %953, %957 : vector<2x32xf32>
    %c12_236 = arith.constant 12 : index
    %c0_237 = arith.constant 0 : index
    %959 = vector.load %arg15[%c12_236, %c0_237] : memref<16x64xf32, #tpu.memory_space<vmem>>, vector<2x32xf32>
    tpu.vector_store %arg15[%c12_236, %c0_237], %932 {strides = array<i32>} : memref<16x64xf32, #tpu.memory_space<vmem>>, vector<2x32xf32>,
    %c2_238 = arith.constant 2 : index
    %c32_239 = arith.constant 32 : index
    %960 = vector.load %arg15[%c2_238, %c32_239] : memref<16x64xf32, #tpu.memory_space<vmem>>, vector<2x32xf32>
    tpu.vector_store %arg15[%c2_238, %c32_239], %958 {strides = array<i32>} : memref<16x64xf32, #tpu.memory_space<vmem>>, vector<2x32xf32>,
    %961 = tpu.concatenate %932, %958 in 1 : vector<2x32xf32>, vector<2x32xf32> -> vector<2x64xf32>
    %962 = tpu.concatenate %930, %956 in 1 : vector<2x32xf32>, vector<2x32xf32> -> vector<2x64xf32>
    %cst_240 = arith.constant dense<0.000000e+00> : vector<2x256xf32>
    %963 = tpu.matmul %961, %519, %cst_240 {dimension_numbers = #tpu.dot_dimension_numbers<[1], [0], [0], [1], [0, 0, 1, 1], [], []>} : vector<2x64xf32>, vector<64x256xf32>, vector<2x256xf32> -> vector<2x256xf32>
    %c14_241 = arith.constant 14 : index
    %c0_242 = arith.constant 0 : index
    %964 = vector.load %arg14[%c14_241, %c0_242] : memref<16x256xf32, #tpu.memory_space<vmem>>, vector<2x128xf32>
    %965 = vector.extract_strided_slice %963 {offsets = [0, 0], sizes = [2, 128], strides = [1, 1]} : vector<2x256xf32> to vector<2x128xf32>
    %966 = arith.addf %964, %965 : vector<2x128xf32>
    %c0_243 = arith.constant 0 : index
    %c128_244 = arith.constant 128 : index
    %967 = vector.load %arg14[%c0_243, %c128_244] : memref<16x256xf32, #tpu.memory_space<vmem>>, vector<2x128xf32>
    %968 = vector.extract_strided_slice %963 {offsets = [0, 128], sizes = [2, 128], strides = [1, 1]} : vector<2x256xf32> to vector<2x128xf32>
    %969 = arith.addf %967, %968 : vector<2x128xf32>
    %970 = vector.extract_strided_slice %962 {offsets = [0, 0], sizes = [2, 32], strides = [1, 1]} : vector<2x64xf32> to vector<2x32xf32>
    %971 = vector.extract_strided_slice %966 {offsets = [0, 0], sizes = [2, 32], strides = [1, 1]} : vector<2x128xf32> to vector<2x32xf32>
    %972 = arith.negf %971 : vector<2x32xf32>
    %973 = math.exp %972 : vector<2x32xf32>
    %cst_245 = arith.constant 1.000000e+00 : f32
    %974 = vector.broadcast %cst_245 : f32 to vector<2x32xf32>
    %975 = arith.addf %974, %973 : vector<2x32xf32>
    %976 = arith.divf %974, %975 : vector<2x32xf32>
    %977 = vector.extract_strided_slice %966 {offsets = [0, 32], sizes = [2, 32], strides = [1, 1]} : vector<2x128xf32> to vector<2x32xf32>
    %978 = arith.negf %977 : vector<2x32xf32>
    %979 = math.exp %978 : vector<2x32xf32>
    %cst_246 = arith.constant 1.000000e+00 : f32
    %980 = vector.broadcast %cst_246 : f32 to vector<2x32xf32>
    %981 = arith.addf %980, %979 : vector<2x32xf32>
    %982 = arith.divf %980, %981 : vector<2x32xf32>
    %983 = vector.extract_strided_slice %966 {offsets = [0, 64], sizes = [2, 32], strides = [1, 1]} : vector<2x128xf32> to vector<2x32xf32>
    %984 = math.tanh %983 : vector<2x32xf32>
    %985 = vector.extract_strided_slice %966 {offsets = [0, 96], sizes = [2, 32], strides = [1, 1]} : vector<2x128xf32> to vector<2x32xf32>
    %986 = arith.negf %985 : vector<2x32xf32>
    %987 = math.exp %986 : vector<2x32xf32>
    %cst_247 = arith.constant 1.000000e+00 : f32
    %988 = vector.broadcast %cst_247 : f32 to vector<2x32xf32>
    %989 = arith.addf %988, %987 : vector<2x32xf32>
    %990 = arith.divf %988, %989 : vector<2x32xf32>
    %991 = arith.mulf %982, %970 : vector<2x32xf32>
    %992 = arith.mulf %976, %984 : vector<2x32xf32>
    %993 = arith.addf %991, %992 : vector<2x32xf32>
    %994 = math.tanh %993 : vector<2x32xf32>
    %995 = arith.mulf %990, %994 : vector<2x32xf32>
    %996 = vector.extract_strided_slice %962 {offsets = [0, 32], sizes = [2, 32], strides = [1, 1]} : vector<2x64xf32> to vector<2x32xf32>
    %997 = vector.extract_strided_slice %969 {offsets = [0, 0], sizes = [2, 32], strides = [1, 1]} : vector<2x128xf32> to vector<2x32xf32>
    %998 = arith.negf %997 : vector<2x32xf32>
    %999 = math.exp %998 : vector<2x32xf32>
    %cst_248 = arith.constant 1.000000e+00 : f32
    %1000 = vector.broadcast %cst_248 : f32 to vector<2x32xf32>
    %1001 = arith.addf %1000, %999 : vector<2x32xf32>
    %1002 = arith.divf %1000, %1001 : vector<2x32xf32>
    %1003 = vector.extract_strided_slice %969 {offsets = [0, 32], sizes = [2, 32], strides = [1, 1]} : vector<2x128xf32> to vector<2x32xf32>
    %1004 = arith.negf %1003 : vector<2x32xf32>
    %1005 = math.exp %1004 : vector<2x32xf32>
    %cst_249 = arith.constant 1.000000e+00 : f32
    %1006 = vector.broadcast %cst_249 : f32 to vector<2x32xf32>
    %1007 = arith.addf %1006, %1005 : vector<2x32xf32>
    %1008 = arith.divf %1006, %1007 : vector<2x32xf32>
    %1009 = vector.extract_strided_slice %969 {offsets = [0, 64], sizes = [2, 32], strides = [1, 1]} : vector<2x128xf32> to vector<2x32xf32>
    %1010 = math.tanh %1009 : vector<2x32xf32>
    %1011 = vector.extract_strided_slice %969 {offsets = [0, 96], sizes = [2, 32], strides = [1, 1]} : vector<2x128xf32> to vector<2x32xf32>
    %1012 = arith.negf %1011 : vector<2x32xf32>
    %1013 = math.exp %1012 : vector<2x32xf32>
    %cst_250 = arith.constant 1.000000e+00 : f32
    %1014 = vector.broadcast %cst_250 : f32 to vector<2x32xf32>
    %1015 = arith.addf %1014, %1013 : vector<2x32xf32>
    %1016 = arith.divf %1014, %1015 : vector<2x32xf32>
    %1017 = arith.mulf %1008, %996 : vector<2x32xf32>
    %1018 = arith.mulf %1002, %1010 : vector<2x32xf32>
    %1019 = arith.addf %1017, %1018 : vector<2x32xf32>
    %1020 = math.tanh %1019 : vector<2x32xf32>
    %1021 = arith.mulf %1016, %1020 : vector<2x32xf32>
    %c14_251 = arith.constant 14 : index
    %c0_252 = arith.constant 0 : index
    %1022 = vector.load %arg15[%c14_251, %c0_252] : memref<16x64xf32, #tpu.memory_space<vmem>>, vector<2x32xf32>
    tpu.vector_store %arg15[%c14_251, %c0_252], %995 {strides = array<i32>} : memref<16x64xf32, #tpu.memory_space<vmem>>, vector<2x32xf32>,
    %c0_253 = arith.constant 0 : index
    %c32_254 = arith.constant 32 : index
    %1023 = vector.load %arg15[%c0_253, %c32_254] : memref<16x64xf32, #tpu.memory_space<vmem>>, vector<2x32xf32>
    tpu.vector_store %arg15[%c0_253, %c32_254], %1021 {strides = array<i32>} : memref<16x64xf32, #tpu.memory_space<vmem>>, vector<2x32xf32>,
    %c0_255 = arith.constant 0 : index
    %c0_256 = arith.constant 0 : index
    %1024 = vector.load %arg15[%c0_255, %c0_256] : memref<16x64xf32, #tpu.memory_space<vmem>>, vector<16x64xf32>
    %1025 = math.tanh %1024 : vector<16x64xf32>
    %c0_257 = arith.constant 0 : index
    %c0_258 = arith.constant 0 : index
    %1026 = vector.load %arg7[%c0_257, %c0_258] : memref<1x64xf32, #tpu.memory_space<vmem>>, vector<1x64xf32>
    %1027 = vector.broadcast %1026 : vector<1x64xf32> to vector<16x64xf32>
    %1028 = arith.mulf %1025, %1027 : vector<16x64xf32>
    %cst_259 = arith.constant dense<0.000000e+00> : vector<16xf32>
    %1029 = vector.multi_reduction <add>, %1028, %cst_259 [1] : vector<16x64xf32> to vector<16xf32>
    %1030 = vector.shape_cast %1029 : vector<16xf32> to vector<16x1xf32>
    %cst_260 = arith.constant dense<0xFF800000> : vector<1xf32>
    %1031 = vector.multi_reduction <maximumf>, %1030, %cst_260 [0] : vector<16x1xf32> to vector<1xf32>
    %1032 = vector.shape_cast %1031 : vector<1xf32> to vector<1x1xf32>
    %1033 = vector.broadcast %1032 : vector<1x1xf32> to vector<16x1xf32>
    %1034 = arith.subf %1030, %1033 : vector<16x1xf32>
    %1035 = math.exp %1034 : vector<16x1xf32>
    %c0_261 = arith.constant 0 : index
    %c0_262 = arith.constant 0 : index
    %1036 = vector.load %arg8[%c0_261, %c0_262] : memref<2x16xf32, #tpu.memory_space<vmem>>, vector<2x16xf32>
    %1037 = vector.broadcast %1035 : vector<16x1xf32> to vector<16x64xf32>
    %1038 = arith.mulf %1037, %1024 : vector<16x64xf32>
    %cst_263 = arith.constant dense<0.000000e+00> : vector<2x64xf32>
    %1039 = tpu.matmul %1036, %1038, %cst_263 {dimension_numbers = #tpu.dot_dimension_numbers<[1], [0], [0], [1], [0, 0, 1, 1], [], []>} : vector<2x16xf32>, vector<16x64xf32>, vector<2x64xf32> -> vector<2x64xf32>
    %c0_264 = arith.constant 0 : index
    %c0_265 = arith.constant 0 : index
    %1040 = vector.load %arg8[%c0_264, %c0_265] : memref<2x16xf32, #tpu.memory_space<vmem>>, vector<2x16xf32>
    %1041 = vector.shape_cast %1035 : vector<16x1xf32> to vector<16x1xf32>
    %1042 = vector.broadcast %1041 : vector<16x1xf32> to vector<16x64xf32>
    %cst_266 = arith.constant dense<0.000000e+00> : vector<2x64xf32>
    %1043 = tpu.matmul %1040, %1042, %cst_266 {dimension_numbers = #tpu.dot_dimension_numbers<[1], [0], [0], [1], [0, 0, 1, 1], [], []>} : vector<2x16xf32>, vector<16x64xf32>, vector<2x64xf32> -> vector<2x64xf32>
    %1044 = arith.divf %1039, %1043 : vector<2x64xf32>
    %cst_267 = arith.constant 0.000000e+00 : f32
    %1045 = vector.broadcast %cst_267 : f32 to vector<2x64xf32>
    %1046 = arith.maximumf %1044, %1045 : vector<2x64xf32>
    %c0_268 = arith.constant 0 : index
    %c0_269 = arith.constant 0 : index
    %1047 = vector.load %arg9[%c0_268, %c0_269] : memref<64x64xf32, #tpu.memory_space<vmem>>, vector<64x64xf32>
    %cst_270 = arith.constant dense<0.000000e+00> : vector<2x64xf32>
    %1048 = tpu.matmul %1046, %1047, %cst_270 {dimension_numbers = #tpu.dot_dimension_numbers<[1], [0], [0], [1], [0, 0, 1, 1], [], []>} : vector<2x64xf32>, vector<64x64xf32>, vector<2x64xf32> -> vector<2x64xf32>
    %c0_271 = arith.constant 0 : index
    %c0_272 = arith.constant 0 : index
    %1049 = vector.load %arg10[%c0_271, %c0_272] : memref<1x64xf32, #tpu.memory_space<vmem>>, vector<1x64xf32>
    %1050 = vector.broadcast %1049 : vector<1x64xf32> to vector<2x64xf32>
    %1051 = arith.addf %1048, %1050 : vector<2x64xf32>
    %c0_273 = arith.constant 0 : index
    %c0_274 = arith.constant 0 : index
    %1052 = vector.load %arg11[%c0_273, %c0_274] : memref<64x2xf32, #tpu.memory_space<vmem>>, vector<64x2xf32>
    %cst_275 = arith.constant dense<0.000000e+00> : vector<2x2xf32>
    %1053 = tpu.matmul %1051, %1052, %cst_275 {dimension_numbers = #tpu.dot_dimension_numbers<[1], [0], [0], [1], [0, 0, 1, 1], [], []>} : vector<2x64xf32>, vector<64x2xf32>, vector<2x2xf32> -> vector<2x2xf32>
    %c0_276 = arith.constant 0 : index
    %c0_277 = arith.constant 0 : index
    %1054 = vector.load %arg12[%c0_276, %c0_277] : memref<1x2xf32, #tpu.memory_space<vmem>>, vector<1x2xf32>
    %1055 = vector.broadcast %1054 : vector<1x2xf32> to vector<2x2xf32>
    %1056 = arith.addf %1053, %1055 : vector<2x2xf32>
    %c0_278 = arith.constant 0 : index
    %c0_279 = arith.constant 0 : index
    %1057 = vector.load %arg13[%c0_278, %c0_279] : memref<2x2xf32, #tpu.memory_space<vmem>>, vector<2x2xf32>
    tpu.vector_store %arg13[%c0_278, %c0_279], %1056 {strides = array<i32>} : memref<2x2xf32, #tpu.memory_space<vmem>>, vector<2x2xf32>,
    return
  }
}

</mosaic_0001>

<llo_original>
// kernel: textrnn_att_forward.1
$region0: #{textrnn_att_forward.1}
  #allocation0 [shape = 'u32[]', space=smem, size = 0x4, offset = 0x4, fixed_abs, tag = 'smem constant byte address 0x4 - core index']
  #allocation1 [shape = 'u32[144,128]{1,0:T(1,128)}', space=vmem, size = 0x12000, scoped, tag = 'internal scratch']
  #allocation2 [shape = 'f32[16,256]{1,0:T(8,128)}', space=vmem, size = 0x4000, scoped, tag = 'scratch operand']
  #allocation3 [shape = 'f32[16,64]{1,0:T(8,128)}', space=vmem, size = 0x2000, scoped, tag = 'scratch operand']
  %s0 = inlined_call_operand.vmem [shape: f32[16,300], index: 0, kind: input, shape index: {}]
  %s1 = inlined_call_operand.hbm [shape: f32[300,256], index: 1, kind: input, shape index: {}]
  %s2 = inlined_call_operand.vmem [shape: f32[64,256], index: 2, kind: input, shape index: {}]
  %s3 = inlined_call_operand.vmem [shape: f32[1,256], index: 3, kind: input, shape index: {}]
  %s4 = inlined_call_operand.vmem [shape: f32[64,256], index: 4, kind: input, shape index: {}]
  %s5 = inlined_call_operand.hbm [shape: f32[64,256], index: 5, kind: input, shape index: {}]
  %s6 = inlined_call_operand.vmem [shape: f32[1,256], index: 6, kind: input, shape index: {}]
  %s7 = inlined_call_operand.vmem [shape: f32[1,64], index: 7, kind: input, shape index: {}]
  %s8 = inlined_call_operand.vmem [shape: f32[2,16], index: 8, kind: input, shape index: {}]
  %s9 = inlined_call_operand.hbm [shape: f32[64,64], index: 9, kind: input, shape index: {}]
  %s10 = inlined_call_operand.vmem [shape: f32[1,64], index: 10, kind: input, shape index: {}]
  %s11 = inlined_call_operand.vmem [shape: f32[64,2], index: 11, kind: input, shape index: {}]
  %s12 = inlined_call_operand.vmem [shape: f32[1,2], index: 12, kind: input, shape index: {}]
  %s13 = inlined_call_operand.hbm [shape: f32[2,2], index: 13, kind: output, shape index: {}]
  %s14 = sld [smem:[#allocation0]]
  $region74: #{textrnn_att_forward.1} parent=0
    _
  %s16 = ssub.s32 1, %s14
  %s17 = scalar_select 0, %s16, %s14
  $region1: #{textrnn_att_forward.1} parent=0
    #allocation4 [shape = 'u8[311296]{0}', space=vmem, size = 0x4c000, scoped, tag = 'input window, operand 1, single buffered']
    #allocation5 [shape = 's32[1]{0}', space=sflag, size = 0x4, scoped, tag = 'scoped memory for textrnn_att_forward.1']
    #allocation6 [shape = 's32[1]{0}', space=sflag, size = 0x4, scoped, tag = 'scoped memory for textrnn_att_forward.1']
    #allocation7 [shape = 'u8[65536]{0}', space=vmem, size = 0x10000, scoped, tag = 'input window, operand 5, single buffered']
    #allocation8 [shape = 's32[1]{0}', space=sflag, size = 0x4, scoped, tag = 'scoped memory for textrnn_att_forward.1']
    #allocation9 [shape = 'u8[32768]{0}', space=vmem, size = 0x8000, scoped, tag = 'input window, operand 9, single buffered']
    #allocation10 [shape = 'u8[1024]{0}', space=vmem, size = 0x400, scoped, tag = 'output window, operand 0, single buffered']
    %18 = vsyncpa [#allocation5], 0
    %19 = vsyncpa [#allocation8], 0
    %20 = vsyncpa [#allocation6], 0
    // Predicated region
    $region2: #{textrnn_att_forward.1} parent=1 // pred_check
      _
    $region3: #{textrnn_att_forward.1} parent=1 // pred_check_branch
      %22 = sbr.rel (0) target = $region5
    $region4: #{textrnn_att_forward.1} parent=1 // pred_region
      _
    $region5: #{textrnn_att_forward.1} parent=1 // pred_fallthru
      _
    // Predicated region
    $region6: #{textrnn_att_forward.1} parent=1 // pred_check
      _
    $region7: #{textrnn_att_forward.1} parent=1 // pred_check_branch
      %24 = sbr.rel (0) target = $region9
    $region8: #{textrnn_att_forward.1} parent=1 // pred_region
      %s26 = ssub.s32 9728, 9728
      %27 = vsyncadd [#allocation5], %s26
      %s28 = sshll.u32 [#allocation4], 4
      %s29 = int_to_ptr.vmem [resolvable:$true] %s28
      %34 = dma.hbm_to_vmem [thread:$0]  %s1, 9728, %s29, [#allocation5], 256, 256, 16
    $region9: #{textrnn_att_forward.1} parent=1 // pred_fallthru
      _
    // Predicated region
    $region10: #{textrnn_att_forward.1} parent=1 // pred_check
      _
    $region11: #{textrnn_att_forward.1} parent=1 // pred_check_branch
      %36 = sbr.rel (0) target = $region13
    $region12: #{textrnn_att_forward.1} parent=1 // pred_region
      _
    $region13: #{textrnn_att_forward.1} parent=1 // pred_fallthru
      _
    // Predicated region
    $region14: #{textrnn_att_forward.1} parent=1 // pred_check
      _
    $region15: #{textrnn_att_forward.1} parent=1 // pred_check_branch
      %38 = sbr.rel (0) target = $region17
    $region16: #{textrnn_att_forward.1} parent=1 // pred_region
      _
    $region17: #{textrnn_att_forward.1} parent=1 // pred_fallthru
      _
    // Predicated region
    $region18: #{textrnn_att_forward.1} parent=1 // pred_check
      _
    $region19: #{textrnn_att_forward.1} parent=1 // pred_check_branch
      %40 = sbr.rel (0) target = $region21
    $region20: #{textrnn_att_forward.1} parent=1 // pred_region
      _
    $region21: #{textrnn_att_forward.1} parent=1 // pred_fallthru
      _
    // Predicated region
    $region22: #{textrnn_att_forward.1} parent=1 // pred_check
      _
    $region23: #{textrnn_att_forward.1} parent=1 // pred_check_branch
      %42 = sbr.rel (0) target = $region25
    $region24: #{textrnn_att_forward.1} parent=1 // pred_region
      %s44 = ssub.s32 2048, 2048
      %45 = vsyncadd [#allocation8], %s44
      %s46 = sshll.u32 [#allocation7], 4
      %s47 = int_to_ptr.vmem [resolvable:$true] %s46
      %52 = dma.hbm_to_vmem [thread:$0]  %s5, 2048, %s47, [#allocation8], 256, 256, 16
    $region25: #{textrnn_att_forward.1} parent=1 // pred_fallthru
      _
    // Predicated region
    $region26: #{textrnn_att_forward.1} parent=1 // pred_check
      _
    $region27: #{textrnn_att_forward.1} parent=1 // pred_check_branch
      %54 = sbr.rel (0) target = $region29
    $region28: #{textrnn_att_forward.1} parent=1 // pred_region
      _
    $region29: #{textrnn_att_forward.1} parent=1 // pred_fallthru
      _
    // Predicated region
    $region30: #{textrnn_att_forward.1} parent=1 // pred_check
      _
    $region31: #{textrnn_att_forward.1} parent=1 // pred_check_branch
      %56 = sbr.rel (0) target = $region33
    $region32: #{textrnn_att_forward.1} parent=1 // pred_region
      _
    $region33: #{textrnn_att_forward.1} parent=1 // pred_fallthru
      _
    // Predicated region
    $region34: #{textrnn_att_forward.1} parent=1 // pred_check
      _
    $region35: #{textrnn_att_forward.1} parent=1 // pred_check_branch
      %58 = sbr.rel (0) target = $region37
    $region36: #{textrnn_att_forward.1} parent=1 // pred_region
      _
    $region37: #{textrnn_att_forward.1} parent=1 // pred_fallthru
      _
    // Predicated region
    $region38: #{textrnn_att_forward.1} parent=1 // pred_check
      _
    $region39: #{textrnn_att_forward.1} parent=1 // pred_check_branch
      %60 = sbr.rel (0) target = $region41
    $region40: #{textrnn_att_forward.1} parent=1 // pred_region
      %s62 = ssub.s32 1024, 1024
      %63 = vsyncadd [#allocation8], %s62
      %s64 = sshll.u32 [#allocation9], 4
      %s65 = int_to_ptr.vmem [resolvable:$true] %s64
      %70 = dma.hbm_to_vmem [thread:$0]  %s9, 1024, %s65, [#allocation8], 128, 128, 8
    $region41: #{textrnn_att_forward.1} parent=1 // pred_fallthru
      _
    // Predicated region
    $region42: #{textrnn_att_forward.1} parent=1 // pred_check
      _
    $region43: #{textrnn_att_forward.1} parent=1 // pred_check_branch
      %72 = sbr.rel (0) target = $region45
    $region44: #{textrnn_att_forward.1} parent=1 // pred_region
      _
    $region45: #{textrnn_att_forward.1} parent=1 // pred_fallthru
      _
    // Predicated region
    $region46: #{textrnn_att_forward.1} parent=1 // pred_check
      _
    $region47: #{textrnn_att_forward.1} parent=1 // pred_check_branch
      %74 = sbr.rel (0) target = $region49
    $region48: #{textrnn_att_forward.1} parent=1 // pred_region
      _
    $region49: #{textrnn_att_forward.1} parent=1 // pred_fallthru
      _
    // Predicated region
    $region50: #{textrnn_att_forward.1} parent=1 // pred_check
      _
    $region51: #{textrnn_att_forward.1} parent=1 // pred_check_branch
      %76 = sbr.rel (0) target = $region53
    $region52: #{textrnn_att_forward.1} parent=1 // pred_region
      _
    $region53: #{textrnn_att_forward.1} parent=1 // pred_fallthru
      _
    // Predicated region
    $region54: #{textrnn_att_forward.1} parent=1 // pred_check
      _
    $region55: #{textrnn_att_forward.1} parent=1 // pred_check_branch
      %78 = sbr.rel (0) target = $region57
    $region56: #{textrnn_att_forward.1} parent=1 // pred_region
      %79 = dma.done [#allocation5], 9728
    $region57: #{textrnn_att_forward.1} parent=1 // pred_fallthru
      _
    // Predicated region
    $region58: #{textrnn_att_forward.1} parent=1 // pred_check
      _
    $region59: #{textrnn_att_forward.1} parent=1 // pred_check_branch
      %81 = sbr.rel (0) target = $region61
    $region60: #{textrnn_att_forward.1} parent=1 // pred_region
      %82 = dma.done [#allocation8], 2048
    $region61: #{textrnn_att_forward.1} parent=1 // pred_fallthru
      _
    // Predicated region
    $region62: #{textrnn_att_forward.1} parent=1 // pred_check
      _
    $region63: #{textrnn_att_forward.1} parent=1 // pred_check_branch
      %84 = sbr.rel (0) target = $region65
    $region64: #{textrnn_att_forward.1} parent=1 // pred_region
      %85 = dma.done [#allocation8], 1024
    $region65: #{textrnn_att_forward.1} parent=1 // pred_fallthru
      _
    %v86 = vld [vmem:[%s0] sm:$0xff]
    %v87 = vld [vmem:[%s0 + $0x8] sm:$0xff]
    %v88 = vld [vmem:[%s0 + $0x10] sm:$0xff]
    %v89 = vld [vmem:[%s0 + $0x18] sm:$0xff]
    %v90 = vld [vmem:[%s0 + $0x20] sm:$0xff]
    %v91 = vld [vmem:[%s0 + $0x28] sm:$0xff]
    %v92 = vld [vmem:[#allocation4] sm:$0xff]
    %v93 = vld [vmem:[#allocation4 + $0x8] sm:$0xff]
    %v94 = vld [vmem:[#allocation4 + $0x10] sm:$0xff]
    %v95 = vld [vmem:[#allocation4 + $0x18] sm:$0xff]
    %v96 = vld [vmem:[#allocation4 + $0x20] sm:$0xff]
    %v97 = vld [vmem:[#allocation4 + $0x28] sm:$0xff]
    %v98 = vld [vmem:[#allocation4 + $0x30] sm:$0xff]
    %v99 = vld [vmem:[#allocation4 + $0x38] sm:$0xff]
    %v100 = vld [vmem:[#allocation4 + $0x40] sm:$0xff]
    %v101 = vld [vmem:[#allocation4 + $0x48] sm:$0xff]
    %v102 = vld [vmem:[#allocation4 + $0x50] sm:$0xff]
    %v103 = vld [vmem:[#allocation4 + $0x58] sm:$0xff]
    %v104 = vld [vmem:[#allocation4 + $0x60] sm:$0xff]
    %v105 = vld [vmem:[#allocation4 + $0x68] sm:$0xff]
    %v106 = vld [vmem:[#allocation4 + $0x70] sm:$0xff]
    %v107 = vld [vmem:[#allocation4 + $0x78] sm:$0xff]
    %v108 = vld [vmem:[#allocation4 + $0x80] sm:$0xff]
    %v109 = vld [vmem:[#allocation4 + $0x88] sm:$0xff]
    %v110 = vld [vmem:[#allocation4 + $0x90] sm:$0xff]
    %v111 = vld [vmem:[#allocation4 + $0x98] sm:$0xff]
    %v112 = vld [vmem:[#allocation4 + $0xa0] sm:$0xff]
    %v113 = vld [vmem:[#allocation4 + $0xa8] sm:$0xff]
    %v114 = vld [vmem:[#allocation4 + $0xb0] sm:$0xff]
    %v115 = vld [vmem:[#allocation4 + $0xb8] sm:$0xff]
    %v116 = vld [vmem:[#allocation4 + $0xc0] sm:$0xff]
    %v117 = vld [vmem:[#allocation4 + $0xc8] sm:$0xff]
    %v118 = vld [vmem:[#allocation4 + $0xd0] sm:$0xff]
    %v119 = vld [vmem:[#allocation4 + $0xd8] sm:$0xff]
    %v120 = vld [vmem:[#allocation4 + $0xe0] sm:$0xff]
    %v121 = vld [vmem:[#allocation4 + $0xe8] sm:$0xff]
    %v122 = vld [vmem:[#allocation4 + $0xf0] sm:$0xff]
    %v123 = vld [vmem:[#allocation4 + $0xf8] sm:$0xff]
    %v124 = vld [vmem:[#allocation4 + $0x100] sm:$0xff]
    %v125 = vld [vmem:[#allocation4 + $0x108] sm:$0xff]
    %v126 = vld [vmem:[#allocation4 + $0x110] sm:$0xff]
    %v127 = vld [vmem:[#allocation4 + $0x118] sm:$0xff]
    %v128 = vld [vmem:[#allocation4 + $0x120] sm:$0xff]
    %v129 = vld [vmem:[#allocation4 + $0x128] sm:$0xff]
    %v130 = vld [vmem:[#allocation4 + $0x130] sm:$0xff]
    %v131 = vld [vmem:[#allocation4 + $0x138] sm:$0xff]
    %v132 = vld [vmem:[#allocation4 + $0x140] sm:$0xff]
    %v133 = vld [vmem:[#allocation4 + $0x148] sm:$0xff]
    %v134 = vld [vmem:[#allocation4 + $0x150] sm:$0xff]
    %v135 = vld [vmem:[#allocation4 + $0x158] sm:$0xff]
    %v136 = vld [vmem:[#allocation4 + $0x160] sm:$0xff]
    %v137 = vld [vmem:[#allocation4 + $0x168] sm:$0xff]
    %v138 = vld [vmem:[#allocation4 + $0x170] sm:$0xff]
    %v139 = vld [vmem:[#allocation4 + $0x178] sm:$0xff]
    %v140 = vld [vmem:[#allocation4 + $0x180] sm:$0xff]
    %v141 = vld [vmem:[#allocation4 + $0x188] sm:$0xff]
    %v142 = vld [vmem:[#allocation4 + $0x190] sm:$0xff]
    %v143 = vld [vmem:[#allocation4 + $0x198] sm:$0xff]
    %v144 = vld [vmem:[#allocation4 + $0x1a0] sm:$0xff]
    %v145 = vld [vmem:[#allocation4 + $0x1a8] sm:$0xff]
    %v146 = vld [vmem:[#allocation4 + $0x1b0] sm:$0xff]
    %v147 = vld [vmem:[#allocation4 + $0x1b8] sm:$0xff]
    %v148 = vld [vmem:[#allocation4 + $0x1c0] sm:$0xff]
    %v149 = vld [vmem:[#allocation4 + $0x1c8] sm:$0xff]
    %v150 = vld [vmem:[#allocation4 + $0x1d0] sm:$0xff]
    %v151 = vld [vmem:[#allocation4 + $0x1d8] sm:$0xff]
    %v152 = vld [vmem:[#allocation4 + $0x1e0] sm:$0xff]
    %v153 = vld [vmem:[#allocation4 + $0x1e8] sm:$0xff]
    %v154 = vld [vmem:[#allocation4 + $0x1f0] sm:$0xff]
    %v155 = vld [vmem:[#allocation4 + $0x1f8] sm:$0xff]
    %v156 = vld [vmem:[#allocation4 + $0x200] sm:$0xff]
    %v157 = vld [vmem:[#allocation4 + $0x208] sm:$0xff]
    %v158 = vld [vmem:[#allocation4 + $0x210] sm:$0xff]
    %v159 = vld [vmem:[#allocation4 + $0x218] sm:$0xff]
    %v160 = vld [vmem:[#allocation4 + $0x220] sm:$0xff]
    %v161 = vld [vmem:[#allocation4 + $0x228] sm:$0xff]
    %v162 = vld [vmem:[#allocation4 + $0x230] sm:$0xff]
    %v163 = vld [vmem:[#allocation4 + $0x238] sm:$0xff]
    %v164 = vld [vmem:[#allocation4 + $0x240] sm:$0xff]
    %v165 = vld [vmem:[#allocation4 + $0x248] sm:$0xff]
    %v166 = vld [vmem:[#allocation4 + $0x250] sm:$0xf]
    %v167 = vld [vmem:[#allocation4 + $0x258] sm:$0xf]
    %v168 = vld [vmem:[%s3] sm:$0x3]
    %v170 = vlaneseq
    %v171 = vshrl.u32 %v170, 7
    %v172 = vsub.s32 0, %v171
    %v173 = vrot.slane %v168, %v172
    %v174 = vlaneseq
    %v175 = vshrl.u32 %v174, 7
    %v176 = vsub.s32 1, %v175
    %v177 = vrot.slane %v168, %v176
    %vm180 = vcmask 359424
    %v182 = vsel %vm180, %v88, 0
    %v185 = vsel %vm180, %v91, 0
    %vm187 = vcmask 1043456
    %v189 = vsel %vm187, %v166, 0
    %v192 = vsel %vm187, %v167, 0
    %194 = vmatprep.subr.mxu0 %v93
    %195 = vmatpush1.msra.mxu0 %v92
    %196 = vmatprep.subr.mxu0 %v95
    %197 = vmatpush1.msra.mxu0 %v94
    %198 = vmatprep.subr.mxu0 %v97
    %199 = vmatpush1.msra.mxu0 %v96
    %200 = vmatprep.subr.mxu0 %v99
    %201 = vmatpush1.msra.mxu0 %v98
    %202 = vmatprep.subr.mxu0 %v101
    %203 = vmatpush1.msra.mxu0 %v100
    %204 = vmatprep.subr.mxu0 %v103
    %205 = vmatpush1.msra.mxu0 %v102
    %206 = vmatprep.subr.mxu0 %v105
    %207 = vmatpush1.msra.mxu0 %v104
    %208 = vmatprep.subr.mxu0 %v107
    %209 = vmatpush1.msra.mxu0 %v106
    %210 = vmatprep.subr.mxu0 %v109
    %211 = vmatpush1.msra.mxu0 %v108
    %212 = vmatprep.subr.mxu0 %v111
    %213 = vmatpush1.msra.mxu0 %v110
    %214 = vmatprep.subr.mxu0 %v113
    %215 = vmatpush1.msra.mxu0 %v112
    %216 = vmatprep.subr.mxu0 %v115
    %217 = vmatpush1.msra.mxu0 %v114
    %218 = vmatprep.subr.mxu0 %v117
    %219 = vmatpush1.msra.mxu0 %v116
    %220 = vmatprep.subr.mxu0 %v119
    %221 = vmatpush1.msra.mxu0 %v118
    %222 = vmatprep.subr.mxu0 %v121
    %223 = vmatpush1.msra.mxu0 %v120
    %224 = vmatprep.subr.mxu0 %v123
    %225 = vmatpush1.msra.mxu0 %v122
    %226 = vmatprep.subr.mxu0 %v125
    %227 = vmatpush1.msra.mxu0 %v124
    %228 = vmatprep.subr.mxu0 %v127
    %229 = vmatpush1.msra.mxu0 %v126
    %230 = vmatprep.subr.mxu0 %v129
    %231 = vmatpush1.msra.mxu0 %v128
    %232 = vmatprep.subr.mxu0 %v131
    %233 = vmatpush1.msra.mxu0 %v130
    %234 = vmatprep.subr.mxu0 %v133
    %235 = vmatpush1.msra.mxu0 %v132
    %236 = vmatprep.subr.mxu0 %v135
    %237 = vmatpush1.msra.mxu0 %v134
    %238 = vmatprep.subr.mxu0 %v137
    %239 = vmatpush1.msra.mxu0 %v136
    %240 = vmatprep.subr.mxu0 %v139
    %241 = vmatpush1.msra.mxu0 %v138
    %242 = vmatprep.subr.mxu0 %v141
    %243 = vmatpush1.msra.mxu0 %v140
    %244 = vmatprep.subr.mxu0 %v143
    %245 = vmatpush1.msra.mxu0 %v142
    %246 = vmatprep.subr.mxu0 %v145
    %247 = vmatpush1.msra.mxu0 %v144
    %248 = vmatprep.subr.mxu0 %v147
    %249 = vmatpush1.msra.mxu0 %v146
    %250 = vmatprep.subr.mxu0 %v149
    %251 = vmatpush1.msra.mxu0 %v148
    %252 = vmatprep.subr.mxu0 %v151
    %253 = vmatpush1.msra.mxu0 %v150
    %254 = vmatprep.subr.mxu0 %v153
    %255 = vmatpush1.msra.mxu0 %v152
    %256 = vmatprep.subr.mxu0 %v155
    %257 = vmatpush1.msra.mxu0 %v154
    %258 = vmatprep.mubr.f32.mxu0 %v87
    %259 = vmatmul.mubr.f32.gmra.mrb[0].mxu0 %v86
    %v260 = vpop.f32.mrb[0].mxu0
    %v261 = vadd.f32 %v173, %v260
    %v262 = vpop.f32.mrb[0].mxu0
    %v263 = vadd.f32 %v177, %v262
    %264 = vmatprep.mubr.f32.mxu0 %v90
    %265 = vmatmul.mubr.f32.gmra.mrb[0].mxu0 %v89
    %v266 = vpop.f32.mrb[0].mxu0
    %v267 = vadd.f32 %v173, %v266
    %v268 = vpop.f32.mrb[0].mxu0
    %v269 = vadd.f32 %v177, %v268
    %270 = vdwg.mxu0
    %271 = vmatprep.subr.mxu0 %v157
    %272 = vmatpush1.msra.mxu0 %v156
    %273 = vmatprep.subr.mxu0 %v159
    %274 = vmatpush1.msra.mxu0 %v158
    %275 = vmatprep.subr.mxu0 %v161
    %276 = vmatpush1.msra.mxu0 %v160
    %277 = vmatprep.subr.mxu0 %v163
    %278 = vmatpush1.msra.mxu0 %v162
    %279 = vmatprep.subr.mxu0 %v165
    %280 = vmatpush1.msra.mxu0 %v164
    %281 = vmatprep.subr.mxu0 %v192
    %282 = vmatpush1.msra.mxu0 %v189
    %283 = vmatprep.subr.mxu0 0.0
    %284 = vmatpush1.msra.mxu0 0.0
    %285 = vmatprep.subr.mxu0 0.0
    %286 = vmatpush1.msra.mxu0 0.0
    %287 = vmatprep.subr.mxu0 0.0
    %288 = vmatpush1.msra.mxu0 0.0
    %289 = vmatprep.subr.mxu0 0.0
    %290 = vmatpush1.msra.mxu0 0.0
    %291 = vmatprep.subr.mxu0 0.0
    %292 = vmatpush1.msra.mxu0 0.0
    %293 = vmatprep.subr.mxu0 0.0
    %294 = vmatpush1.msra.mxu0 0.0
    %295 = vmatprep.subr.mxu0 0.0
    %296 = vmatpush1.msra.mxu0 0.0
    %297 = vmatprep.subr.mxu0 0.0
    %298 = vmatpush1.msra.mxu0 0.0
    %299 = vmatprep.subr.mxu0 0.0
    %300 = vmatpush1.msra.mxu0 0.0
    %301 = vmatprep.subr.mxu0 0.0
    %302 = vmatpush1.msra.mxu0 0.0
    %303 = vmatprep.subr.mxu0 0.0
    %304 = vmatpush1.msra.mxu0 0.0
    %305 = vmatprep.subr.mxu0 0.0
    %306 = vmatpush1.msra.mxu0 0.0
    %307 = vmatprep.subr.mxu0 0.0
    %308 = vmatpush1.msra.mxu0 0.0
    %309 = vmatprep.subr.mxu0 0.0
    %310 = vmatpush1.msra.mxu0 0.0
    %311 = vmatprep.subr.mxu0 0.0
    %312 = vmatpush1.msra.mxu0 0.0
    %313 = vmatprep.subr.mxu0 0.0
    %314 = vmatpush1.msra.mxu0 0.0
    %315 = vmatprep.subr.mxu0 0.0
    %316 = vmatpush1.msra.mxu0 0.0
    %317 = vmatprep.subr.mxu0 0.0
    %318 = vmatpush1.msra.mxu0 0.0
    %319 = vmatprep.subr.mxu0 0.0
    %320 = vmatpush1.msra.mxu0 0.0
    %321 = vmatprep.subr.mxu0 0.0
    %322 = vmatpush1.msra.mxu0 0.0
    %323 = vmatprep.subr.mxu0 0.0
    %324 = vmatpush1.msra.mxu0 0.0
    %325 = vmatprep.subr.mxu0 0.0
    %326 = vmatpush1.msra.mxu0 0.0
    %327 = vmatprep.subr.mxu0 0.0
    %328 = vmatpush1.msra.mxu0 0.0
    %329 = vmatprep.subr.mxu0 0.0
    %330 = vmatpush1.msra.mxu0 0.0
    %331 = vmatprep.subr.mxu0 0.0
    %332 = vmatpush1.msra.mxu0 0.0
    %333 = vmatprep.subr.mxu0 0.0
    %334 = vmatpush1.msra.mxu0 0.0
    %335 = vmatprep.mubr.f32.mxu0 0.0
    %336 = vmatmul.mubr.f32.gmra.mrb[0].mxu0 %v182
    %v337 = vpop.f32.mrb[0].mxu0
    %v338 = vadd.f32 %v261, %v337
    %v339 = vpop.f32.mrb[0].mxu0
    %v340 = vadd.f32 %v263, %v339
    %341 = vmatprep.mubr.f32.mxu0 0.0
    %342 = vmatmul.mubr.f32.gmra.mrb[0].mxu0 %v185
    %v343 = vpop.f32.mrb[0].mxu0
    %v344 = vadd.f32 %v267, %v343
    %v345 = vpop.f32.mrb[0].mxu0
    %v346 = vadd.f32 %v269, %v345
    %347 = vdwg.mxu0
    %348 = vst [vmem:[#allocation2] sm:$0xff] %v338
    %349 = vst [vmem:[#allocation2 + $0x8] sm:$0xff] %v340
    %350 = vst [vmem:[#allocation2 + $0x10] sm:$0xff] %v344
    %351 = vst [vmem:[#allocation2 + $0x18] sm:$0xff] %v346
    %v352 = vld [vmem:[%s2] sm:$0xff]
    %v353 = vld [vmem:[%s2 + $0x8] sm:$0xff]
    %v354 = vld [vmem:[%s2 + $0x10] sm:$0xff]
    %v355 = vld [vmem:[%s2 + $0x18] sm:$0xff]
    %v356 = vld [vmem:[%s2 + $0x20] sm:$0xff]
    %v357 = vld [vmem:[%s2 + $0x28] sm:$0xff]
    %v358 = vld [vmem:[%s2 + $0x30] sm:$0xff]
    %v359 = vld [vmem:[%s2 + $0x38] sm:$0xff]
    %v360 = vld [vmem:[%s2 + $0x40] sm:$0xff]
    %v361 = vld [vmem:[%s2 + $0x48] sm:$0xff]
    %v362 = vld [vmem:[%s2 + $0x50] sm:$0xff]
    %v363 = vld [vmem:[%s2 + $0x58] sm:$0xff]
    %v364 = vld [vmem:[%s2 + $0x60] sm:$0xff]
    %v365 = vld [vmem:[%s2 + $0x68] sm:$0xff]
    %v366 = vld [vmem:[%s2 + $0x70] sm:$0xff]
    %v367 = vld [vmem:[%s2 + $0x78] sm:$0xff]
    %vm368 = vcmask 523264
    %v370 = vsel %vm368, 0.0, 0
    %372 = vmatprep.subr.mxu0 %v353
    %373 = vmatpush1.msra.mxu0 %v352
    %374 = vmatprep.subr.mxu0 %v355
    %375 = vmatpush1.msra.mxu0 %v354
    %376 = vmatprep.subr.mxu0 %v357
    %377 = vmatpush1.msra.mxu0 %v356
    %378 = vmatprep.subr.mxu0 %v359
    %379 = vmatpush1.msra.mxu0 %v358
    %380 = vmatprep.subr.mxu0 %v361
    %381 = vmatpush1.msra.mxu0 %v360
    %382 = vmatprep.subr.mxu0 %v363
    %383 = vmatpush1.msra.mxu0 %v362
    %384 = vmatprep.subr.mxu0 %v365
    %385 = vmatpush1.msra.mxu0 %v364
    %386 = vmatprep.subr.mxu0 %v367
    %387 = vmatpush1.msra.mxu0 %v366
    %388 = vmatprep.subr.mxu0 0.0
    %389 = vmatpush1.msra.mxu0 0.0
    %390 = vmatprep.subr.mxu0 0.0
    %391 = vmatpush1.msra.mxu0 0.0
    %392 = vmatprep.subr.mxu0 0.0
    %393 = vmatpush1.msra.mxu0 0.0
    %394 = vmatprep.subr.mxu0 0.0
    %395 = vmatpush1.msra.mxu0 0.0
    %396 = vmatprep.subr.mxu0 0.0
    %397 = vmatpush1.msra.mxu0 0.0
    %398 = vmatprep.subr.mxu0 0.0
    %399 = vmatpush1.msra.mxu0 0.0
    %400 = vmatprep.subr.mxu0 0.0
    %401 = vmatpush1.msra.mxu0 0.0
    %402 = vmatprep.subr.mxu0 0.0
    %403 = vmatpush1.msra.mxu0 0.0
    %404 = vmatprep.subr.mxu0 0.0
    %405 = vmatpush1.msra.mxu0 0.0
    %406 = vmatprep.subr.mxu0 0.0
    %407 = vmatpush1.msra.mxu0 0.0
    %408 = vmatprep.subr.mxu0 0.0
    %409 = vmatpush1.msra.mxu0 0.0
    %410 = vmatprep.subr.mxu0 0.0
    %411 = vmatpush1.msra.mxu0 0.0
    %412 = vmatprep.subr.mxu0 0.0
    %413 = vmatpush1.msra.mxu0 0.0
    %414 = vmatprep.subr.mxu0 0.0
    %415 = vmatpush1.msra.mxu0 0.0
    %416 = vmatprep.subr.mxu0 0.0
    %417 = vmatpush1.msra.mxu0 0.0
    %418 = vmatprep.subr.mxu0 0.0
    %419 = vmatpush1.msra.mxu0 0.0
    %420 = vmatprep.subr.mxu0 0.0
    %421 = vmatpush1.msra.mxu0 0.0
    %422 = vmatprep.subr.mxu0 0.0
    %423 = vmatpush1.msra.mxu0 0.0
    %424 = vmatprep.subr.mxu0 0.0
    %425 = vmatpush1.msra.mxu0 0.0
    %426 = vmatprep.subr.mxu0 0.0
    %427 = vmatpush1.msra.mxu0 0.0
    %428 = vmatprep.subr.mxu0 0.0
    %429 = vmatpush1.msra.mxu0 0.0
    %430 = vmatprep.subr.mxu0 0.0
    %431 = vmatpush1.msra.mxu0 0.0
    %432 = vmatprep.subr.mxu0 0.0
    %433 = vmatpush1.msra.mxu0 0.0
    %434 = vmatprep.subr.mxu0 0.0
    %435 = vmatpush1.msra.mxu0 0.0
    %436 = vmatprep.mubr.f32.mxu0 0.0
    %437 = vmatmul.mubr.f32.gmra.mrb[0].mxu0 %v370
    %v438 = vpop.f32.mrb[0].mxu0
    %v439 = vadd.f32 0.0, %v438
    %v440 = vpop.f32.mrb[0].mxu0
    %v441 = vadd.f32 0.0, %v440
    %442 = vdwg.mxu0
    %v443 = vld [vmem:[#allocation2] sm:$0x3]
    %v444 = vadd.f32 %v443, %v439
    %v445 = vld [vmem:[#allocation2 + $0x18] sm:$0xc0]
    %v447 = vrot.slane %v441, 2
    %v449 = vadd.f32 %v445, %v447
    %v450 = vxor.u32 %v444, 2147483648
    %v451 = vmul.f32 %v450, 1.442695
    %v452 = vpow.pop %v451
    %v453 = vadd.f32 %v452, 1.0
    %v454 = vrcp.pop %v453
    %v455 = vmul.f32 1.0, %v454
    %v456 = vtanh.pop %v444
    %v457 = vmul.f32 %v455, 0.0
    %459 = vrot.lane.b32.xlu0 %v456, 64
    %v460 = vpop.permute.xlu0 %459
    %v462 = vmul.f32 %v455, %v460
    %464 = vrot.lane.b32.xlu0 %v462, 32
    %v465 = vpop.permute.xlu0 %464
    %v467 = vadd.f32 %v457, %v465
    %v468 = vtanh.pop %v467
    %470 = vrot.lane.b32.xlu0 %v468, 64
    %v471 = vpop.permute.xlu0 %470
    %v473 = vmul.f32 %v455, %v471
    %v474 = vxor.u32 %v449, 2147483648
    %v475 = vmul.f32 %v474, 1.442695
    %v476 = vpow.pop %v475
    %v477 = vadd.f32 %v476, 1.0
    %v478 = vrcp.pop %v477
    %v479 = vmul.f32 1.0, %v478
    %v480 = vtanh.pop %v449
    %v481 = vmul.f32 %v479, 0.0
    %483 = vrot.lane.b32.xlu0 %v480, 64
    %v484 = vpop.permute.xlu0 %483
    %v486 = vmul.f32 %v479, %v484
    %488 = vrot.lane.b32.xlu0 %v486, 32
    %v489 = vpop.permute.xlu0 %488
    %v491 = vadd.f32 %v481, %v489
    %v492 = vtanh.pop %v491
    %494 = vrot.lane.b32.xlu0 %v492, 64
    %v495 = vpop.permute.xlu0 %494
    %v497 = vmul.f32 %v479, %v495
    %499 = vrot.lane.b32.xlu0 %v473, 32
    %v500 = vpop.permute.xlu0 %499
    %vm502 = vcmask 254976
    %503 = vst.msk [vmem:[#allocation3] sm:$0x3] %vm502, %v500
    %505 = vrot.lane.b32.xlu0 %v497, 64
    %v506 = vpop.permute.xlu0 %505
    %vm508 = vcmask 523526
    %509 = vst.msk [vmem:[#allocation3 + $0x8] sm:$0xc0] %vm508, %v506
    %v510 = vrot.slane %v497, 6
    %511 = vrot.lane.b32.xlu0 %v510, 64
    %v512 = vpop.permute.xlu0 %511
    %vm514 = vcmask 261120
    %v515 = vsel %vm514, %v500, %v512
    %517 = vrot.lane.b32.xlu0 %v467, 96
    %v518 = vpop.permute.xlu0 %517
    %v521 = vrot.slane %v491, 6
    %v523 = vsel %vm514, %v518, %v521
    %v525 = vsel %vm368, %v515, 0
    %527 = vmatprep.subr.mxu0 %v353
    %528 = vmatpush1.msra.mxu0 %v352
    %529 = vmatprep.subr.mxu0 %v355
    %530 = vmatpush1.msra.mxu0 %v354
    %531 = vmatprep.subr.mxu0 %v357
    %532 = vmatpush1.msra.mxu0 %v356
    %533 = vmatprep.subr.mxu0 %v359
    %534 = vmatpush1.msra.mxu0 %v358
    %535 = vmatprep.subr.mxu0 %v361
    %536 = vmatpush1.msra.mxu0 %v360
    %537 = vmatprep.subr.mxu0 %v363
    %538 = vmatpush1.msra.mxu0 %v362
    %539 = vmatprep.subr.mxu0 %v365
    %540 = vmatpush1.msra.mxu0 %v364
    %541 = vmatprep.subr.mxu0 %v367
    %542 = vmatpush1.msra.mxu0 %v366
    %543 = vmatprep.subr.mxu0 0.0
    %544 = vmatpush1.msra.mxu0 0.0
    %545 = vmatprep.subr.mxu0 0.0
    %546 = vmatpush1.msra.mxu0 0.0
    %547 = vmatprep.subr.mxu0 0.0
    %548 = vmatpush1.msra.mxu0 0.0
    %549 = vmatprep.subr.mxu0 0.0
    %550 = vmatpush1.msra.mxu0 0.0
    %551 = vmatprep.subr.mxu0 0.0
    %552 = vmatpush1.msra.mxu0 0.0
    %553 = vmatprep.subr.mxu0 0.0
    %554 = vmatpush1.msra.mxu0 0.0
    %555 = vmatprep.subr.mxu0 0.0
    %556 = vmatpush1.msra.mxu0 0.0
    %557 = vmatprep.subr.mxu0 0.0
    %558 = vmatpush1.msra.mxu0 0.0
    %559 = vmatprep.subr.mxu0 0.0
    %560 = vmatpush1.msra.mxu0 0.0
    %561 = vmatprep.subr.mxu0 0.0
    %562 = vmatpush1.msra.mxu0 0.0
    %563 = vmatprep.subr.mxu0 0.0
    %564 = vmatpush1.msra.mxu0 0.0
    %565 = vmatprep.subr.mxu0 0.0
    %566 = vmatpush1.msra.mxu0 0.0
    %567 = vmatprep.subr.mxu0 0.0
    %568 = vmatpush1.msra.mxu0 0.0
    %569 = vmatprep.subr.mxu0 0.0
    %570 = vmatpush1.msra.mxu0 0.0
    %571 = vmatprep.subr.mxu0 0.0
    %572 = vmatpush1.msra.mxu0 0.0
    %573 = vmatprep.subr.mxu0 0.0
    %574 = vmatpush1.msra.mxu0 0.0
    %575 = vmatprep.subr.mxu0 0.0
    %576 = vmatpush1.msra.mxu0 0.0
    %577 = vmatprep.subr.mxu0 0.0
    %578 = vmatpush1.msra.mxu0 0.0
    %579 = vmatprep.subr.mxu0 0.0
    %580 = vmatpush1.msra.mxu0 0.0
    %581 = vmatprep.subr.mxu0 0.0
    %582 = vmatpush1.msra.mxu0 0.0
    %583 = vmatprep.subr.mxu0 0.0
    %584 = vmatpush1.msra.mxu0 0.0
    %585 = vmatprep.subr.mxu0 0.0
    %586 = vmatpush1.msra.mxu0 0.0
    %587 = vmatprep.subr.mxu0 0.0
    %588 = vmatpush1.msra.mxu0 0.0
    %589 = vmatprep.subr.mxu0 0.0
    %590 = vmatpush1.msra.mxu0 0.0
    %591 = vmatprep.mubr.f32.mxu0 0.0
    %592 = vmatmul.mubr.f32.gmra.mrb[0].mxu0 %v525
    %v593 = vpop.f32.mrb[0].mxu0
    %v594 = vadd.f32 0.0, %v593
    %v595 = vpop.f32.mrb[0].mxu0
    %v596 = vadd.f32 0.0, %v595
    %597 = vdwg.mxu0
    %v598 = vld [vmem:[#allocation2] sm:$0xc]
    %v600 = vrot.slane %v594, 6
    %v602 = vadd.f32 %v598, %v600
    %v603 = vld [vmem:[#allocation2 + $0x18] sm:$0x30]
    %v605 = vrot.slane %v596, 4
    %v607 = vadd.f32 %v603, %v605
    %v608 = vxor.u32 %v602, 2147483648
    %v609 = vmul.f32 %v608, 1.442695
    %v610 = vpow.pop %v609
    %v611 = vadd.f32 %v610, 1.0
    %v612 = vrcp.pop %v611
    %v613 = vmul.f32 1.0, %v612
    %v614 = vtanh.pop %v602
    %v616 = vrot.slane %v523, 6
    %617 = vrot.lane.b32.xlu0 %v616, 32
    %v618 = vpop.permute.xlu0 %617
    %v620 = vmul.f32 %v613, %v618
    %622 = vrot.lane.b32.xlu0 %v614, 64
    %v623 = vpop.permute.xlu0 %622
    %v625 = vmul.f32 %v613, %v623
    %627 = vrot.lane.b32.xlu0 %v625, 32
    %v628 = vpop.permute.xlu0 %627
    %v630 = vadd.f32 %v620, %v628
    %v631 = vtanh.pop %v630
    %633 = vrot.lane.b32.xlu0 %v631, 64
    %v634 = vpop.permute.xlu0 %633
    %v636 = vmul.f32 %v613, %v634
    %v637 = vxor.u32 %v607, 2147483648
    %v638 = vmul.f32 %v637, 1.442695
    %v639 = vpow.pop %v638
    %v640 = vadd.f32 %v639, 1.0
    %v641 = vrcp.pop %v640
    %v642 = vmul.f32 1.0, %v641
    %v643 = vtanh.pop %v607
    %v644 = vrot.slane %v523, 4
    %v646 = vmul.f32 %v642, %v644
    %648 = vrot.lane.b32.xlu0 %v643, 64
    %v649 = vpop.permute.xlu0 %648
    %v651 = vmul.f32 %v642, %v649
    %653 = vrot.lane.b32.xlu0 %v651, 32
    %v654 = vpop.permute.xlu0 %653
    %v656 = vadd.f32 %v646, %v654
    %v657 = vtanh.pop %v656
    %659 = vrot.lane.b32.xlu0 %v657, 64
    %v660 = vpop.permute.xlu0 %659
    %v662 = vmul.f32 %v642, %v660
    %664 = vrot.lane.b32.xlu0 %v636, 32
    %v665 = vpop.permute.xlu0 %664
    %vm667 = vcmask 257026
    %668 = vst.msk [vmem:[#allocation3] sm:$0xc] %vm667, %v665
    %670 = vrot.lane.b32.xlu0 %v662, 64
    %v671 = vpop.permute.xlu0 %670
    %vm673 = vcmask 521476
    %674 = vst.msk [vmem:[#allocation3 + $0x8] sm:$0x30] %vm673, %v671
    %v675 = vrot.slane %v662, 2
    %676 = vrot.lane.b32.xlu0 %v675, 64
    %v677 = vpop.permute.xlu0 %676
    %v679 = vsel %vm514, %v665, %v677
    %681 = vrot.lane.b32.xlu0 %v630, 96
    %v682 = vpop.permute.xlu0 %681
    %v685 = vrot.slane %v656, 2
    %v687 = vsel %vm514, %v682, %v685
    %v689 = vrot.slane %v679, 2
    %v690 = vsel %vm368, %v689, 0
    %692 = vmatprep.subr.mxu0 %v353
    %693 = vmatpush1.msra.mxu0 %v352
    %694 = vmatprep.subr.mxu0 %v355
    %695 = vmatpush1.msra.mxu0 %v354
    %696 = vmatprep.subr.mxu0 %v357
    %697 = vmatpush1.msra.mxu0 %v356
    %698 = vmatprep.subr.mxu0 %v359
    %699 = vmatpush1.msra.mxu0 %v358
    %700 = vmatprep.subr.mxu0 %v361
    %701 = vmatpush1.msra.mxu0 %v360
    %702 = vmatprep.subr.mxu0 %v363
    %703 = vmatpush1.msra.mxu0 %v362
    %704 = vmatprep.subr.mxu0 %v365
    %705 = vmatpush1.msra.mxu0 %v364
    %706 = vmatprep.subr.mxu0 %v367
    %707 = vmatpush1.msra.mxu0 %v366
    %708 = vmatprep.subr.mxu0 0.0
    %709 = vmatpush1.msra.mxu0 0.0
    %710 = vmatprep.subr.mxu0 0.0
    %711 = vmatpush1.msra.mxu0 0.0
    %712 = vmatprep.subr.mxu0 0.0
    %713 = vmatpush1.msra.mxu0 0.0
    %714 = vmatprep.subr.mxu0 0.0
    %715 = vmatpush1.msra.mxu0 0.0
    %716 = vmatprep.subr.mxu0 0.0
    %717 = vmatpush1.msra.mxu0 0.0
    %718 = vmatprep.subr.mxu0 0.0
    %719 = vmatpush1.msra.mxu0 0.0
    %720 = vmatprep.subr.mxu0 0.0
    %721 = vmatpush1.msra.mxu0 0.0
    %722 = vmatprep.subr.mxu0 0.0
    %723 = vmatpush1.msra.mxu0 0.0
    %724 = vmatprep.subr.mxu0 0.0
    %725 = vmatpush1.msra.mxu0 0.0
    %726 = vmatprep.subr.mxu0 0.0
    %727 = vmatpush1.msra.mxu0 0.0
    %728 = vmatprep.subr.mxu0 0.0
    %729 = vmatpush1.msra.mxu0 0.0
    %730 = vmatprep.subr.mxu0 0.0
    %731 = vmatpush1.msra.mxu0 0.0
    %732 = vmatprep.subr.mxu0 0.0
    %733 = vmatpush1.msra.mxu0 0.0
    %734 = vmatprep.subr.mxu0 0.0
    %735 = vmatpush1.msra.mxu0 0.0
    %736 = vmatprep.subr.mxu0 0.0
    %737 = vmatpush1.msra.mxu0 0.0
    %738 = vmatprep.subr.mxu0 0.0
    %739 = vmatpush1.msra.mxu0 0.0
    %740 = vmatprep.subr.mxu0 0.0
    %741 = vmatpush1.msra.mxu0 0.0
    %742 = vmatprep.subr.mxu0 0.0
    %743 = vmatpush1.msra.mxu0 0.0
    %744 = vmatprep.subr.mxu0 0.0
    %745 = vmatpush1.msra.mxu0 0.0
    %746 = vmatprep.subr.mxu0 0.0
    %747 = vmatpush1.msra.mxu0 0.0
    %748 = vmatprep.subr.mxu0 0.0
    %749 = vmatpush1.msra.mxu0 0.0
    %750 = vmatprep.subr.mxu0 0.0
    %751 = vmatpush1.msra.mxu0 0.0
    %752 = vmatprep.subr.mxu0 0.0
    %753 = vmatpush1.msra.mxu0 0.0
    %754 = vmatprep.subr.mxu0 0.0
    %755 = vmatpush1.msra.mxu0 0.0
    %756 = vmatprep.mubr.f32.mxu0 0.0
    %757 = vmatmul.mubr.f32.gmra.mrb[0].mxu0 %v690
    %v758 = vpop.f32.mrb[0].mxu0
    %v759 = vadd.f32 0.0, %v758
    %v760 = vpop.f32.mrb[0].mxu0
    %v761 = vadd.f32 0.0, %v760
    %762 = vdwg.mxu0
    %v763 = vld [vmem:[#allocation2] sm:$0x30]
    %v765 = vrot.slane %v759, 4
    %v767 = vadd.f32 %v763, %v765
    %v768 = vld [vmem:[#allocation2 + $0x18] sm:$0xc]
    %v770 = vrot.slane %v761, 6
    %v772 = vadd.f32 %v768, %v770
    %v773 = vxor.u32 %v767, 2147483648
    %v774 = vmul.f32 %v773, 1.442695
    %v775 = vpow.pop %v774
    %v776 = vadd.f32 %v775, 1.0
    %v777 = vrcp.pop %v776
    %v778 = vmul.f32 1.0, %v777
    %v779 = vtanh.pop %v767
    %v781 = vrot.slane %v687, 6
    %782 = vrot.lane.b32.xlu0 %v781, 32
    %v783 = vpop.permute.xlu0 %782
    %v785 = vmul.f32 %v778, %v783
    %787 = vrot.lane.b32.xlu0 %v779, 64
    %v788 = vpop.permute.xlu0 %787
    %v790 = vmul.f32 %v778, %v788
    %792 = vrot.lane.b32.xlu0 %v790, 32
    %v793 = vpop.permute.xlu0 %792
    %v795 = vadd.f32 %v785, %v793
    %v796 = vtanh.pop %v795
    %798 = vrot.lane.b32.xlu0 %v796, 64
    %v799 = vpop.permute.xlu0 %798
    %v801 = vmul.f32 %v778, %v799
    %v802 = vxor.u32 %v772, 2147483648
    %v803 = vmul.f32 %v802, 1.442695
    %v804 = vpow.pop %v803
    %v805 = vadd.f32 %v804, 1.0
    %v806 = vrcp.pop %v805
    %v807 = vmul.f32 1.0, %v806
    %v808 = vtanh.pop %v772
    %v809 = vmul.f32 %v807, %v687
    %811 = vrot.lane.b32.xlu0 %v808, 64
    %v812 = vpop.permute.xlu0 %811
    %v814 = vmul.f32 %v807, %v812
    %816 = vrot.lane.b32.xlu0 %v814, 32
    %v817 = vpop.permute.xlu0 %816
    %v819 = vadd.f32 %v809, %v817
    %v820 = vtanh.pop %v819
    %822 = vrot.lane.b32.xlu0 %v820, 64
    %v823 = vpop.permute.xlu0 %822
    %v825 = vmul.f32 %v807, %v823
    %827 = vrot.lane.b32.xlu0 %v801, 32
    %v828 = vpop.permute.xlu0 %827
    %vm830 = vcmask 259076
    %831 = vst.msk [vmem:[#allocation3] sm:$0x30] %vm830, %v828
    %833 = vrot.lane.b32.xlu0 %v825, 64
    %v834 = vpop.permute.xlu0 %833
    %vm836 = vcmask 519426
    %837 = vst.msk [vmem:[#allocation3 + $0x8] sm:$0xc] %vm836, %v834
    %v838 = vrot.slane %v825, 6
    %839 = vrot.lane.b32.xlu0 %v838, 64
    %v840 = vpop.permute.xlu0 %839
    %v842 = vsel %vm514, %v828, %v840
    %844 = vrot.lane.b32.xlu0 %v795, 96
    %v845 = vpop.permute.xlu0 %844
    %v848 = vrot.slane %v819, 6
    %v850 = vsel %vm514, %v845, %v848
    %v852 = vrot.slane %v842, 4
    %v853 = vsel %vm368, %v852, 0
    %855 = vmatprep.subr.mxu0 %v353
    %856 = vmatpush1.msra.mxu0 %v352
    %857 = vmatprep.subr.mxu0 %v355
    %858 = vmatpush1.msra.mxu0 %v354
    %859 = vmatprep.subr.mxu0 %v357
    %860 = vmatpush1.msra.mxu0 %v356
    %861 = vmatprep.subr.mxu0 %v359
    %862 = vmatpush1.msra.mxu0 %v358
    %863 = vmatprep.subr.mxu0 %v361
    %864 = vmatpush1.msra.mxu0 %v360
    %865 = vmatprep.subr.mxu0 %v363
    %866 = vmatpush1.msra.mxu0 %v362
    %867 = vmatprep.subr.mxu0 %v365
    %868 = vmatpush1.msra.mxu0 %v364
    %869 = vmatprep.subr.mxu0 %v367
    %870 = vmatpush1.msra.mxu0 %v366
    %871 = vmatprep.subr.mxu0 0.0
    %872 = vmatpush1.msra.mxu0 0.0
    %873 = vmatprep.subr.mxu0 0.0
    %874 = vmatpush1.msra.mxu0 0.0
    %875 = vmatprep.subr.mxu0 0.0
    %876 = vmatpush1.msra.mxu0 0.0
    %877 = vmatprep.subr.mxu0 0.0
    %878 = vmatpush1.msra.mxu0 0.0
    %879 = vmatprep.subr.mxu0 0.0
    %880 = vmatpush1.msra.mxu0 0.0
    %881 = vmatprep.subr.mxu0 0.0
    %882 = vmatpush1.msra.mxu0 0.0
    %883 = vmatprep.subr.mxu0 0.0
    %884 = vmatpush1.msra.mxu0 0.0
    %885 = vmatprep.subr.mxu0 0.0
    %886 = vmatpush1.msra.mxu0 0.0
    %887 = vmatprep.subr.mxu0 0.0
    %888 = vmatpush1.msra.mxu0 0.0
    %889 = vmatprep.subr.mxu0 0.0
    %890 = vmatpush1.msra.mxu0 0.0
    %891 = vmatprep.subr.mxu0 0.0
    %892 = vmatpush1.msra.mxu0 0.0
    %893 = vmatprep.subr.mxu0 0.0
    %894 = vmatpush1.msra.mxu0 0.0
    %895 = vmatprep.subr.mxu0 0.0
    %896 = vmatpush1.msra.mxu0 0.0
    %897 = vmatprep.subr.mxu0 0.0
    %898 = vmatpush1.msra.mxu0 0.0
    %899 = vmatprep.subr.mxu0 0.0
    %900 = vmatpush1.msra.mxu0 0.0
    %901 = vmatprep.subr.mxu0 0.0
    %902 = vmatpush1.msra.mxu0 0.0
    %903 = vmatprep.subr.mxu0 0.0
    %904 = vmatpush1.msra.mxu0 0.0
    %905 = vmatprep.subr.mxu0 0.0
    %906 = vmatpush1.msra.mxu0 0.0
    %907 = vmatprep.subr.mxu0 0.0
    %908 = vmatpush1.msra.mxu0 0.0
    %909 = vmatprep.subr.mxu0 0.0
    %910 = vmatpush1.msra.mxu0 0.0
    %911 = vmatprep.subr.mxu0 0.0
    %912 = vmatpush1.msra.mxu0 0.0
    %913 = vmatprep.subr.mxu0 0.0
    %914 = vmatpush1.msra.mxu0 0.0
    %915 = vmatprep.subr.mxu0 0.0
    %916 = vmatpush1.msra.mxu0 0.0
    %917 = vmatprep.subr.mxu0 0.0
    %918 = vmatpush1.msra.mxu0 0.0
    %919 = vmatprep.mubr.f32.mxu0 0.0
    %920 = vmatmul.mubr.f32.gmra.mrb[0].mxu0 %v853
    %v921 = vpop.f32.mrb[0].mxu0
    %v922 = vadd.f32 0.0, %v921
    %v923 = vpop.f32.mrb[0].mxu0
    %v924 = vadd.f32 0.0, %v923
    %925 = vdwg.mxu0
    %v926 = vld [vmem:[#allocation2] sm:$0xc0]
    %v928 = vrot.slane %v922, 2
    %v930 = vadd.f32 %v926, %v928
    %v931 = vld [vmem:[#allocation2 + $0x18] sm:$0x3]
    %v932 = vadd.f32 %v931, %v924
    %v933 = vxor.u32 %v930, 2147483648
    %v934 = vmul.f32 %v933, 1.442695
    %v935 = vpow.pop %v934
    %v936 = vadd.f32 %v935, 1.0
    %v937 = vrcp.pop %v936
    %v938 = vmul.f32 1.0, %v937
    %v939 = vtanh.pop %v930
    %v941 = vrot.slane %v850, 6
    %942 = vrot.lane.b32.xlu0 %v941, 32
    %v943 = vpop.permute.xlu0 %942
    %v945 = vmul.f32 %v938, %v943
    %947 = vrot.lane.b32.xlu0 %v939, 64
    %v948 = vpop.permute.xlu0 %947
    %v950 = vmul.f32 %v938, %v948
    %952 = vrot.lane.b32.xlu0 %v950, 32
    %v953 = vpop.permute.xlu0 %952
    %v955 = vadd.f32 %v945, %v953
    %v956 = vtanh.pop %v955
    %958 = vrot.lane.b32.xlu0 %v956, 64
    %v959 = vpop.permute.xlu0 %958
    %v961 = vmul.f32 %v938, %v959
    %v962 = vxor.u32 %v932, 2147483648
    %v963 = vmul.f32 %v962, 1.442695
    %v964 = vpow.pop %v963
    %v965 = vadd.f32 %v964, 1.0
    %v966 = vrcp.pop %v965
    %v967 = vmul.f32 1.0, %v966
    %v968 = vtanh.pop %v932
    %v969 = vrot.slane %v850, 4
    %v971 = vmul.f32 %v967, %v969
    %973 = vrot.lane.b32.xlu0 %v968, 64
    %v974 = vpop.permute.xlu0 %973
    %v976 = vmul.f32 %v967, %v974
    %978 = vrot.lane.b32.xlu0 %v976, 32
    %v979 = vpop.permute.xlu0 %978
    %v981 = vadd.f32 %v971, %v979
    %v982 = vtanh.pop %v981
    %984 = vrot.lane.b32.xlu0 %v982, 64
    %v985 = vpop.permute.xlu0 %984
    %v987 = vmul.f32 %v967, %v985
    %989 = vrot.lane.b32.xlu0 %v961, 32
    %v990 = vpop.permute.xlu0 %989
    %vm992 = vcmask 261126
    %993 = vst.msk [vmem:[#allocation3] sm:$0xc0] %vm992, %v990
    %995 = vrot.lane.b32.xlu0 %v987, 64
    %v996 = vpop.permute.xlu0 %995
    %vm998 = vcmask 517376
    %999 = vst.msk [vmem:[#allocation3 + $0x8] sm:$0x3] %vm998, %v996
    %v1000 = vrot.slane %v987, 2
    %1001 = vrot.lane.b32.xlu0 %v1000, 64
    %v1002 = vpop.permute.xlu0 %1001
    %v1004 = vsel %vm514, %v990, %v1002
    %1006 = vrot.lane.b32.xlu0 %v955, 96
    %v1007 = vpop.permute.xlu0 %1006
    %v1010 = vrot.slane %v981, 2
    %v1012 = vsel %vm514, %v1007, %v1010
    %v1014 = vrot.slane %v1004, 6
    %v1015 = vsel %vm368, %v1014, 0
    %1017 = vmatprep.subr.mxu0 %v353
    %1018 = vmatpush1.msra.mxu0 %v352
    %1019 = vmatprep.subr.mxu0 %v355
    %1020 = vmatpush1.msra.mxu0 %v354
    %1021 = vmatprep.subr.mxu0 %v357
    %1022 = vmatpush1.msra.mxu0 %v356
    %1023 = vmatprep.subr.mxu0 %v359
    %1024 = vmatpush1.msra.mxu0 %v358
    %1025 = vmatprep.subr.mxu0 %v361
    %1026 = vmatpush1.msra.mxu0 %v360
    %1027 = vmatprep.subr.mxu0 %v363
    %1028 = vmatpush1.msra.mxu0 %v362
    %1029 = vmatprep.subr.mxu0 %v365
    %1030 = vmatpush1.msra.mxu0 %v364
    %1031 = vmatprep.subr.mxu0 %v367
    %1032 = vmatpush1.msra.mxu0 %v366
    %1033 = vmatprep.subr.mxu0 0.0
    %1034 = vmatpush1.msra.mxu0 0.0
    %1035 = vmatprep.subr.mxu0 0.0
    %1036 = vmatpush1.msra.mxu0 0.0
    %1037 = vmatprep.subr.mxu0 0.0
    %1038 = vmatpush1.msra.mxu0 0.0
    %1039 = vmatprep.subr.mxu0 0.0
    %1040 = vmatpush1.msra.mxu0 0.0
    %1041 = vmatprep.subr.mxu0 0.0
    %1042 = vmatpush1.msra.mxu0 0.0
    %1043 = vmatprep.subr.mxu0 0.0
    %1044 = vmatpush1.msra.mxu0 0.0
    %1045 = vmatprep.subr.mxu0 0.0
    %1046 = vmatpush1.msra.mxu0 0.0
    %1047 = vmatprep.subr.mxu0 0.0
    %1048 = vmatpush1.msra.mxu0 0.0
    %1049 = vmatprep.subr.mxu0 0.0
    %1050 = vmatpush1.msra.mxu0 0.0
    %1051 = vmatprep.subr.mxu0 0.0
    %1052 = vmatpush1.msra.mxu0 0.0
    %1053 = vmatprep.subr.mxu0 0.0
    %1054 = vmatpush1.msra.mxu0 0.0
    %1055 = vmatprep.subr.mxu0 0.0
    %1056 = vmatpush1.msra.mxu0 0.0
    %1057 = vmatprep.subr.mxu0 0.0
    %1058 = vmatpush1.msra.mxu0 0.0
    %1059 = vmatprep.subr.mxu0 0.0
    %1060 = vmatpush1.msra.mxu0 0.0
    %1061 = vmatprep.subr.mxu0 0.0
    %1062 = vmatpush1.msra.mxu0 0.0
    %1063 = vmatprep.subr.mxu0 0.0
    %1064 = vmatpush1.msra.mxu0 0.0
    %1065 = vmatprep.subr.mxu0 0.0
    %1066 = vmatpush1.msra.mxu0 0.0
    %1067 = vmatprep.subr.mxu0 0.0
    %1068 = vmatpush1.msra.mxu0 0.0
    %1069 = vmatprep.subr.mxu0 0.0
    %1070 = vmatpush1.msra.mxu0 0.0
    %1071 = vmatprep.subr.mxu0 0.0
    %1072 = vmatpush1.msra.mxu0 0.0
    %1073 = vmatprep.subr.mxu0 0.0
    %1074 = vmatpush1.msra.mxu0 0.0
    %1075 = vmatprep.subr.mxu0 0.0
    %1076 = vmatpush1.msra.mxu0 0.0
    %1077 = vmatprep.subr.mxu0 0.0
    %1078 = vmatpush1.msra.mxu0 0.0
    %1079 = vmatprep.subr.mxu0 0.0
    %1080 = vmatpush1.msra.mxu0 0.0
    %1081 = vmatprep.mubr.f32.mxu0 0.0
    %1082 = vmatmul.mubr.f32.gmra.mrb[0].mxu0 %v1015
    %v1083 = vpop.f32.mrb[0].mxu0
    %v1084 = vadd.f32 0.0, %v1083
    %v1085 = vpop.f32.mrb[0].mxu0
    %v1086 = vadd.f32 0.0, %v1085
    %1087 = vdwg.mxu0
    %v1088 = vld [vmem:[#allocation2 + $0x10] sm:$0x3]
    %v1089 = vadd.f32 %v1088, %v1084
    %v1090 = vld [vmem:[#allocation2 + $0x8] sm:$0xc0]
    %v1092 = vrot.slane %v1086, 2
    %v1094 = vadd.f32 %v1090, %v1092
    %v1095 = vxor.u32 %v1089, 2147483648
    %v1096 = vmul.f32 %v1095, 1.442695
    %v1097 = vpow.pop %v1096
    %v1098 = vadd.f32 %v1097, 1.0
    %v1099 = vrcp.pop %v1098
    %v1100 = vmul.f32 1.0, %v1099
    %v1101 = vtanh.pop %v1089
    %v1103 = vrot.slane %v1012, 6
    %1104 = vrot.lane.b32.xlu0 %v1103, 32
    %v1105 = vpop.permute.xlu0 %1104
    %v1107 = vmul.f32 %v1100, %v1105
    %1109 = vrot.lane.b32.xlu0 %v1101, 64
    %v1110 = vpop.permute.xlu0 %1109
    %v1112 = vmul.f32 %v1100, %v1110
    %1114 = vrot.lane.b32.xlu0 %v1112, 32
    %v1115 = vpop.permute.xlu0 %1114
    %v1117 = vadd.f32 %v1107, %v1115
    %v1118 = vtanh.pop %v1117
    %1120 = vrot.lane.b32.xlu0 %v1118, 64
    %v1121 = vpop.permute.xlu0 %1120
    %v1123 = vmul.f32 %v1100, %v1121
    %v1124 = vxor.u32 %v1094, 2147483648
    %v1125 = vmul.f32 %v1124, 1.442695
    %v1126 = vpow.pop %v1125
    %v1127 = vadd.f32 %v1126, 1.0
    %v1128 = vrcp.pop %v1127
    %v1129 = vmul.f32 1.0, %v1128
    %v1130 = vtanh.pop %v1094
    %v1131 = vmul.f32 %v1129, %v1012
    %1133 = vrot.lane.b32.xlu0 %v1130, 64
    %v1134 = vpop.permute.xlu0 %1133
    %v1136 = vmul.f32 %v1129, %v1134
    %1138 = vrot.lane.b32.xlu0 %v1136, 32
    %v1139 = vpop.permute.xlu0 %1138
    %v1141 = vadd.f32 %v1131, %v1139
    %v1142 = vtanh.pop %v1141
    %1144 = vrot.lane.b32.xlu0 %v1142, 64
    %v1145 = vpop.permute.xlu0 %1144
    %v1147 = vmul.f32 %v1129, %v1145
    %1149 = vrot.lane.b32.xlu0 %v1123, 32
    %v1150 = vpop.permute.xlu0 %1149
    %1152 = vst.msk [vmem:[#allocation3 + $0x8] sm:$0x3] %vm502, %v1150
    %1154 = vrot.lane.b32.xlu0 %v1147, 64
    %v1155 = vpop.permute.xlu0 %1154
    %1157 = vst.msk [vmem:[#allocation3] sm:$0xc0] %vm508, %v1155
    %v1158 = vrot.slane %v1147, 6
    %1159 = vrot.lane.b32.xlu0 %v1158, 64
    %v1160 = vpop.permute.xlu0 %1159
    %v1162 = vsel %vm514, %v1150, %v1160
    %1164 = vrot.lane.b32.xlu0 %v1117, 96
    %v1165 = vpop.permute.xlu0 %1164
    %v1168 = vrot.slane %v1141, 6
    %v1170 = vsel %vm514, %v1165, %v1168
    %v1172 = vsel %vm368, %v1162, 0
    %1174 = vmatprep.subr.mxu0 %v353
    %1175 = vmatpush1.msra.mxu0 %v352
    %1176 = vmatprep.subr.mxu0 %v355
    %1177 = vmatpush1.msra.mxu0 %v354
    %1178 = vmatprep.subr.mxu0 %v357
    %1179 = vmatpush1.msra.mxu0 %v356
    %1180 = vmatprep.subr.mxu0 %v359
    %1181 = vmatpush1.msra.mxu0 %v358
    %1182 = vmatprep.subr.mxu0 %v361
    %1183 = vmatpush1.msra.mxu0 %v360
    %1184 = vmatprep.subr.mxu0 %v363
    %1185 = vmatpush1.msra.mxu0 %v362
    %1186 = vmatprep.subr.mxu0 %v365
    %1187 = vmatpush1.msra.mxu0 %v364
    %1188 = vmatprep.subr.mxu0 %v367
    %1189 = vmatpush1.msra.mxu0 %v366
    %1190 = vmatprep.subr.mxu0 0.0
    %1191 = vmatpush1.msra.mxu0 0.0
    %1192 = vmatprep.subr.mxu0 0.0
    %1193 = vmatpush1.msra.mxu0 0.0
    %1194 = vmatprep.subr.mxu0 0.0
    %1195 = vmatpush1.msra.mxu0 0.0
    %1196 = vmatprep.subr.mxu0 0.0
    %1197 = vmatpush1.msra.mxu0 0.0
    %1198 = vmatprep.subr.mxu0 0.0
    %1199 = vmatpush1.msra.mxu0 0.0
    %1200 = vmatprep.subr.mxu0 0.0
    %1201 = vmatpush1.msra.mxu0 0.0
    %1202 = vmatprep.subr.mxu0 0.0
    %1203 = vmatpush1.msra.mxu0 0.0
    %1204 = vmatprep.subr.mxu0 0.0
    %1205 = vmatpush1.msra.mxu0 0.0
    %1206 = vmatprep.subr.mxu0 0.0
    %1207 = vmatpush1.msra.mxu0 0.0
    %1208 = vmatprep.subr.mxu0 0.0
    %1209 = vmatpush1.msra.mxu0 0.0
    %1210 = vmatprep.subr.mxu0 0.0
    %1211 = vmatpush1.msra.mxu0 0.0
    %1212 = vmatprep.subr.mxu0 0.0
    %1213 = vmatpush1.msra.mxu0 0.0
    %1214 = vmatprep.subr.mxu0 0.0
    %1215 = vmatpush1.msra.mxu0 0.0
    %1216 = vmatprep.subr.mxu0 0.0
    %1217 = vmatpush1.msra.mxu0 0.0
    %1218 = vmatprep.subr.mxu0 0.0
    %1219 = vmatpush1.msra.mxu0 0.0
    %1220 = vmatprep.subr.mxu0 0.0
    %1221 = vmatpush1.msra.mxu0 0.0
    %1222 = vmatprep.subr.mxu0 0.0
    %1223 = vmatpush1.msra.mxu0 0.0
    %1224 = vmatprep.subr.mxu0 0.0
    %1225 = vmatpush1.msra.mxu0 0.0
    %1226 = vmatprep.subr.mxu0 0.0
    %1227 = vmatpush1.msra.mxu0 0.0
    %1228 = vmatprep.subr.mxu0 0.0
    %1229 = vmatpush1.msra.mxu0 0.0
    %1230 = vmatprep.subr.mxu0 0.0
    %1231 = vmatpush1.msra.mxu0 0.0
    %1232 = vmatprep.subr.mxu0 0.0
    %1233 = vmatpush1.msra.mxu0 0.0
    %1234 = vmatprep.subr.mxu0 0.0
    %1235 = vmatpush1.msra.mxu0 0.0
    %1236 = vmatprep.subr.mxu0 0.0
    %1237 = vmatpush1.msra.mxu0 0.0
    %1238 = vmatprep.mubr.f32.mxu0 0.0
    %1239 = vmatmul.mubr.f32.gmra.mrb[0].mxu0 %v1172
    %v1240 = vpop.f32.mrb[0].mxu0
    %v1241 = vadd.f32 0.0, %v1240
    %v1242 = vpop.f32.mrb[0].mxu0
    %v1243 = vadd.f32 0.0, %v1242
    %1244 = vdwg.mxu0
    %v1245 = vld [vmem:[#allocation2 + $0x10] sm:$0xc]
    %v1247 = vrot.slane %v1241, 6
    %v1249 = vadd.f32 %v1245, %v1247
    %v1250 = vld [vmem:[#allocation2 + $0x8] sm:$0x30]
    %v1252 = vrot.slane %v1243, 4
    %v1254 = vadd.f32 %v1250, %v1252
    %v1255 = vxor.u32 %v1249, 2147483648
    %v1256 = vmul.f32 %v1255, 1.442695
    %v1257 = vpow.pop %v1256
    %v1258 = vadd.f32 %v1257, 1.0
    %v1259 = vrcp.pop %v1258
    %v1260 = vmul.f32 1.0, %v1259
    %v1261 = vtanh.pop %v1249
    %v1263 = vrot.slane %v1170, 6
    %1264 = vrot.lane.b32.xlu0 %v1263, 32
    %v1265 = vpop.permute.xlu0 %1264
    %v1267 = vmul.f32 %v1260, %v1265
    %1269 = vrot.lane.b32.xlu0 %v1261, 64
    %v1270 = vpop.permute.xlu0 %1269
    %v1272 = vmul.f32 %v1260, %v1270
    %1274 = vrot.lane.b32.xlu0 %v1272, 32
    %v1275 = vpop.permute.xlu0 %1274
    %v1277 = vadd.f32 %v1267, %v1275
    %v1278 = vtanh.pop %v1277
    %1280 = vrot.lane.b32.xlu0 %v1278, 64
    %v1281 = vpop.permute.xlu0 %1280
    %v1283 = vmul.f32 %v1260, %v1281
    %v1284 = vxor.u32 %v1254, 2147483648
    %v1285 = vmul.f32 %v1284, 1.442695
    %v1286 = vpow.pop %v1285
    %v1287 = vadd.f32 %v1286, 1.0
    %v1288 = vrcp.pop %v1287
    %v1289 = vmul.f32 1.0, %v1288
    %v1290 = vtanh.pop %v1254
    %v1291 = vrot.slane %v1170, 4
    %v1293 = vmul.f32 %v1289, %v1291
    %1295 = vrot.lane.b32.xlu0 %v1290, 64
    %v1296 = vpop.permute.xlu0 %1295
    %v1298 = vmul.f32 %v1289, %v1296
    %1300 = vrot.lane.b32.xlu0 %v1298, 32
    %v1301 = vpop.permute.xlu0 %1300
    %v1303 = vadd.f32 %v1293, %v1301
    %v1304 = vtanh.pop %v1303
    %1306 = vrot.lane.b32.xlu0 %v1304, 64
    %v1307 = vpop.permute.xlu0 %1306
    %v1309 = vmul.f32 %v1289, %v1307
    %1311 = vrot.lane.b32.xlu0 %v1283, 32
    %v1312 = vpop.permute.xlu0 %1311
    %1314 = vst.msk [vmem:[#allocation3 + $0x8] sm:$0xc] %vm667, %v1312
    %1316 = vrot.lane.b32.xlu0 %v1309, 64
    %v1317 = vpop.permute.xlu0 %1316
    %1319 = vst.msk [vmem:[#allocation3] sm:$0x30] %vm673, %v1317
    %v1320 = vrot.slane %v1309, 2
    %1321 = vrot.lane.b32.xlu0 %v1320, 64
    %v1322 = vpop.permute.xlu0 %1321
    %v1324 = vsel %vm514, %v1312, %v1322
    %1326 = vrot.lane.b32.xlu0 %v1277, 96
    %v1327 = vpop.permute.xlu0 %1326
    %v1330 = vrot.slane %v1303, 2
    %v1332 = vsel %vm514, %v1327, %v1330
    %v1334 = vrot.slane %v1324, 2
    %v1335 = vsel %vm368, %v1334, 0
    %1337 = vmatprep.subr.mxu0 %v353
    %1338 = vmatpush1.msra.mxu0 %v352
    %1339 = vmatprep.subr.mxu0 %v355
    %1340 = vmatpush1.msra.mxu0 %v354
    %1341 = vmatprep.subr.mxu0 %v357
    %1342 = vmatpush1.msra.mxu0 %v356
    %1343 = vmatprep.subr.mxu0 %v359
    %1344 = vmatpush1.msra.mxu0 %v358
    %1345 = vmatprep.subr.mxu0 %v361
    %1346 = vmatpush1.msra.mxu0 %v360
    %1347 = vmatprep.subr.mxu0 %v363
    %1348 = vmatpush1.msra.mxu0 %v362
    %1349 = vmatprep.subr.mxu0 %v365
    %1350 = vmatpush1.msra.mxu0 %v364
    %1351 = vmatprep.subr.mxu0 %v367
    %1352 = vmatpush1.msra.mxu0 %v366
    %1353 = vmatprep.subr.mxu0 0.0
    %1354 = vmatpush1.msra.mxu0 0.0
    %1355 = vmatprep.subr.mxu0 0.0
    %1356 = vmatpush1.msra.mxu0 0.0
    %1357 = vmatprep.subr.mxu0 0.0
    %1358 = vmatpush1.msra.mxu0 0.0
    %1359 = vmatprep.subr.mxu0 0.0
    %1360 = vmatpush1.msra.mxu0 0.0
    %1361 = vmatprep.subr.mxu0 0.0
    %1362 = vmatpush1.msra.mxu0 0.0
    %1363 = vmatprep.subr.mxu0 0.0
    %1364 = vmatpush1.msra.mxu0 0.0
    %1365 = vmatprep.subr.mxu0 0.0
    %1366 = vmatpush1.msra.mxu0 0.0
    %1367 = vmatprep.subr.mxu0 0.0
    %1368 = vmatpush1.msra.mxu0 0.0
    %1369 = vmatprep.subr.mxu0 0.0
    %1370 = vmatpush1.msra.mxu0 0.0
    %1371 = vmatprep.subr.mxu0 0.0
    %1372 = vmatpush1.msra.mxu0 0.0
    %1373 = vmatprep.subr.mxu0 0.0
    %1374 = vmatpush1.msra.mxu0 0.0
    %1375 = vmatprep.subr.mxu0 0.0
    %1376 = vmatpush1.msra.mxu0 0.0
    %1377 = vmatprep.subr.mxu0 0.0
    %1378 = vmatpush1.msra.mxu0 0.0
    %1379 = vmatprep.subr.mxu0 0.0
    %1380 = vmatpush1.msra.mxu0 0.0
    %1381 = vmatprep.subr.mxu0 0.0
    %1382 = vmatpush1.msra.mxu0 0.0
    %1383 = vmatprep.subr.mxu0 0.0
    %1384 = vmatpush1.msra.mxu0 0.0
    %1385 = vmatprep.subr.mxu0 0.0
    %1386 = vmatpush1.msra.mxu0 0.0
    %1387 = vmatprep.subr.mxu0 0.0
    %1388 = vmatpush1.msra.mxu0 0.0
    %1389 = vmatprep.subr.mxu0 0.0
    %1390 = vmatpush1.msra.mxu0 0.0
    %1391 = vmatprep.subr.mxu0 0.0
    %1392 = vmatpush1.msra.mxu0 0.0
    %1393 = vmatprep.subr.mxu0 0.0
    %1394 = vmatpush1.msra.mxu0 0.0
    %1395 = vmatprep.subr.mxu0 0.0
    %1396 = vmatpush1.msra.mxu0 0.0
    %1397 = vmatprep.subr.mxu0 0.0
    %1398 = vmatpush1.msra.mxu0 0.0
    %1399 = vmatprep.subr.mxu0 0.0
    %1400 = vmatpush1.msra.mxu0 0.0
    %1401 = vmatprep.mubr.f32.mxu0 0.0
    %1402 = vmatmul.mubr.f32.gmra.mrb[0].mxu0 %v1335
    %v1403 = vpop.f32.mrb[0].mxu0
    %v1404 = vadd.f32 0.0, %v1403
    %v1405 = vpop.f32.mrb[0].mxu0
    %v1406 = vadd.f32 0.0, %v1405
    %1407 = vdwg.mxu0
    %v1408 = vld [vmem:[#allocation2 + $0x10] sm:$0x30]
    %v1410 = vrot.slane %v1404, 4
    %v1412 = vadd.f32 %v1408, %v1410
    %v1413 = vld [vmem:[#allocation2 + $0x8] sm:$0xc]
    %v1415 = vrot.slane %v1406, 6
    %v1417 = vadd.f32 %v1413, %v1415
    %v1418 = vxor.u32 %v1412, 2147483648
    %v1419 = vmul.f32 %v1418, 1.442695
    %v1420 = vpow.pop %v1419
    %v1421 = vadd.f32 %v1420, 1.0
    %v1422 = vrcp.pop %v1421
    %v1423 = vmul.f32 1.0, %v1422
    %v1424 = vtanh.pop %v1412
    %v1426 = vrot.slane %v1332, 6
    %1427 = vrot.lane.b32.xlu0 %v1426, 32
    %v1428 = vpop.permute.xlu0 %1427
    %v1430 = vmul.f32 %v1423, %v1428
    %1432 = vrot.lane.b32.xlu0 %v1424, 64
    %v1433 = vpop.permute.xlu0 %1432
    %v1435 = vmul.f32 %v1423, %v1433
    %1437 = vrot.lane.b32.xlu0 %v1435, 32
    %v1438 = vpop.permute.xlu0 %1437
    %v1440 = vadd.f32 %v1430, %v1438
    %v1441 = vtanh.pop %v1440
    %1443 = vrot.lane.b32.xlu0 %v1441, 64
    %v1444 = vpop.permute.xlu0 %1443
    %v1446 = vmul.f32 %v1423, %v1444
    %v1447 = vxor.u32 %v1417, 2147483648
    %v1448 = vmul.f32 %v1447, 1.442695
    %v1449 = vpow.pop %v1448
    %v1450 = vadd.f32 %v1449, 1.0
    %v1451 = vrcp.pop %v1450
    %v1452 = vmul.f32 1.0, %v1451
    %v1453 = vtanh.pop %v1417
    %v1454 = vmul.f32 %v1452, %v1332
    %1456 = vrot.lane.b32.xlu0 %v1453, 64
    %v1457 = vpop.permute.xlu0 %1456
    %v1459 = vmul.f32 %v1452, %v1457
    %1461 = vrot.lane.b32.xlu0 %v1459, 32
    %v1462 = vpop.permute.xlu0 %1461
    %v1464 = vadd.f32 %v1454, %v1462
    %v1465 = vtanh.pop %v1464
    %1467 = vrot.lane.b32.xlu0 %v1465, 64
    %v1468 = vpop.permute.xlu0 %1467
    %v1470 = vmul.f32 %v1452, %v1468
    %1472 = vrot.lane.b32.xlu0 %v1446, 32
    %v1473 = vpop.permute.xlu0 %1472
    %1475 = vst.msk [vmem:[#allocation3 + $0x8] sm:$0x30] %vm830, %v1473
    %1477 = vrot.lane.b32.xlu0 %v1470, 64
    %v1478 = vpop.permute.xlu0 %1477
    %1480 = vst.msk [vmem:[#allocation3] sm:$0xc] %vm836, %v1478
    %v1481 = vrot.slane %v1470, 6
    %1482 = vrot.lane.b32.xlu0 %v1481, 64
    %v1483 = vpop.permute.xlu0 %1482
    %v1485 = vsel %vm514, %v1473, %v1483
    %1487 = vrot.lane.b32.xlu0 %v1440, 96
    %v1488 = vpop.permute.xlu0 %1487
    %v1491 = vrot.slane %v1464, 6
    %v1493 = vsel %vm514, %v1488, %v1491
    %v1495 = vrot.slane %v1485, 4
    %v1496 = vsel %vm368, %v1495, 0
    %1498 = vmatprep.subr.mxu0 %v353
    %1499 = vmatpush1.msra.mxu0 %v352
    %1500 = vmatprep.subr.mxu0 %v355
    %1501 = vmatpush1.msra.mxu0 %v354
    %1502 = vmatprep.subr.mxu0 %v357
    %1503 = vmatpush1.msra.mxu0 %v356
    %1504 = vmatprep.subr.mxu0 %v359
    %1505 = vmatpush1.msra.mxu0 %v358
    %1506 = vmatprep.subr.mxu0 %v361
    %1507 = vmatpush1.msra.mxu0 %v360
    %1508 = vmatprep.subr.mxu0 %v363
    %1509 = vmatpush1.msra.mxu0 %v362
    %1510 = vmatprep.subr.mxu0 %v365
    %1511 = vmatpush1.msra.mxu0 %v364
    %1512 = vmatprep.subr.mxu0 %v367
    %1513 = vmatpush1.msra.mxu0 %v366
    %1514 = vmatprep.subr.mxu0 0.0
    %1515 = vmatpush1.msra.mxu0 0.0
    %1516 = vmatprep.subr.mxu0 0.0
    %1517 = vmatpush1.msra.mxu0 0.0
    %1518 = vmatprep.subr.mxu0 0.0
    %1519 = vmatpush1.msra.mxu0 0.0
    %1520 = vmatprep.subr.mxu0 0.0
    %1521 = vmatpush1.msra.mxu0 0.0
    %1522 = vmatprep.subr.mxu0 0.0
    %1523 = vmatpush1.msra.mxu0 0.0
    %1524 = vmatprep.subr.mxu0 0.0
    %1525 = vmatpush1.msra.mxu0 0.0
    %1526 = vmatprep.subr.mxu0 0.0
    %1527 = vmatpush1.msra.mxu0 0.0
    %1528 = vmatprep.subr.mxu0 0.0
    %1529 = vmatpush1.msra.mxu0 0.0
    %1530 = vmatprep.subr.mxu0 0.0
    %1531 = vmatpush1.msra.mxu0 0.0
    %1532 = vmatprep.subr.mxu0 0.0
    %1533 = vmatpush1.msra.mxu0 0.0
    %1534 = vmatprep.subr.mxu0 0.0
    %1535 = vmatpush1.msra.mxu0 0.0
    %1536 = vmatprep.subr.mxu0 0.0
    %1537 = vmatpush1.msra.mxu0 0.0
    %1538 = vmatprep.subr.mxu0 0.0
    %1539 = vmatpush1.msra.mxu0 0.0
    %1540 = vmatprep.subr.mxu0 0.0
    %1541 = vmatpush1.msra.mxu0 0.0
    %1542 = vmatprep.subr.mxu0 0.0
    %1543 = vmatpush1.msra.mxu0 0.0
    %1544 = vmatprep.subr.mxu0 0.0
    %1545 = vmatpush1.msra.mxu0 0.0
    %1546 = vmatprep.subr.mxu0 0.0
    %1547 = vmatpush1.msra.mxu0 0.0
    %1548 = vmatprep.subr.mxu0 0.0
    %1549 = vmatpush1.msra.mxu0 0.0
    %1550 = vmatprep.subr.mxu0 0.0
    %1551 = vmatpush1.msra.mxu0 0.0
    %1552 = vmatprep.subr.mxu0 0.0
    %1553 = vmatpush1.msra.mxu0 0.0
    %1554 = vmatprep.subr.mxu0 0.0
    %1555 = vmatpush1.msra.mxu0 0.0
    %1556 = vmatprep.subr.mxu0 0.0
    %1557 = vmatpush1.msra.mxu0 0.0
    %1558 = vmatprep.subr.mxu0 0.0
    %1559 = vmatpush1.msra.mxu0 0.0
    %1560 = vmatprep.subr.mxu0 0.0
    %1561 = vmatpush1.msra.mxu0 0.0
    %1562 = vmatprep.mubr.f32.mxu0 0.0
    %1563 = vmatmul.mubr.f32.gmra.mrb[0].mxu0 %v1496
    %v1564 = vpop.f32.mrb[0].mxu0
    %v1565 = vadd.f32 0.0, %v1564
    %v1566 = vpop.f32.mrb[0].mxu0
    %v1567 = vadd.f32 0.0, %v1566
    %1568 = vdwg.mxu0
    %v1569 = vld [vmem:[#allocation2 + $0x10] sm:$0xc0]
    %v1571 = vrot.slane %v1565, 2
    %v1573 = vadd.f32 %v1569, %v1571
    %v1574 = vld [vmem:[#allocation2 + $0x8] sm:$0x3]
    %v1575 = vadd.f32 %v1574, %v1567
    %v1576 = vxor.u32 %v1573, 2147483648
    %v1577 = vmul.f32 %v1576, 1.442695
    %v1578 = vpow.pop %v1577
    %v1579 = vadd.f32 %v1578, 1.0
    %v1580 = vrcp.pop %v1579
    %v1581 = vmul.f32 1.0, %v1580
    %v1582 = vtanh.pop %v1573
    %v1584 = vrot.slane %v1493, 6
    %1585 = vrot.lane.b32.xlu0 %v1584, 32
    %v1586 = vpop.permute.xlu0 %1585
    %v1588 = vmul.f32 %v1581, %v1586
    %1590 = vrot.lane.b32.xlu0 %v1582, 64
    %v1591 = vpop.permute.xlu0 %1590
    %v1593 = vmul.f32 %v1581, %v1591
    %1595 = vrot.lane.b32.xlu0 %v1593, 32
    %v1596 = vpop.permute.xlu0 %1595
    %v1598 = vadd.f32 %v1588, %v1596
    %v1599 = vtanh.pop %v1598
    %1601 = vrot.lane.b32.xlu0 %v1599, 64
    %v1602 = vpop.permute.xlu0 %1601
    %v1604 = vmul.f32 %v1581, %v1602
    %v1605 = vxor.u32 %v1575, 2147483648
    %v1606 = vmul.f32 %v1605, 1.442695
    %v1607 = vpow.pop %v1606
    %v1608 = vadd.f32 %v1607, 1.0
    %v1609 = vrcp.pop %v1608
    %v1610 = vmul.f32 1.0, %v1609
    %v1611 = vtanh.pop %v1575
    %v1612 = vrot.slane %v1493, 4
    %v1614 = vmul.f32 %v1610, %v1612
    %1616 = vrot.lane.b32.xlu0 %v1611, 64
    %v1617 = vpop.permute.xlu0 %1616
    %v1619 = vmul.f32 %v1610, %v1617
    %1621 = vrot.lane.b32.xlu0 %v1619, 32
    %v1622 = vpop.permute.xlu0 %1621
    %v1624 = vadd.f32 %v1614, %v1622
    %v1625 = vtanh.pop %v1624
    %1627 = vrot.lane.b32.xlu0 %v1625, 64
    %v1628 = vpop.permute.xlu0 %1627
    %v1630 = vmul.f32 %v1610, %v1628
    %1632 = vrot.lane.b32.xlu0 %v1604, 32
    %v1633 = vpop.permute.xlu0 %1632
    %1635 = vst.msk [vmem:[#allocation3 + $0x8] sm:$0xc0] %vm992, %v1633
    %1637 = vrot.lane.b32.xlu0 %v1630, 64
    %v1638 = vpop.permute.xlu0 %1637
    %1640 = vst.msk [vmem:[#allocation3] sm:$0x3] %vm998, %v1638
    %v1641 = vld [vmem:[#allocation3] sm:$0xff]
    %v1642 = vld [vmem:[#allocation3 + $0x8] sm:$0xff]
    %v1643 = vld [vmem:[%s4] sm:$0xff]
    %v1644 = vld [vmem:[%s4 + $0x8] sm:$0xff]
    %v1645 = vld [vmem:[%s4 + $0x10] sm:$0xff]
    %v1646 = vld [vmem:[%s4 + $0x18] sm:$0xff]
    %v1647 = vld [vmem:[%s4 + $0x20] sm:$0xff]
    %v1648 = vld [vmem:[%s4 + $0x28] sm:$0xff]
    %v1649 = vld [vmem:[%s4 + $0x30] sm:$0xff]
    %v1650 = vld [vmem:[%s4 + $0x38] sm:$0xff]
    %v1651 = vld [vmem:[%s4 + $0x40] sm:$0xff]
    %v1652 = vld [vmem:[%s4 + $0x48] sm:$0xff]
    %v1653 = vld [vmem:[%s4 + $0x50] sm:$0xff]
    %v1654 = vld [vmem:[%s4 + $0x58] sm:$0xff]
    %v1655 = vld [vmem:[%s4 + $0x60] sm:$0xff]
    %v1656 = vld [vmem:[%s4 + $0x68] sm:$0xff]
    %v1657 = vld [vmem:[%s4 + $0x70] sm:$0xff]
    %v1658 = vld [vmem:[%s4 + $0x78] sm:$0xff]
    %v1659 = vld [vmem:[%s6] sm:$0x3]
    %v1661 = vlaneseq
    %v1662 = vshrl.u32 %v1661, 7
    %v1663 = vsub.s32 0, %v1662
    %v1664 = vrot.slane %v1659, %v1663
    %v1665 = vlaneseq
    %v1666 = vshrl.u32 %v1665, 7
    %v1667 = vsub.s32 1, %v1666
    %v1668 = vrot.slane %v1659, %v1667
    %v1672 = vsel %vm368, %v1641, 0
    %v1675 = vsel %vm368, %v1642, 0
    %1677 = vmatprep.subr.mxu0 %v1644
    %1678 = vmatpush1.msra.mxu0 %v1643
    %1679 = vmatprep.subr.mxu0 %v1646
    %1680 = vmatpush1.msra.mxu0 %v1645
    %1681 = vmatprep.subr.mxu0 %v1648
    %1682 = vmatpush1.msra.mxu0 %v1647
    %1683 = vmatprep.subr.mxu0 %v1650
    %1684 = vmatpush1.msra.mxu0 %v1649
    %1685 = vmatprep.subr.mxu0 %v1652
    %1686 = vmatpush1.msra.mxu0 %v1651
    %1687 = vmatprep.subr.mxu0 %v1654
    %1688 = vmatpush1.msra.mxu0 %v1653
    %1689 = vmatprep.subr.mxu0 %v1656
    %1690 = vmatpush1.msra.mxu0 %v1655
    %1691 = vmatprep.subr.mxu0 %v1658
    %1692 = vmatpush1.msra.mxu0 %v1657
    %1693 = vmatprep.subr.mxu0 0.0
    %1694 = vmatpush1.msra.mxu0 0.0
    %1695 = vmatprep.subr.mxu0 0.0
    %1696 = vmatpush1.msra.mxu0 0.0
    %1697 = vmatprep.subr.mxu0 0.0
    %1698 = vmatpush1.msra.mxu0 0.0
    %1699 = vmatprep.subr.mxu0 0.0
    %1700 = vmatpush1.msra.mxu0 0.0
    %1701 = vmatprep.subr.mxu0 0.0
    %1702 = vmatpush1.msra.mxu0 0.0
    %1703 = vmatprep.subr.mxu0 0.0
    %1704 = vmatpush1.msra.mxu0 0.0
    %1705 = vmatprep.subr.mxu0 0.0
    %1706 = vmatpush1.msra.mxu0 0.0
    %1707 = vmatprep.subr.mxu0 0.0
    %1708 = vmatpush1.msra.mxu0 0.0
    %1709 = vmatprep.subr.mxu0 0.0
    %1710 = vmatpush1.msra.mxu0 0.0
    %1711 = vmatprep.subr.mxu0 0.0
    %1712 = vmatpush1.msra.mxu0 0.0
    %1713 = vmatprep.subr.mxu0 0.0
    %1714 = vmatpush1.msra.mxu0 0.0
    %1715 = vmatprep.subr.mxu0 0.0
    %1716 = vmatpush1.msra.mxu0 0.0
    %1717 = vmatprep.subr.mxu0 0.0
    %1718 = vmatpush1.msra.mxu0 0.0
    %1719 = vmatprep.subr.mxu0 0.0
    %1720 = vmatpush1.msra.mxu0 0.0
    %1721 = vmatprep.subr.mxu0 0.0
    %1722 = vmatpush1.msra.mxu0 0.0
    %1723 = vmatprep.subr.mxu0 0.0
    %1724 = vmatpush1.msra.mxu0 0.0
    %1725 = vmatprep.subr.mxu0 0.0
    %1726 = vmatpush1.msra.mxu0 0.0
    %1727 = vmatprep.subr.mxu0 0.0
    %1728 = vmatpush1.msra.mxu0 0.0
    %1729 = vmatprep.subr.mxu0 0.0
    %1730 = vmatpush1.msra.mxu0 0.0
    %1731 = vmatprep.subr.mxu0 0.0
    %1732 = vmatpush1.msra.mxu0 0.0
    %1733 = vmatprep.subr.mxu0 0.0
    %1734 = vmatpush1.msra.mxu0 0.0
    %1735 = vmatprep.subr.mxu0 0.0
    %1736 = vmatpush1.msra.mxu0 0.0
    %1737 = vmatprep.subr.mxu0 0.0
    %1738 = vmatpush1.msra.mxu0 0.0
    %1739 = vmatprep.subr.mxu0 0.0
    %1740 = vmatpush1.msra.mxu0 0.0
    %1741 = vmatprep.mubr.f32.mxu0 0.0
    %1742 = vmatmul.mubr.f32.gmra.mrb[0].mxu0 %v1672
    %v1743 = vpop.f32.mrb[0].mxu0
    %v1744 = vadd.f32 %v1664, %v1743
    %v1745 = vpop.f32.mrb[0].mxu0
    %v1746 = vadd.f32 %v1668, %v1745
    %1747 = vmatprep.mubr.f32.mxu0 0.0
    %1748 = vmatmul.mubr.f32.gmra.mrb[0].mxu0 %v1675
    %v1749 = vpop.f32.mrb[0].mxu0
    %v1750 = vadd.f32 %v1664, %v1749
    %v1751 = vpop.f32.mrb[0].mxu0
    %v1752 = vadd.f32 %v1668, %v1751
    %1753 = vdwg.mxu0
    %1754 = vst [vmem:[#allocation2] sm:$0xff] %v1744
    %1755 = vst [vmem:[#allocation2 + $0x8] sm:$0xff] %v1746
    %1756 = vst [vmem:[#allocation2 + $0x10] sm:$0xff] %v1750
    %1757 = vst [vmem:[#allocation2 + $0x18] sm:$0xff] %v1752
    %v1758 = vld [vmem:[#allocation7] sm:$0xff]
    %v1759 = vld [vmem:[#allocation7 + $0x8] sm:$0xff]
    %v1760 = vld [vmem:[#allocation7 + $0x10] sm:$0xff]
    %v1761 = vld [vmem:[#allocation7 + $0x18] sm:$0xff]
    %v1762 = vld [vmem:[#allocation7 + $0x20] sm:$0xff]
    %v1763 = vld [vmem:[#allocation7 + $0x28] sm:$0xff]
    %v1764 = vld [vmem:[#allocation7 + $0x30] sm:$0xff]
    %v1765 = vld [vmem:[#allocation7 + $0x38] sm:$0xff]
    %v1766 = vld [vmem:[#allocation7 + $0x40] sm:$0xff]
    %v1767 = vld [vmem:[#allocation7 + $0x48] sm:$0xff]
    %v1768 = vld [vmem:[#allocation7 + $0x50] sm:$0xff]
    %v1769 = vld [vmem:[#allocation7 + $0x58] sm:$0xff]
    %v1770 = vld [vmem:[#allocation7 + $0x60] sm:$0xff]
    %v1771 = vld [vmem:[#allocation7 + $0x68] sm:$0xff]
    %v1772 = vld [vmem:[#allocation7 + $0x70] sm:$0xff]
    %v1773 = vld [vmem:[#allocation7 + $0x78] sm:$0xff]
    %1774 = vmatprep.subr.mxu0 %v1759
    %1775 = vmatpush1.msra.mxu0 %v1758
    %1776 = vmatprep.subr.mxu0 %v1761
    %1777 = vmatpush1.msra.mxu0 %v1760
    %1778 = vmatprep.subr.mxu0 %v1763
    %1779 = vmatpush1.msra.mxu0 %v1762
    %1780 = vmatprep.subr.mxu0 %v1765
    %1781 = vmatpush1.msra.mxu0 %v1764
    %1782 = vmatprep.subr.mxu0 %v1767
    %1783 = vmatpush1.msra.mxu0 %v1766
    %1784 = vmatprep.subr.mxu0 %v1769
    %1785 = vmatpush1.msra.mxu0 %v1768
    %1786 = vmatprep.subr.mxu0 %v1771
    %1787 = vmatpush1.msra.mxu0 %v1770
    %1788 = vmatprep.subr.mxu0 %v1773
    %1789 = vmatpush1.msra.mxu0 %v1772
    %1790 = vmatprep.subr.mxu0 0.0
    %1791 = vmatpush1.msra.mxu0 0.0
    %1792 = vmatprep.subr.mxu0 0.0
    %1793 = vmatpush1.msra.mxu0 0.0
    %1794 = vmatprep.subr.mxu0 0.0
    %1795 = vmatpush1.msra.mxu0 0.0
    %1796 = vmatprep.subr.mxu0 0.0
    %1797 = vmatpush1.msra.mxu0 0.0
    %1798 = vmatprep.subr.mxu0 0.0
    %1799 = vmatpush1.msra.mxu0 0.0
    %1800 = vmatprep.subr.mxu0 0.0
    %1801 = vmatpush1.msra.mxu0 0.0
    %1802 = vmatprep.subr.mxu0 0.0
    %1803 = vmatpush1.msra.mxu0 0.0
    %1804 = vmatprep.subr.mxu0 0.0
    %1805 = vmatpush1.msra.mxu0 0.0
    %1806 = vmatprep.subr.mxu0 0.0
    %1807 = vmatpush1.msra.mxu0 0.0
    %1808 = vmatprep.subr.mxu0 0.0
    %1809 = vmatpush1.msra.mxu0 0.0
    %1810 = vmatprep.subr.mxu0 0.0
    %1811 = vmatpush1.msra.mxu0 0.0
    %1812 = vmatprep.subr.mxu0 0.0
    %1813 = vmatpush1.msra.mxu0 0.0
    %1814 = vmatprep.subr.mxu0 0.0
    %1815 = vmatpush1.msra.mxu0 0.0
    %1816 = vmatprep.subr.mxu0 0.0
    %1817 = vmatpush1.msra.mxu0 0.0
    %1818 = vmatprep.subr.mxu0 0.0
    %1819 = vmatpush1.msra.mxu0 0.0
    %1820 = vmatprep.subr.mxu0 0.0
    %1821 = vmatpush1.msra.mxu0 0.0
    %1822 = vmatprep.subr.mxu0 0.0
    %1823 = vmatpush1.msra.mxu0 0.0
    %1824 = vmatprep.subr.mxu0 0.0
    %1825 = vmatpush1.msra.mxu0 0.0
    %1826 = vmatprep.subr.mxu0 0.0
    %1827 = vmatpush1.msra.mxu0 0.0
    %1828 = vmatprep.subr.mxu0 0.0
    %1829 = vmatpush1.msra.mxu0 0.0
    %1830 = vmatprep.subr.mxu0 0.0
    %1831 = vmatpush1.msra.mxu0 0.0
    %1832 = vmatprep.subr.mxu0 0.0
    %1833 = vmatpush1.msra.mxu0 0.0
    %1834 = vmatprep.subr.mxu0 0.0
    %1835 = vmatpush1.msra.mxu0 0.0
    %1836 = vmatprep.subr.mxu0 0.0
    %1837 = vmatpush1.msra.mxu0 0.0
    %1838 = vmatprep.mubr.f32.mxu0 0.0
    %1839 = vmatmul.mubr.f32.gmra.mrb[0].mxu0 %v370
    %v1840 = vpop.f32.mrb[0].mxu0
    %v1841 = vadd.f32 0.0, %v1840
    %v1842 = vpop.f32.mrb[0].mxu0
    %v1843 = vadd.f32 0.0, %v1842
    %1844 = vdwg.mxu0
    %v1845 = vld [vmem:[#allocation2] sm:$0x3]
    %v1846 = vadd.f32 %v1845, %v1841
    %v1847 = vld [vmem:[#allocation2 + $0x18] sm:$0xc0]
    %v1849 = vrot.slane %v1843, 2
    %v1851 = vadd.f32 %v1847, %v1849
    %v1852 = vxor.u32 %v1846, 2147483648
    %v1853 = vmul.f32 %v1852, 1.442695
    %v1854 = vpow.pop %v1853
    %v1855 = vadd.f32 %v1854, 1.0
    %v1856 = vrcp.pop %v1855
    %v1857 = vmul.f32 1.0, %v1856
    %v1858 = vtanh.pop %v1846
    %v1859 = vmul.f32 %v1857, 0.0
    %1861 = vrot.lane.b32.xlu0 %v1858, 64
    %v1862 = vpop.permute.xlu0 %1861
    %v1864 = vmul.f32 %v1857, %v1862
    %1866 = vrot.lane.b32.xlu0 %v1864, 32
    %v1867 = vpop.permute.xlu0 %1866
    %v1869 = vadd.f32 %v1859, %v1867
    %v1870 = vtanh.pop %v1869
    %1872 = vrot.lane.b32.xlu0 %v1870, 64
    %v1873 = vpop.permute.xlu0 %1872
    %v1875 = vmul.f32 %v1857, %v1873
    %v1876 = vxor.u32 %v1851, 2147483648
    %v1877 = vmul.f32 %v1876, 1.442695
    %v1878 = vpow.pop %v1877
    %v1879 = vadd.f32 %v1878, 1.0
    %v1880 = vrcp.pop %v1879
    %v1881 = vmul.f32 1.0, %v1880
    %v1882 = vtanh.pop %v1851
    %v1883 = vmul.f32 %v1881, 0.0
    %1885 = vrot.lane.b32.xlu0 %v1882, 64
    %v1886 = vpop.permute.xlu0 %1885
    %v1888 = vmul.f32 %v1881, %v1886
    %1890 = vrot.lane.b32.xlu0 %v1888, 32
    %v1891 = vpop.permute.xlu0 %1890
    %v1893 = vadd.f32 %v1883, %v1891
    %v1894 = vtanh.pop %v1893
    %1896 = vrot.lane.b32.xlu0 %v1894, 64
    %v1897 = vpop.permute.xlu0 %1896
    %v1899 = vmul.f32 %v1881, %v1897
    %1901 = vrot.lane.b32.xlu0 %v1875, 32
    %v1902 = vpop.permute.xlu0 %1901
    %1904 = vst.msk [vmem:[#allocation3] sm:$0x3] %vm502, %v1902
    %1906 = vrot.lane.b32.xlu0 %v1899, 64
    %v1907 = vpop.permute.xlu0 %1906
    %1909 = vst.msk [vmem:[#allocation3 + $0x8] sm:$0xc0] %vm508, %v1907
    %v1910 = vrot.slane %v1899, 6
    %1911 = vrot.lane.b32.xlu0 %v1910, 64
    %v1912 = vpop.permute.xlu0 %1911
    %v1914 = vsel %vm514, %v1902, %v1912
    %1916 = vrot.lane.b32.xlu0 %v1869, 96
    %v1917 = vpop.permute.xlu0 %1916
    %v1920 = vrot.slane %v1893, 6
    %v1922 = vsel %vm514, %v1917, %v1920
    %v1924 = vsel %vm368, %v1914, 0
    %1926 = vmatprep.subr.mxu0 %v1759
    %1927 = vmatpush1.msra.mxu0 %v1758
    %1928 = vmatprep.subr.mxu0 %v1761
    %1929 = vmatpush1.msra.mxu0 %v1760
    %1930 = vmatprep.subr.mxu0 %v1763
    %1931 = vmatpush1.msra.mxu0 %v1762
    %1932 = vmatprep.subr.mxu0 %v1765
    %1933 = vmatpush1.msra.mxu0 %v1764
    %1934 = vmatprep.subr.mxu0 %v1767
    %1935 = vmatpush1.msra.mxu0 %v1766
    %1936 = vmatprep.subr.mxu0 %v1769
    %1937 = vmatpush1.msra.mxu0 %v1768
    %1938 = vmatprep.subr.mxu0 %v1771
    %1939 = vmatpush1.msra.mxu0 %v1770
    %1940 = vmatprep.subr.mxu0 %v1773
    %1941 = vmatpush1.msra.mxu0 %v1772
    %1942 = vmatprep.subr.mxu0 0.0
    %1943 = vmatpush1.msra.mxu0 0.0
    %1944 = vmatprep.subr.mxu0 0.0
    %1945 = vmatpush1.msra.mxu0 0.0
    %1946 = vmatprep.subr.mxu0 0.0
    %1947 = vmatpush1.msra.mxu0 0.0
    %1948 = vmatprep.subr.mxu0 0.0
    %1949 = vmatpush1.msra.mxu0 0.0
    %1950 = vmatprep.subr.mxu0 0.0
    %1951 = vmatpush1.msra.mxu0 0.0
    %1952 = vmatprep.subr.mxu0 0.0
    %1953 = vmatpush1.msra.mxu0 0.0
    %1954 = vmatprep.subr.mxu0 0.0
    %1955 = vmatpush1.msra.mxu0 0.0
    %1956 = vmatprep.subr.mxu0 0.0
    %1957 = vmatpush1.msra.mxu0 0.0
    %1958 = vmatprep.subr.mxu0 0.0
    %1959 = vmatpush1.msra.mxu0 0.0
    %1960 = vmatprep.subr.mxu0 0.0
    %1961 = vmatpush1.msra.mxu0 0.0
    %1962 = vmatprep.subr.mxu0 0.0
    %1963 = vmatpush1.msra.mxu0 0.0
    %1964 = vmatprep.subr.mxu0 0.0
    %1965 = vmatpush1.msra.mxu0 0.0
    %1966 = vmatprep.subr.mxu0 0.0
    %1967 = vmatpush1.msra.mxu0 0.0
    %1968 = vmatprep.subr.mxu0 0.0
    %1969 = vmatpush1.msra.mxu0 0.0
    %1970 = vmatprep.subr.mxu0 0.0
    %1971 = vmatpush1.msra.mxu0 0.0
    %1972 = vmatprep.subr.mxu0 0.0
    %1973 = vmatpush1.msra.mxu0 0.0
    %1974 = vmatprep.subr.mxu0 0.0
    %1975 = vmatpush1.msra.mxu0 0.0
    %1976 = vmatprep.subr.mxu0 0.0
    %1977 = vmatpush1.msra.mxu0 0.0
    %1978 = vmatprep.subr.mxu0 0.0
    %1979 = vmatpush1.msra.mxu0 0.0
    %1980 = vmatprep.subr.mxu0 0.0
    %1981 = vmatpush1.msra.mxu0 0.0
    %1982 = vmatprep.subr.mxu0 0.0
    %1983 = vmatpush1.msra.mxu0 0.0
    %1984 = vmatprep.subr.mxu0 0.0
    %1985 = vmatpush1.msra.mxu0 0.0
    %1986 = vmatprep.subr.mxu0 0.0
    %1987 = vmatpush1.msra.mxu0 0.0
    %1988 = vmatprep.subr.mxu0 0.0
    %1989 = vmatpush1.msra.mxu0 0.0
    %1990 = vmatprep.mubr.f32.mxu0 0.0
    %1991 = vmatmul.mubr.f32.gmra.mrb[0].mxu0 %v1924
    %v1992 = vpop.f32.mrb[0].mxu0
    %v1993 = vadd.f32 0.0, %v1992
    %v1994 = vpop.f32.mrb[0].mxu0
    %v1995 = vadd.f32 0.0, %v1994
    %1996 = vdwg.mxu0
    %v1997 = vld [vmem:[#allocation2] sm:$0xc]
    %v1999 = vrot.slane %v1993, 6
    %v2001 = vadd.f32 %v1997, %v1999
    %v2002 = vld [vmem:[#allocation2 + $0x18] sm:$0x30]
    %v2004 = vrot.slane %v1995, 4
    %v2006 = vadd.f32 %v2002, %v2004
    %v2007 = vxor.u32 %v2001, 2147483648
    %v2008 = vmul.f32 %v2007, 1.442695
    %v2009 = vpow.pop %v2008
    %v2010 = vadd.f32 %v2009, 1.0
    %v2011 = vrcp.pop %v2010
    %v2012 = vmul.f32 1.0, %v2011
    %v2013 = vtanh.pop %v2001
    %v2015 = vrot.slane %v1922, 6
    %2016 = vrot.lane.b32.xlu0 %v2015, 32
    %v2017 = vpop.permute.xlu0 %2016
    %v2019 = vmul.f32 %v2012, %v2017
    %2021 = vrot.lane.b32.xlu0 %v2013, 64
    %v2022 = vpop.permute.xlu0 %2021
    %v2024 = vmul.f32 %v2012, %v2022
    %2026 = vrot.lane.b32.xlu0 %v2024, 32
    %v2027 = vpop.permute.xlu0 %2026
    %v2029 = vadd.f32 %v2019, %v2027
    %v2030 = vtanh.pop %v2029
    %2032 = vrot.lane.b32.xlu0 %v2030, 64
    %v2033 = vpop.permute.xlu0 %2032
    %v2035 = vmul.f32 %v2012, %v2033
    %v2036 = vxor.u32 %v2006, 2147483648
    %v2037 = vmul.f32 %v2036, 1.442695
    %v2038 = vpow.pop %v2037
    %v2039 = vadd.f32 %v2038, 1.0
    %v2040 = vrcp.pop %v2039
    %v2041 = vmul.f32 1.0, %v2040
    %v2042 = vtanh.pop %v2006
    %v2043 = vrot.slane %v1922, 4
    %v2045 = vmul.f32 %v2041, %v2043
    %2047 = vrot.lane.b32.xlu0 %v2042, 64
    %v2048 = vpop.permute.xlu0 %2047
    %v2050 = vmul.f32 %v2041, %v2048
    %2052 = vrot.lane.b32.xlu0 %v2050, 32
    %v2053 = vpop.permute.xlu0 %2052
    %v2055 = vadd.f32 %v2045, %v2053
    %v2056 = vtanh.pop %v2055
    %2058 = vrot.lane.b32.xlu0 %v2056, 64
    %v2059 = vpop.permute.xlu0 %2058
    %v2061 = vmul.f32 %v2041, %v2059
    %2063 = vrot.lane.b32.xlu0 %v2035, 32
    %v2064 = vpop.permute.xlu0 %2063
    %2066 = vst.msk [vmem:[#allocation3] sm:$0xc] %vm667, %v2064
    %2068 = vrot.lane.b32.xlu0 %v2061, 64
    %v2069 = vpop.permute.xlu0 %2068
    %2071 = vst.msk [vmem:[#allocation3 + $0x8] sm:$0x30] %vm673, %v2069
    %v2072 = vrot.slane %v2061, 2
    %2073 = vrot.lane.b32.xlu0 %v2072, 64
    %v2074 = vpop.permute.xlu0 %2073
    %v2076 = vsel %vm514, %v2064, %v2074
    %2078 = vrot.lane.b32.xlu0 %v2029, 96
    %v2079 = vpop.permute.xlu0 %2078
    %v2082 = vrot.slane %v2055, 2
    %v2084 = vsel %vm514, %v2079, %v2082
    %v2086 = vrot.slane %v2076, 2
    %v2087 = vsel %vm368, %v2086, 0
    %2089 = vmatprep.subr.mxu0 %v1759
    %2090 = vmatpush1.msra.mxu0 %v1758
    %2091 = vmatprep.subr.mxu0 %v1761
    %2092 = vmatpush1.msra.mxu0 %v1760
    %2093 = vmatprep.subr.mxu0 %v1763
    %2094 = vmatpush1.msra.mxu0 %v1762
    %2095 = vmatprep.subr.mxu0 %v1765
    %2096 = vmatpush1.msra.mxu0 %v1764
    %2097 = vmatprep.subr.mxu0 %v1767
    %2098 = vmatpush1.msra.mxu0 %v1766
    %2099 = vmatprep.subr.mxu0 %v1769
    %2100 = vmatpush1.msra.mxu0 %v1768
    %2101 = vmatprep.subr.mxu0 %v1771
    %2102 = vmatpush1.msra.mxu0 %v1770
    %2103 = vmatprep.subr.mxu0 %v1773
    %2104 = vmatpush1.msra.mxu0 %v1772
    %2105 = vmatprep.subr.mxu0 0.0
    %2106 = vmatpush1.msra.mxu0 0.0
    %2107 = vmatprep.subr.mxu0 0.0
    %2108 = vmatpush1.msra.mxu0 0.0
    %2109 = vmatprep.subr.mxu0 0.0
    %2110 = vmatpush1.msra.mxu0 0.0
    %2111 = vmatprep.subr.mxu0 0.0
    %2112 = vmatpush1.msra.mxu0 0.0
    %2113 = vmatprep.subr.mxu0 0.0
    %2114 = vmatpush1.msra.mxu0 0.0
    %2115 = vmatprep.subr.mxu0 0.0
    %2116 = vmatpush1.msra.mxu0 0.0
    %2117 = vmatprep.subr.mxu0 0.0
    %2118 = vmatpush1.msra.mxu0 0.0
    %2119 = vmatprep.subr.mxu0 0.0
    %2120 = vmatpush1.msra.mxu0 0.0
    %2121 = vmatprep.subr.mxu0 0.0
    %2122 = vmatpush1.msra.mxu0 0.0
    %2123 = vmatprep.subr.mxu0 0.0
    %2124 = vmatpush1.msra.mxu0 0.0
    %2125 = vmatprep.subr.mxu0 0.0
    %2126 = vmatpush1.msra.mxu0 0.0
    %2127 = vmatprep.subr.mxu0 0.0
    %2128 = vmatpush1.msra.mxu0 0.0
    %2129 = vmatprep.subr.mxu0 0.0
    %2130 = vmatpush1.msra.mxu0 0.0
    %2131 = vmatprep.subr.mxu0 0.0
    %2132 = vmatpush1.msra.mxu0 0.0
    %2133 = vmatprep.subr.mxu0 0.0
    %2134 = vmatpush1.msra.mxu0 0.0
    %2135 = vmatprep.subr.mxu0 0.0
    %2136 = vmatpush1.msra.mxu0 0.0
    %2137 = vmatprep.subr.mxu0 0.0
    %2138 = vmatpush1.msra.mxu0 0.0
    %2139 = vmatprep.subr.mxu0 0.0
    %2140 = vmatpush1.msra.mxu0 0.0
    %2141 = vmatprep.subr.mxu0 0.0
    %2142 = vmatpush1.msra.mxu0 0.0
    %2143 = vmatprep.subr.mxu0 0.0
    %2144 = vmatpush1.msra.mxu0 0.0
    %2145 = vmatprep.subr.mxu0 0.0
    %2146 = vmatpush1.msra.mxu0 0.0
    %2147 = vmatprep.subr.mxu0 0.0
    %2148 = vmatpush1.msra.mxu0 0.0
    %2149 = vmatprep.subr.mxu0 0.0
    %2150 = vmatpush1.msra.mxu0 0.0
    %2151 = vmatprep.subr.mxu0 0.0
    %2152 = vmatpush1.msra.mxu0 0.0
    %2153 = vmatprep.mubr.f32.mxu0 0.0
    %2154 = vmatmul.mubr.f32.gmra.mrb[0].mxu0 %v2087
    %v2155 = vpop.f32.mrb[0].mxu0
    %v2156 = vadd.f32 0.0, %v2155
    %v2157 = vpop.f32.mrb[0].mxu0
    %v2158 = vadd.f32 0.0, %v2157
    %2159 = vdwg.mxu0
    %v2160 = vld [vmem:[#allocation2] sm:$0x30]
    %v2162 = vrot.slane %v2156, 4
    %v2164 = vadd.f32 %v2160, %v2162
    %v2165 = vld [vmem:[#allocation2 + $0x18] sm:$0xc]
    %v2167 = vrot.slane %v2158, 6
    %v2169 = vadd.f32 %v2165, %v2167
    %v2170 = vxor.u32 %v2164, 2147483648
    %v2171 = vmul.f32 %v2170, 1.442695
    %v2172 = vpow.pop %v2171
    %v2173 = vadd.f32 %v2172, 1.0
    %v2174 = vrcp.pop %v2173
    %v2175 = vmul.f32 1.0, %v2174
    %v2176 = vtanh.pop %v2164
    %v2178 = vrot.slane %v2084, 6
    %2179 = vrot.lane.b32.xlu0 %v2178, 32
    %v2180 = vpop.permute.xlu0 %2179
    %v2182 = vmul.f32 %v2175, %v2180
    %2184 = vrot.lane.b32.xlu0 %v2176, 64
    %v2185 = vpop.permute.xlu0 %2184
    %v2187 = vmul.f32 %v2175, %v2185
    %2189 = vrot.lane.b32.xlu0 %v2187, 32
    %v2190 = vpop.permute.xlu0 %2189
    %v2192 = vadd.f32 %v2182, %v2190
    %v2193 = vtanh.pop %v2192
    %2195 = vrot.lane.b32.xlu0 %v2193, 64
    %v2196 = vpop.permute.xlu0 %2195
    %v2198 = vmul.f32 %v2175, %v2196
    %v2199 = vxor.u32 %v2169, 2147483648
    %v2200 = vmul.f32 %v2199, 1.442695
    %v2201 = vpow.pop %v2200
    %v2202 = vadd.f32 %v2201, 1.0
    %v2203 = vrcp.pop %v2202
    %v2204 = vmul.f32 1.0, %v2203
    %v2205 = vtanh.pop %v2169
    %v2206 = vmul.f32 %v2204, %v2084
    %2208 = vrot.lane.b32.xlu0 %v2205, 64
    %v2209 = vpop.permute.xlu0 %2208
    %v2211 = vmul.f32 %v2204, %v2209
    %2213 = vrot.lane.b32.xlu0 %v2211, 32
    %v2214 = vpop.permute.xlu0 %2213
    %v2216 = vadd.f32 %v2206, %v2214
    %v2217 = vtanh.pop %v2216
    %2219 = vrot.lane.b32.xlu0 %v2217, 64
    %v2220 = vpop.permute.xlu0 %2219
    %v2222 = vmul.f32 %v2204, %v2220
    %2224 = vrot.lane.b32.xlu0 %v2198, 32
    %v2225 = vpop.permute.xlu0 %2224
    %2227 = vst.msk [vmem:[#allocation3] sm:$0x30] %vm830, %v2225
    %2229 = vrot.lane.b32.xlu0 %v2222, 64
    %v2230 = vpop.permute.xlu0 %2229
    %2232 = vst.msk [vmem:[#allocation3 + $0x8] sm:$0xc] %vm836, %v2230
    %v2233 = vrot.slane %v2222, 6
    %2234 = vrot.lane.b32.xlu0 %v2233, 64
    %v2235 = vpop.permute.xlu0 %2234
    %v2237 = vsel %vm514, %v2225, %v2235
    %2239 = vrot.lane.b32.xlu0 %v2192, 96
    %v2240 = vpop.permute.xlu0 %2239
    %v2243 = vrot.slane %v2216, 6
    %v2245 = vsel %vm514, %v2240, %v2243
    %v2247 = vrot.slane %v2237, 4
    %v2248 = vsel %vm368, %v2247, 0
    %2250 = vmatprep.subr.mxu0 %v1759
    %2251 = vmatpush1.msra.mxu0 %v1758
    %2252 = vmatprep.subr.mxu0 %v1761
    %2253 = vmatpush1.msra.mxu0 %v1760
    %2254 = vmatprep.subr.mxu0 %v1763
    %2255 = vmatpush1.msra.mxu0 %v1762
    %2256 = vmatprep.subr.mxu0 %v1765
    %2257 = vmatpush1.msra.mxu0 %v1764
    %2258 = vmatprep.subr.mxu0 %v1767
    %2259 = vmatpush1.msra.mxu0 %v1766
    %2260 = vmatprep.subr.mxu0 %v1769
    %2261 = vmatpush1.msra.mxu0 %v1768
    %2262 = vmatprep.subr.mxu0 %v1771
    %2263 = vmatpush1.msra.mxu0 %v1770
    %2264 = vmatprep.subr.mxu0 %v1773
    %2265 = vmatpush1.msra.mxu0 %v1772
    %2266 = vmatprep.subr.mxu0 0.0
    %2267 = vmatpush1.msra.mxu0 0.0
    %2268 = vmatprep.subr.mxu0 0.0
    %2269 = vmatpush1.msra.mxu0 0.0
    %2270 = vmatprep.subr.mxu0 0.0
    %2271 = vmatpush1.msra.mxu0 0.0
    %2272 = vmatprep.subr.mxu0 0.0
    %2273 = vmatpush1.msra.mxu0 0.0
    %2274 = vmatprep.subr.mxu0 0.0
    %2275 = vmatpush1.msra.mxu0 0.0
    %2276 = vmatprep.subr.mxu0 0.0
    %2277 = vmatpush1.msra.mxu0 0.0
    %2278 = vmatprep.subr.mxu0 0.0
    %2279 = vmatpush1.msra.mxu0 0.0
    %2280 = vmatprep.subr.mxu0 0.0
    %2281 = vmatpush1.msra.mxu0 0.0
    %2282 = vmatprep.subr.mxu0 0.0
    %2283 = vmatpush1.msra.mxu0 0.0
    %2284 = vmatprep.subr.mxu0 0.0
    %2285 = vmatpush1.msra.mxu0 0.0
    %2286 = vmatprep.subr.mxu0 0.0
    %2287 = vmatpush1.msra.mxu0 0.0
    %2288 = vmatprep.subr.mxu0 0.0
    %2289 = vmatpush1.msra.mxu0 0.0
    %2290 = vmatprep.subr.mxu0 0.0
    %2291 = vmatpush1.msra.mxu0 0.0
    %2292 = vmatprep.subr.mxu0 0.0
    %2293 = vmatpush1.msra.mxu0 0.0
    %2294 = vmatprep.subr.mxu0 0.0
    %2295 = vmatpush1.msra.mxu0 0.0
    %2296 = vmatprep.subr.mxu0 0.0
    %2297 = vmatpush1.msra.mxu0 0.0
    %2298 = vmatprep.subr.mxu0 0.0
    %2299 = vmatpush1.msra.mxu0 0.0
    %2300 = vmatprep.subr.mxu0 0.0
    %2301 = vmatpush1.msra.mxu0 0.0
    %2302 = vmatprep.subr.mxu0 0.0
    %2303 = vmatpush1.msra.mxu0 0.0
    %2304 = vmatprep.subr.mxu0 0.0
    %2305 = vmatpush1.msra.mxu0 0.0
    %2306 = vmatprep.subr.mxu0 0.0
    %2307 = vmatpush1.msra.mxu0 0.0
    %2308 = vmatprep.subr.mxu0 0.0
    %2309 = vmatpush1.msra.mxu0 0.0
    %2310 = vmatprep.subr.mxu0 0.0
    %2311 = vmatpush1.msra.mxu0 0.0
    %2312 = vmatprep.subr.mxu0 0.0
    %2313 = vmatpush1.msra.mxu0 0.0
    %2314 = vmatprep.mubr.f32.mxu0 0.0
    %2315 = vmatmul.mubr.f32.gmra.mrb[0].mxu0 %v2248
    %v2316 = vpop.f32.mrb[0].mxu0
    %v2317 = vadd.f32 0.0, %v2316
    %v2318 = vpop.f32.mrb[0].mxu0
    %v2319 = vadd.f32 0.0, %v2318
    %2320 = vdwg.mxu0
    %v2321 = vld [vmem:[#allocation2] sm:$0xc0]
    %v2323 = vrot.slane %v2317, 2
    %v2325 = vadd.f32 %v2321, %v2323
    %v2326 = vld [vmem:[#allocation2 + $0x18] sm:$0x3]
    %v2327 = vadd.f32 %v2326, %v2319
    %v2328 = vxor.u32 %v2325, 2147483648
    %v2329 = vmul.f32 %v2328, 1.442695
    %v2330 = vpow.pop %v2329
    %v2331 = vadd.f32 %v2330, 1.0
    %v2332 = vrcp.pop %v2331
    %v2333 = vmul.f32 1.0, %v2332
    %v2334 = vtanh.pop %v2325
    %v2336 = vrot.slane %v2245, 6
    %2337 = vrot.lane.b32.xlu0 %v2336, 32
    %v2338 = vpop.permute.xlu0 %2337
    %v2340 = vmul.f32 %v2333, %v2338
    %2342 = vrot.lane.b32.xlu0 %v2334, 64
    %v2343 = vpop.permute.xlu0 %2342
    %v2345 = vmul.f32 %v2333, %v2343
    %2347 = vrot.lane.b32.xlu0 %v2345, 32
    %v2348 = vpop.permute.xlu0 %2347
    %v2350 = vadd.f32 %v2340, %v2348
    %v2351 = vtanh.pop %v2350
    %2353 = vrot.lane.b32.xlu0 %v2351, 64
    %v2354 = vpop.permute.xlu0 %2353
    %v2356 = vmul.f32 %v2333, %v2354
    %v2357 = vxor.u32 %v2327, 2147483648
    %v2358 = vmul.f32 %v2357, 1.442695
    %v2359 = vpow.pop %v2358
    %v2360 = vadd.f32 %v2359, 1.0
    %v2361 = vrcp.pop %v2360
    %v2362 = vmul.f32 1.0, %v2361
    %v2363 = vtanh.pop %v2327
    %v2364 = vrot.slane %v2245, 4
    %v2366 = vmul.f32 %v2362, %v2364
    %2368 = vrot.lane.b32.xlu0 %v2363, 64
    %v2369 = vpop.permute.xlu0 %2368
    %v2371 = vmul.f32 %v2362, %v2369
    %2373 = vrot.lane.b32.xlu0 %v2371, 32
    %v2374 = vpop.permute.xlu0 %2373
    %v2376 = vadd.f32 %v2366, %v2374
    %v2377 = vtanh.pop %v2376
    %2379 = vrot.lane.b32.xlu0 %v2377, 64
    %v2380 = vpop.permute.xlu0 %2379
    %v2382 = vmul.f32 %v2362, %v2380
    %2384 = vrot.lane.b32.xlu0 %v2356, 32
    %v2385 = vpop.permute.xlu0 %2384
    %2387 = vst.msk [vmem:[#allocation3] sm:$0xc0] %vm992, %v2385
    %2389 = vrot.lane.b32.xlu0 %v2382, 64
    %v2390 = vpop.permute.xlu0 %2389
    %2392 = vst.msk [vmem:[#allocation3 + $0x8] sm:$0x3] %vm998, %v2390
    %v2393 = vrot.slane %v2382, 2
    %2394 = vrot.lane.b32.xlu0 %v2393, 64
    %v2395 = vpop.permute.xlu0 %2394
    %v2397 = vsel %vm514, %v2385, %v2395
    %2399 = vrot.lane.b32.xlu0 %v2350, 96
    %v2400 = vpop.permute.xlu0 %2399
    %v2403 = vrot.slane %v2376, 2
    %v2405 = vsel %vm514, %v2400, %v2403
    %v2407 = vrot.slane %v2397, 6
    %v2408 = vsel %vm368, %v2407, 0
    %2410 = vmatprep.subr.mxu0 %v1759
    %2411 = vmatpush1.msra.mxu0 %v1758
    %2412 = vmatprep.subr.mxu0 %v1761
    %2413 = vmatpush1.msra.mxu0 %v1760
    %2414 = vmatprep.subr.mxu0 %v1763
    %2415 = vmatpush1.msra.mxu0 %v1762
    %2416 = vmatprep.subr.mxu0 %v1765
    %2417 = vmatpush1.msra.mxu0 %v1764
    %2418 = vmatprep.subr.mxu0 %v1767
    %2419 = vmatpush1.msra.mxu0 %v1766
    %2420 = vmatprep.subr.mxu0 %v1769
    %2421 = vmatpush1.msra.mxu0 %v1768
    %2422 = vmatprep.subr.mxu0 %v1771
    %2423 = vmatpush1.msra.mxu0 %v1770
    %2424 = vmatprep.subr.mxu0 %v1773
    %2425 = vmatpush1.msra.mxu0 %v1772
    %2426 = vmatprep.subr.mxu0 0.0
    %2427 = vmatpush1.msra.mxu0 0.0
    %2428 = vmatprep.subr.mxu0 0.0
    %2429 = vmatpush1.msra.mxu0 0.0
    %2430 = vmatprep.subr.mxu0 0.0
    %2431 = vmatpush1.msra.mxu0 0.0
    %2432 = vmatprep.subr.mxu0 0.0
    %2433 = vmatpush1.msra.mxu0 0.0
    %2434 = vmatprep.subr.mxu0 0.0
    %2435 = vmatpush1.msra.mxu0 0.0
    %2436 = vmatprep.subr.mxu0 0.0
    %2437 = vmatpush1.msra.mxu0 0.0
    %2438 = vmatprep.subr.mxu0 0.0
    %2439 = vmatpush1.msra.mxu0 0.0
    %2440 = vmatprep.subr.mxu0 0.0
    %2441 = vmatpush1.msra.mxu0 0.0
    %2442 = vmatprep.subr.mxu0 0.0
    %2443 = vmatpush1.msra.mxu0 0.0
    %2444 = vmatprep.subr.mxu0 0.0
    %2445 = vmatpush1.msra.mxu0 0.0
    %2446 = vmatprep.subr.mxu0 0.0
    %2447 = vmatpush1.msra.mxu0 0.0
    %2448 = vmatprep.subr.mxu0 0.0
    %2449 = vmatpush1.msra.mxu0 0.0
    %2450 = vmatprep.subr.mxu0 0.0
    %2451 = vmatpush1.msra.mxu0 0.0
    %2452 = vmatprep.subr.mxu0 0.0
    %2453 = vmatpush1.msra.mxu0 0.0
    %2454 = vmatprep.subr.mxu0 0.0
    %2455 = vmatpush1.msra.mxu0 0.0
    %2456 = vmatprep.subr.mxu0 0.0
    %2457 = vmatpush1.msra.mxu0 0.0
    %2458 = vmatprep.subr.mxu0 0.0
    %2459 = vmatpush1.msra.mxu0 0.0
    %2460 = vmatprep.subr.mxu0 0.0
    %2461 = vmatpush1.msra.mxu0 0.0
    %2462 = vmatprep.subr.mxu0 0.0
    %2463 = vmatpush1.msra.mxu0 0.0
    %2464 = vmatprep.subr.mxu0 0.0
    %2465 = vmatpush1.msra.mxu0 0.0
    %2466 = vmatprep.subr.mxu0 0.0
    %2467 = vmatpush1.msra.mxu0 0.0
    %2468 = vmatprep.subr.mxu0 0.0
    %2469 = vmatpush1.msra.mxu0 0.0
    %2470 = vmatprep.subr.mxu0 0.0
    %2471 = vmatpush1.msra.mxu0 0.0
    %2472 = vmatprep.subr.mxu0 0.0
    %2473 = vmatpush1.msra.mxu0 0.0
    %2474 = vmatprep.mubr.f32.mxu0 0.0
    %2475 = vmatmul.mubr.f32.gmra.mrb[0].mxu0 %v2408
    %v2476 = vpop.f32.mrb[0].mxu0
    %v2477 = vadd.f32 0.0, %v2476
    %v2478 = vpop.f32.mrb[0].mxu0
    %v2479 = vadd.f32 0.0, %v2478
    %2480 = vdwg.mxu0
    %v2481 = vld [vmem:[#allocation2 + $0x10] sm:$0x3]
    %v2482 = vadd.f32 %v2481, %v2477
    %v2483 = vld [vmem:[#allocation2 + $0x8] sm:$0xc0]
    %v2485 = vrot.slane %v2479, 2
    %v2487 = vadd.f32 %v2483, %v2485
    %v2488 = vxor.u32 %v2482, 2147483648
    %v2489 = vmul.f32 %v2488, 1.442695
    %v2490 = vpow.pop %v2489
    %v2491 = vadd.f32 %v2490, 1.0
    %v2492 = vrcp.pop %v2491
    %v2493 = vmul.f32 1.0, %v2492
    %v2494 = vtanh.pop %v2482
    %v2496 = vrot.slane %v2405, 6
    %2497 = vrot.lane.b32.xlu0 %v2496, 32
    %v2498 = vpop.permute.xlu0 %2497
    %v2500 = vmul.f32 %v2493, %v2498
    %2502 = vrot.lane.b32.xlu0 %v2494, 64
    %v2503 = vpop.permute.xlu0 %2502
    %v2505 = vmul.f32 %v2493, %v2503
    %2507 = vrot.lane.b32.xlu0 %v2505, 32
    %v2508 = vpop.permute.xlu0 %2507
    %v2510 = vadd.f32 %v2500, %v2508
    %v2511 = vtanh.pop %v2510
    %2513 = vrot.lane.b32.xlu0 %v2511, 64
    %v2514 = vpop.permute.xlu0 %2513
    %v2516 = vmul.f32 %v2493, %v2514
    %v2517 = vxor.u32 %v2487, 2147483648
    %v2518 = vmul.f32 %v2517, 1.442695
    %v2519 = vpow.pop %v2518
    %v2520 = vadd.f32 %v2519, 1.0
    %v2521 = vrcp.pop %v2520
    %v2522 = vmul.f32 1.0, %v2521
    %v2523 = vtanh.pop %v2487
    %v2524 = vmul.f32 %v2522, %v2405
    %2526 = vrot.lane.b32.xlu0 %v2523, 64
    %v2527 = vpop.permute.xlu0 %2526
    %v2529 = vmul.f32 %v2522, %v2527
    %2531 = vrot.lane.b32.xlu0 %v2529, 32
    %v2532 = vpop.permute.xlu0 %2531
    %v2534 = vadd.f32 %v2524, %v2532
    %v2535 = vtanh.pop %v2534
    %2537 = vrot.lane.b32.xlu0 %v2535, 64
    %v2538 = vpop.permute.xlu0 %2537
    %v2540 = vmul.f32 %v2522, %v2538
    %2542 = vrot.lane.b32.xlu0 %v2516, 32
    %v2543 = vpop.permute.xlu0 %2542
    %2545 = vst.msk [vmem:[#allocation3 + $0x8] sm:$0x3] %vm502, %v2543
    %2547 = vrot.lane.b32.xlu0 %v2540, 64
    %v2548 = vpop.permute.xlu0 %2547
    %2550 = vst.msk [vmem:[#allocation3] sm:$0xc0] %vm508, %v2548
    %v2551 = vrot.slane %v2540, 6
    %2552 = vrot.lane.b32.xlu0 %v2551, 64
    %v2553 = vpop.permute.xlu0 %2552
    %v2555 = vsel %vm514, %v2543, %v2553
    %2557 = vrot.lane.b32.xlu0 %v2510, 96
    %v2558 = vpop.permute.xlu0 %2557
    %v2561 = vrot.slane %v2534, 6
    %v2563 = vsel %vm514, %v2558, %v2561
    %v2565 = vsel %vm368, %v2555, 0
    %2567 = vmatprep.subr.mxu0 %v1759
    %2568 = vmatpush1.msra.mxu0 %v1758
    %2569 = vmatprep.subr.mxu0 %v1761
    %2570 = vmatpush1.msra.mxu0 %v1760
    %2571 = vmatprep.subr.mxu0 %v1763
    %2572 = vmatpush1.msra.mxu0 %v1762
    %2573 = vmatprep.subr.mxu0 %v1765
    %2574 = vmatpush1.msra.mxu0 %v1764
    %2575 = vmatprep.subr.mxu0 %v1767
    %2576 = vmatpush1.msra.mxu0 %v1766
    %2577 = vmatprep.subr.mxu0 %v1769
    %2578 = vmatpush1.msra.mxu0 %v1768
    %2579 = vmatprep.subr.mxu0 %v1771
    %2580 = vmatpush1.msra.mxu0 %v1770
    %2581 = vmatprep.subr.mxu0 %v1773
    %2582 = vmatpush1.msra.mxu0 %v1772
    %2583 = vmatprep.subr.mxu0 0.0
    %2584 = vmatpush1.msra.mxu0 0.0
    %2585 = vmatprep.subr.mxu0 0.0
    %2586 = vmatpush1.msra.mxu0 0.0
    %2587 = vmatprep.subr.mxu0 0.0
    %2588 = vmatpush1.msra.mxu0 0.0
    %2589 = vmatprep.subr.mxu0 0.0
    %2590 = vmatpush1.msra.mxu0 0.0
    %2591 = vmatprep.subr.mxu0 0.0
    %2592 = vmatpush1.msra.mxu0 0.0
    %2593 = vmatprep.subr.mxu0 0.0
    %2594 = vmatpush1.msra.mxu0 0.0
    %2595 = vmatprep.subr.mxu0 0.0
    %2596 = vmatpush1.msra.mxu0 0.0
    %2597 = vmatprep.subr.mxu0 0.0
    %2598 = vmatpush1.msra.mxu0 0.0
    %2599 = vmatprep.subr.mxu0 0.0
    %2600 = vmatpush1.msra.mxu0 0.0
    %2601 = vmatprep.subr.mxu0 0.0
    %2602 = vmatpush1.msra.mxu0 0.0
    %2603 = vmatprep.subr.mxu0 0.0
    %2604 = vmatpush1.msra.mxu0 0.0
    %2605 = vmatprep.subr.mxu0 0.0
    %2606 = vmatpush1.msra.mxu0 0.0
    %2607 = vmatprep.subr.mxu0 0.0
    %2608 = vmatpush1.msra.mxu0 0.0
    %2609 = vmatprep.subr.mxu0 0.0
    %2610 = vmatpush1.msra.mxu0 0.0
    %2611 = vmatprep.subr.mxu0 0.0
    %2612 = vmatpush1.msra.mxu0 0.0
    %2613 = vmatprep.subr.mxu0 0.0
    %2614 = vmatpush1.msra.mxu0 0.0
    %2615 = vmatprep.subr.mxu0 0.0
    %2616 = vmatpush1.msra.mxu0 0.0
    %2617 = vmatprep.subr.mxu0 0.0
    %2618 = vmatpush1.msra.mxu0 0.0
    %2619 = vmatprep.subr.mxu0 0.0
    %2620 = vmatpush1.msra.mxu0 0.0
    %2621 = vmatprep.subr.mxu0 0.0
    %2622 = vmatpush1.msra.mxu0 0.0
    %2623 = vmatprep.subr.mxu0 0.0
    %2624 = vmatpush1.msra.mxu0 0.0
    %2625 = vmatprep.subr.mxu0 0.0
    %2626 = vmatpush1.msra.mxu0 0.0
    %2627 = vmatprep.subr.mxu0 0.0
    %2628 = vmatpush1.msra.mxu0 0.0
    %2629 = vmatprep.subr.mxu0 0.0
    %2630 = vmatpush1.msra.mxu0 0.0
    %2631 = vmatprep.mubr.f32.mxu0 0.0
    %2632 = vmatmul.mubr.f32.gmra.mrb[0].mxu0 %v2565
    %v2633 = vpop.f32.mrb[0].mxu0
    %v2634 = vadd.f32 0.0, %v2633
    %v2635 = vpop.f32.mrb[0].mxu0
    %v2636 = vadd.f32 0.0, %v2635
    %2637 = vdwg.mxu0
    %v2638 = vld [vmem:[#allocation2 + $0x10] sm:$0xc]
    %v2640 = vrot.slane %v2634, 6
    %v2642 = vadd.f32 %v2638, %v2640
    %v2643 = vld [vmem:[#allocation2 + $0x8] sm:$0x30]
    %v2645 = vrot.slane %v2636, 4
    %v2647 = vadd.f32 %v2643, %v2645
    %v2648 = vxor.u32 %v2642, 2147483648
    %v2649 = vmul.f32 %v2648, 1.442695
    %v2650 = vpow.pop %v2649
    %v2651 = vadd.f32 %v2650, 1.0
    %v2652 = vrcp.pop %v2651
    %v2653 = vmul.f32 1.0, %v2652
    %v2654 = vtanh.pop %v2642
    %v2656 = vrot.slane %v2563, 6
    %2657 = vrot.lane.b32.xlu0 %v2656, 32
    %v2658 = vpop.permute.xlu0 %2657
    %v2660 = vmul.f32 %v2653, %v2658
    %2662 = vrot.lane.b32.xlu0 %v2654, 64
    %v2663 = vpop.permute.xlu0 %2662
    %v2665 = vmul.f32 %v2653, %v2663
    %2667 = vrot.lane.b32.xlu0 %v2665, 32
    %v2668 = vpop.permute.xlu0 %2667
    %v2670 = vadd.f32 %v2660, %v2668
    %v2671 = vtanh.pop %v2670
    %2673 = vrot.lane.b32.xlu0 %v2671, 64
    %v2674 = vpop.permute.xlu0 %2673
    %v2676 = vmul.f32 %v2653, %v2674
    %v2677 = vxor.u32 %v2647, 2147483648
    %v2678 = vmul.f32 %v2677, 1.442695
    %v2679 = vpow.pop %v2678
    %v2680 = vadd.f32 %v2679, 1.0
    %v2681 = vrcp.pop %v2680
    %v2682 = vmul.f32 1.0, %v2681
    %v2683 = vtanh.pop %v2647
    %v2684 = vrot.slane %v2563, 4
    %v2686 = vmul.f32 %v2682, %v2684
    %2688 = vrot.lane.b32.xlu0 %v2683, 64
    %v2689 = vpop.permute.xlu0 %2688
    %v2691 = vmul.f32 %v2682, %v2689
    %2693 = vrot.lane.b32.xlu0 %v2691, 32
    %v2694 = vpop.permute.xlu0 %2693
    %v2696 = vadd.f32 %v2686, %v2694
    %v2697 = vtanh.pop %v2696
    %2699 = vrot.lane.b32.xlu0 %v2697, 64
    %v2700 = vpop.permute.xlu0 %2699
    %v2702 = vmul.f32 %v2682, %v2700
    %2704 = vrot.lane.b32.xlu0 %v2676, 32
    %v2705 = vpop.permute.xlu0 %2704
    %2707 = vst.msk [vmem:[#allocation3 + $0x8] sm:$0xc] %vm667, %v2705
    %2709 = vrot.lane.b32.xlu0 %v2702, 64
    %v2710 = vpop.permute.xlu0 %2709
    %2712 = vst.msk [vmem:[#allocation3] sm:$0x30] %vm673, %v2710
    %v2713 = vrot.slane %v2702, 2
    %2714 = vrot.lane.b32.xlu0 %v2713, 64
    %v2715 = vpop.permute.xlu0 %2714
    %v2717 = vsel %vm514, %v2705, %v2715
    %2719 = vrot.lane.b32.xlu0 %v2670, 96
    %v2720 = vpop.permute.xlu0 %2719
    %v2723 = vrot.slane %v2696, 2
    %v2725 = vsel %vm514, %v2720, %v2723
    %v2727 = vrot.slane %v2717, 2
    %v2728 = vsel %vm368, %v2727, 0
    %2730 = vmatprep.subr.mxu0 %v1759
    %2731 = vmatpush1.msra.mxu0 %v1758
    %2732 = vmatprep.subr.mxu0 %v1761
    %2733 = vmatpush1.msra.mxu0 %v1760
    %2734 = vmatprep.subr.mxu0 %v1763
    %2735 = vmatpush1.msra.mxu0 %v1762
    %2736 = vmatprep.subr.mxu0 %v1765
    %2737 = vmatpush1.msra.mxu0 %v1764
    %2738 = vmatprep.subr.mxu0 %v1767
    %2739 = vmatpush1.msra.mxu0 %v1766
    %2740 = vmatprep.subr.mxu0 %v1769
    %2741 = vmatpush1.msra.mxu0 %v1768
    %2742 = vmatprep.subr.mxu0 %v1771
    %2743 = vmatpush1.msra.mxu0 %v1770
    %2744 = vmatprep.subr.mxu0 %v1773
    %2745 = vmatpush1.msra.mxu0 %v1772
    %2746 = vmatprep.subr.mxu0 0.0
    %2747 = vmatpush1.msra.mxu0 0.0
    %2748 = vmatprep.subr.mxu0 0.0
    %2749 = vmatpush1.msra.mxu0 0.0
    %2750 = vmatprep.subr.mxu0 0.0
    %2751 = vmatpush1.msra.mxu0 0.0
    %2752 = vmatprep.subr.mxu0 0.0
    %2753 = vmatpush1.msra.mxu0 0.0
    %2754 = vmatprep.subr.mxu0 0.0
    %2755 = vmatpush1.msra.mxu0 0.0
    %2756 = vmatprep.subr.mxu0 0.0
    %2757 = vmatpush1.msra.mxu0 0.0
    %2758 = vmatprep.subr.mxu0 0.0
    %2759 = vmatpush1.msra.mxu0 0.0
    %2760 = vmatprep.subr.mxu0 0.0
    %2761 = vmatpush1.msra.mxu0 0.0
    %2762 = vmatprep.subr.mxu0 0.0
    %2763 = vmatpush1.msra.mxu0 0.0
    %2764 = vmatprep.subr.mxu0 0.0
    %2765 = vmatpush1.msra.mxu0 0.0
    %2766 = vmatprep.subr.mxu0 0.0
    %2767 = vmatpush1.msra.mxu0 0.0
    %2768 = vmatprep.subr.mxu0 0.0
    %2769 = vmatpush1.msra.mxu0 0.0
    %2770 = vmatprep.subr.mxu0 0.0
    %2771 = vmatpush1.msra.mxu0 0.0
    %2772 = vmatprep.subr.mxu0 0.0
    %2773 = vmatpush1.msra.mxu0 0.0
    %2774 = vmatprep.subr.mxu0 0.0
    %2775 = vmatpush1.msra.mxu0 0.0
    %2776 = vmatprep.subr.mxu0 0.0
    %2777 = vmatpush1.msra.mxu0 0.0
    %2778 = vmatprep.subr.mxu0 0.0
    %2779 = vmatpush1.msra.mxu0 0.0
    %2780 = vmatprep.subr.mxu0 0.0
    %2781 = vmatpush1.msra.mxu0 0.0
    %2782 = vmatprep.subr.mxu0 0.0
    %2783 = vmatpush1.msra.mxu0 0.0
    %2784 = vmatprep.subr.mxu0 0.0
    %2785 = vmatpush1.msra.mxu0 0.0
    %2786 = vmatprep.subr.mxu0 0.0
    %2787 = vmatpush1.msra.mxu0 0.0
    %2788 = vmatprep.subr.mxu0 0.0
    %2789 = vmatpush1.msra.mxu0 0.0
    %2790 = vmatprep.subr.mxu0 0.0
    %2791 = vmatpush1.msra.mxu0 0.0
    %2792 = vmatprep.subr.mxu0 0.0
    %2793 = vmatpush1.msra.mxu0 0.0
    %2794 = vmatprep.mubr.f32.mxu0 0.0
    %2795 = vmatmul.mubr.f32.gmra.mrb[0].mxu0 %v2728
    %v2796 = vpop.f32.mrb[0].mxu0
    %v2797 = vadd.f32 0.0, %v2796
    %v2798 = vpop.f32.mrb[0].mxu0
    %v2799 = vadd.f32 0.0, %v2798
    %2800 = vdwg.mxu0
    %v2801 = vld [vmem:[#allocation2 + $0x10] sm:$0x30]
    %v2803 = vrot.slane %v2797, 4
    %v2805 = vadd.f32 %v2801, %v2803
    %v2806 = vld [vmem:[#allocation2 + $0x8] sm:$0xc]
    %v2808 = vrot.slane %v2799, 6
    %v2810 = vadd.f32 %v2806, %v2808
    %v2811 = vxor.u32 %v2805, 2147483648
    %v2812 = vmul.f32 %v2811, 1.442695
    %v2813 = vpow.pop %v2812
    %v2814 = vadd.f32 %v2813, 1.0
    %v2815 = vrcp.pop %v2814
    %v2816 = vmul.f32 1.0, %v2815
    %v2817 = vtanh.pop %v2805
    %v2819 = vrot.slane %v2725, 6
    %2820 = vrot.lane.b32.xlu0 %v2819, 32
    %v2821 = vpop.permute.xlu0 %2820
    %v2823 = vmul.f32 %v2816, %v2821
    %2825 = vrot.lane.b32.xlu0 %v2817, 64
    %v2826 = vpop.permute.xlu0 %2825
    %v2828 = vmul.f32 %v2816, %v2826
    %2830 = vrot.lane.b32.xlu0 %v2828, 32
    %v2831 = vpop.permute.xlu0 %2830
    %v2833 = vadd.f32 %v2823, %v2831
    %v2834 = vtanh.pop %v2833
    %2836 = vrot.lane.b32.xlu0 %v2834, 64
    %v2837 = vpop.permute.xlu0 %2836
    %v2839 = vmul.f32 %v2816, %v2837
    %v2840 = vxor.u32 %v2810, 2147483648
    %v2841 = vmul.f32 %v2840, 1.442695
    %v2842 = vpow.pop %v2841
    %v2843 = vadd.f32 %v2842, 1.0
    %v2844 = vrcp.pop %v2843
    %v2845 = vmul.f32 1.0, %v2844
    %v2846 = vtanh.pop %v2810
    %v2847 = vmul.f32 %v2845, %v2725
    %2849 = vrot.lane.b32.xlu0 %v2846, 64
    %v2850 = vpop.permute.xlu0 %2849
    %v2852 = vmul.f32 %v2845, %v2850
    %2854 = vrot.lane.b32.xlu0 %v2852, 32
    %v2855 = vpop.permute.xlu0 %2854
    %v2857 = vadd.f32 %v2847, %v2855
    %v2858 = vtanh.pop %v2857
    %2860 = vrot.lane.b32.xlu0 %v2858, 64
    %v2861 = vpop.permute.xlu0 %2860
    %v2863 = vmul.f32 %v2845, %v2861
    %2865 = vrot.lane.b32.xlu0 %v2839, 32
    %v2866 = vpop.permute.xlu0 %2865
    %2868 = vst.msk [vmem:[#allocation3 + $0x8] sm:$0x30] %vm830, %v2866
    %2870 = vrot.lane.b32.xlu0 %v2863, 64
    %v2871 = vpop.permute.xlu0 %2870
    %2873 = vst.msk [vmem:[#allocation3] sm:$0xc] %vm836, %v2871
    %v2874 = vrot.slane %v2863, 6
    %2875 = vrot.lane.b32.xlu0 %v2874, 64
    %v2876 = vpop.permute.xlu0 %2875
    %v2878 = vsel %vm514, %v2866, %v2876
    %2880 = vrot.lane.b32.xlu0 %v2833, 96
    %v2881 = vpop.permute.xlu0 %2880
    %v2884 = vrot.slane %v2857, 6
    %v2886 = vsel %vm514, %v2881, %v2884
    %v2888 = vrot.slane %v2878, 4
    %v2889 = vsel %vm368, %v2888, 0
    %2891 = vmatprep.subr.mxu0 %v1759
    %2892 = vmatpush1.msra.mxu0 %v1758
    %2893 = vmatprep.subr.mxu0 %v1761
    %2894 = vmatpush1.msra.mxu0 %v1760
    %2895 = vmatprep.subr.mxu0 %v1763
    %2896 = vmatpush1.msra.mxu0 %v1762
    %2897 = vmatprep.subr.mxu0 %v1765
    %2898 = vmatpush1.msra.mxu0 %v1764
    %2899 = vmatprep.subr.mxu0 %v1767
    %2900 = vmatpush1.msra.mxu0 %v1766
    %2901 = vmatprep.subr.mxu0 %v1769
    %2902 = vmatpush1.msra.mxu0 %v1768
    %2903 = vmatprep.subr.mxu0 %v1771
    %2904 = vmatpush1.msra.mxu0 %v1770
    %2905 = vmatprep.subr.mxu0 %v1773
    %2906 = vmatpush1.msra.mxu0 %v1772
    %2907 = vmatprep.subr.mxu0 0.0
    %2908 = vmatpush1.msra.mxu0 0.0
    %2909 = vmatprep.subr.mxu0 0.0
    %2910 = vmatpush1.msra.mxu0 0.0
    %2911 = vmatprep.subr.mxu0 0.0
    %2912 = vmatpush1.msra.mxu0 0.0
    %2913 = vmatprep.subr.mxu0 0.0
    %2914 = vmatpush1.msra.mxu0 0.0
    %2915 = vmatprep.subr.mxu0 0.0
    %2916 = vmatpush1.msra.mxu0 0.0
    %2917 = vmatprep.subr.mxu0 0.0
    %2918 = vmatpush1.msra.mxu0 0.0
    %2919 = vmatprep.subr.mxu0 0.0
    %2920 = vmatpush1.msra.mxu0 0.0
    %2921 = vmatprep.subr.mxu0 0.0
    %2922 = vmatpush1.msra.mxu0 0.0
    %2923 = vmatprep.subr.mxu0 0.0
    %2924 = vmatpush1.msra.mxu0 0.0
    %2925 = vmatprep.subr.mxu0 0.0
    %2926 = vmatpush1.msra.mxu0 0.0
    %2927 = vmatprep.subr.mxu0 0.0
    %2928 = vmatpush1.msra.mxu0 0.0
    %2929 = vmatprep.subr.mxu0 0.0
    %2930 = vmatpush1.msra.mxu0 0.0
    %2931 = vmatprep.subr.mxu0 0.0
    %2932 = vmatpush1.msra.mxu0 0.0
    %2933 = vmatprep.subr.mxu0 0.0
    %2934 = vmatpush1.msra.mxu0 0.0
    %2935 = vmatprep.subr.mxu0 0.0
    %2936 = vmatpush1.msra.mxu0 0.0
    %2937 = vmatprep.subr.mxu0 0.0
    %2938 = vmatpush1.msra.mxu0 0.0
    %2939 = vmatprep.subr.mxu0 0.0
    %2940 = vmatpush1.msra.mxu0 0.0
    %2941 = vmatprep.subr.mxu0 0.0
    %2942 = vmatpush1.msra.mxu0 0.0
    %2943 = vmatprep.subr.mxu0 0.0
    %2944 = vmatpush1.msra.mxu0 0.0
    %2945 = vmatprep.subr.mxu0 0.0
    %2946 = vmatpush1.msra.mxu0 0.0
    %2947 = vmatprep.subr.mxu0 0.0
    %2948 = vmatpush1.msra.mxu0 0.0
    %2949 = vmatprep.subr.mxu0 0.0
    %2950 = vmatpush1.msra.mxu0 0.0
    %2951 = vmatprep.subr.mxu0 0.0
    %2952 = vmatpush1.msra.mxu0 0.0
    %2953 = vmatprep.subr.mxu0 0.0
    %2954 = vmatpush1.msra.mxu0 0.0
    %2955 = vmatprep.mubr.f32.mxu0 0.0
    %2956 = vmatmul.mubr.f32.gmra.mrb[0].mxu0 %v2889
    %v2957 = vpop.f32.mrb[0].mxu0
    %v2958 = vadd.f32 0.0, %v2957
    %v2959 = vpop.f32.mrb[0].mxu0
    %v2960 = vadd.f32 0.0, %v2959
    %2961 = vdwg.mxu0
    %v2962 = vld [vmem:[#allocation2 + $0x10] sm:$0xc0]
    %v2964 = vrot.slane %v2958, 2
    %v2966 = vadd.f32 %v2962, %v2964
    %v2967 = vld [vmem:[#allocation2 + $0x8] sm:$0x3]
    %v2968 = vadd.f32 %v2967, %v2960
    %v2969 = vxor.u32 %v2966, 2147483648
    %v2970 = vmul.f32 %v2969, 1.442695
    %v2971 = vpow.pop %v2970
    %v2972 = vadd.f32 %v2971, 1.0
    %v2973 = vrcp.pop %v2972
    %v2974 = vmul.f32 1.0, %v2973
    %v2975 = vtanh.pop %v2966
    %v2977 = vrot.slane %v2886, 6
    %2978 = vrot.lane.b32.xlu0 %v2977, 32
    %v2979 = vpop.permute.xlu0 %2978
    %v2981 = vmul.f32 %v2974, %v2979
    %2983 = vrot.lane.b32.xlu0 %v2975, 64
    %v2984 = vpop.permute.xlu0 %2983
    %v2986 = vmul.f32 %v2974, %v2984
    %2988 = vrot.lane.b32.xlu0 %v2986, 32
    %v2989 = vpop.permute.xlu0 %2988
    %v2991 = vadd.f32 %v2981, %v2989
    %v2992 = vtanh.pop %v2991
    %2994 = vrot.lane.b32.xlu0 %v2992, 64
    %v2995 = vpop.permute.xlu0 %2994
    %v2997 = vmul.f32 %v2974, %v2995
    %v2998 = vxor.u32 %v2968, 2147483648
    %v2999 = vmul.f32 %v2998, 1.442695
    %v3000 = vpow.pop %v2999
    %v3001 = vadd.f32 %v3000, 1.0
    %v3002 = vrcp.pop %v3001
    %v3003 = vmul.f32 1.0, %v3002
    %v3004 = vtanh.pop %v2968
    %v3005 = vrot.slane %v2886, 4
    %v3007 = vmul.f32 %v3003, %v3005
    %3009 = vrot.lane.b32.xlu0 %v3004, 64
    %v3010 = vpop.permute.xlu0 %3009
    %v3012 = vmul.f32 %v3003, %v3010
    %3014 = vrot.lane.b32.xlu0 %v3012, 32
    %v3015 = vpop.permute.xlu0 %3014
    %v3017 = vadd.f32 %v3007, %v3015
    %v3018 = vtanh.pop %v3017
    %3020 = vrot.lane.b32.xlu0 %v3018, 64
    %v3021 = vpop.permute.xlu0 %3020
    %v3023 = vmul.f32 %v3003, %v3021
    %3025 = vrot.lane.b32.xlu0 %v2997, 32
    %v3026 = vpop.permute.xlu0 %3025
    %3028 = vst.msk [vmem:[#allocation3 + $0x8] sm:$0xc0] %vm992, %v3026
    %3030 = vrot.lane.b32.xlu0 %v3023, 64
    %v3031 = vpop.permute.xlu0 %3030
    %3033 = vst.msk [vmem:[#allocation3] sm:$0x3] %vm998, %v3031
    %v3034 = vld [vmem:[#allocation3] sm:$0xff]
    %v3035 = vld [vmem:[#allocation3 + $0x8] sm:$0xff]
    %v3036 = vtanh.pop %v3034
    %v3037 = vtanh.pop %v3035
    %v3038 = vld [vmem:[%s7] sm:$0x1]
    %v3040 = vlaneseq
    %v3041 = vshrl.u32 %v3040, 7
    %v3042 = vsub.s32 0, %v3041
    %v3043 = vrot.slane %v3038, %v3042
    %v3045 = vmul.f32 %v3036, %v3043
    %v3046 = vmul.f32 %v3037, %v3043
    %v3047 = vsel %vm368, %v3045, 0.0
    %3048 = vadd.xlane.f32.xlu0 %v3047
    %v3049 = vpop.xlane.xlu0 %3048
    %v3050 = vsel %vm368, %v3046, 0.0
    %3051 = vadd.xlane.f32.xlu0 %v3050
    %v3052 = vpop.xlane.xlu0 %3051
    %v3053 = vmax.f32 %v3049, %v3052
    %v3054 = vrot.slane %v3053, 4
    %v3055 = vmax.f32 %v3053, %v3054
    %v3056 = vrot.slane %v3055, 2
    %v3057 = vmax.f32 %v3055, %v3056
    %v3058 = vrot.slane %v3057, 1
    %v3059 = vmax.f32 %v3057, %v3058
    %v3060 = vsub.f32 %v3049, %v3059
    %v3061 = vsub.f32 %v3052, %v3059
    %v3062 = vmul.f32 %v3060, 1.442695
    %v3063 = vpow.pop %v3062
    %v3064 = vmul.f32 %v3061, 1.442695
    %v3065 = vpow.pop %v3064
    %v3066 = vld [vmem:[%s8] sm:$0x3]
    %v3067 = vmul.f32 %v3063, %v3034
    %v3068 = vmul.f32 %v3065, %v3035
    %vm3069 = vcmask 130048
    %v3071 = vsel %vm3069, %v3066, 0
    %3073 = vmatprep.subr.mxu0 0.0
    %3074 = vmatpush1.msra.mxu0 %v3067
    %3075 = vmatprep.subr.mxu0 0.0
    %3076 = vmatpush1.msra.mxu0 %v3068
    %3077 = vmatprep.subr.mxu0 0.0
    %3078 = vmatpush1.msra.mxu0 0.0
    %3079 = vmatprep.subr.mxu0 0.0
    %3080 = vmatpush1.msra.mxu0 0.0
    %3081 = vmatprep.subr.mxu0 0.0
    %3082 = vmatpush1.msra.mxu0 0.0
    %3083 = vmatprep.subr.mxu0 0.0
    %3084 = vmatpush1.msra.mxu0 0.0
    %3085 = vmatprep.subr.mxu0 0.0
    %3086 = vmatpush1.msra.mxu0 0.0
    %3087 = vmatprep.subr.mxu0 0.0
    %3088 = vmatpush1.msra.mxu0 0.0
    %3089 = vmatprep.subr.mxu0 0.0
    %3090 = vmatpush1.msra.mxu0 0.0
    %3091 = vmatprep.subr.mxu0 0.0
    %3092 = vmatpush1.msra.mxu0 0.0
    %3093 = vmatprep.subr.mxu0 0.0
    %3094 = vmatpush1.msra.mxu0 0.0
    %3095 = vmatprep.subr.mxu0 0.0
    %3096 = vmatpush1.msra.mxu0 0.0
    %3097 = vmatprep.subr.mxu0 0.0
    %3098 = vmatpush1.msra.mxu0 0.0
    %3099 = vmatprep.subr.mxu0 0.0
    %3100 = vmatpush1.msra.mxu0 0.0
    %3101 = vmatprep.subr.mxu0 0.0
    %3102 = vmatpush1.msra.mxu0 0.0
    %3103 = vmatprep.subr.mxu0 0.0
    %3104 = vmatpush1.msra.mxu0 0.0
    %3105 = vmatprep.subr.mxu0 0.0
    %3106 = vmatpush1.msra.mxu0 0.0
    %3107 = vmatprep.subr.mxu0 0.0
    %3108 = vmatpush1.msra.mxu0 0.0
    %3109 = vmatprep.subr.mxu0 0.0
    %3110 = vmatpush1.msra.mxu0 0.0
    %3111 = vmatprep.subr.mxu0 0.0
    %3112 = vmatpush1.msra.mxu0 0.0
    %3113 = vmatprep.subr.mxu0 0.0
    %3114 = vmatpush1.msra.mxu0 0.0
    %3115 = vmatprep.subr.mxu0 0.0
    %3116 = vmatpush1.msra.mxu0 0.0
    %3117 = vmatprep.subr.mxu0 0.0
    %3118 = vmatpush1.msra.mxu0 0.0
    %3119 = vmatprep.subr.mxu0 0.0
    %3120 = vmatpush1.msra.mxu0 0.0
    %3121 = vmatprep.subr.mxu0 0.0
    %3122 = vmatpush1.msra.mxu0 0.0
    %3123 = vmatprep.subr.mxu0 0.0
    %3124 = vmatpush1.msra.mxu0 0.0
    %3125 = vmatprep.subr.mxu0 0.0
    %3126 = vmatpush1.msra.mxu0 0.0
    %3127 = vmatprep.subr.mxu0 0.0
    %3128 = vmatpush1.msra.mxu0 0.0
    %3129 = vmatprep.subr.mxu0 0.0
    %3130 = vmatpush1.msra.mxu0 0.0
    %3131 = vmatprep.subr.mxu0 0.0
    %3132 = vmatpush1.msra.mxu0 0.0
    %3133 = vmatprep.subr.mxu0 0.0
    %3134 = vmatpush1.msra.mxu0 0.0
    %3135 = vmatprep.subr.mxu0 0.0
    %3136 = vmatpush1.msra.mxu0 0.0
    %3137 = vmatprep.mubr.f32.mxu0 0.0
    %3138 = vmatmul.mubr.f32.gmra.mrb[0].mxu0 %v3071
    %v3139 = vpop.f32.mrb[0].mxu0
    %v3140 = vadd.f32 0.0, %v3139
    %v3141 = vpop.f32.mrb[0].mxu0
    %3142 = vdwg.mxu0
    %3143 = vmatprep.subr.mxu0 0.0
    %3144 = vmatpush1.msra.mxu0 %v3063
    %3145 = vmatprep.subr.mxu0 0.0
    %3146 = vmatpush1.msra.mxu0 %v3065
    %3147 = vmatprep.subr.mxu0 0.0
    %3148 = vmatpush1.msra.mxu0 0.0
    %3149 = vmatprep.subr.mxu0 0.0
    %3150 = vmatpush1.msra.mxu0 0.0
    %3151 = vmatprep.subr.mxu0 0.0
    %3152 = vmatpush1.msra.mxu0 0.0
    %3153 = vmatprep.subr.mxu0 0.0
    %3154 = vmatpush1.msra.mxu0 0.0
    %3155 = vmatprep.subr.mxu0 0.0
    %3156 = vmatpush1.msra.mxu0 0.0
    %3157 = vmatprep.subr.mxu0 0.0
    %3158 = vmatpush1.msra.mxu0 0.0
    %3159 = vmatprep.subr.mxu0 0.0
    %3160 = vmatpush1.msra.mxu0 0.0
    %3161 = vmatprep.subr.mxu0 0.0
    %3162 = vmatpush1.msra.mxu0 0.0
    %3163 = vmatprep.subr.mxu0 0.0
    %3164 = vmatpush1.msra.mxu0 0.0
    %3165 = vmatprep.subr.mxu0 0.0
    %3166 = vmatpush1.msra.mxu0 0.0
    %3167 = vmatprep.subr.mxu0 0.0
    %3168 = vmatpush1.msra.mxu0 0.0
    %3169 = vmatprep.subr.mxu0 0.0
    %3170 = vmatpush1.msra.mxu0 0.0
    %3171 = vmatprep.subr.mxu0 0.0
    %3172 = vmatpush1.msra.mxu0 0.0
    %3173 = vmatprep.subr.mxu0 0.0
    %3174 = vmatpush1.msra.mxu0 0.0
    %3175 = vmatprep.subr.mxu0 0.0
    %3176 = vmatpush1.msra.mxu0 0.0
    %3177 = vmatprep.subr.mxu0 0.0
    %3178 = vmatpush1.msra.mxu0 0.0
    %3179 = vmatprep.subr.mxu0 0.0
    %3180 = vmatpush1.msra.mxu0 0.0
    %3181 = vmatprep.subr.mxu0 0.0
    %3182 = vmatpush1.msra.mxu0 0.0
    %3183 = vmatprep.subr.mxu0 0.0
    %3184 = vmatpush1.msra.mxu0 0.0
    %3185 = vmatprep.subr.mxu0 0.0
    %3186 = vmatpush1.msra.mxu0 0.0
    %3187 = vmatprep.subr.mxu0 0.0
    %3188 = vmatpush1.msra.mxu0 0.0
    %3189 = vmatprep.subr.mxu0 0.0
    %3190 = vmatpush1.msra.mxu0 0.0
    %3191 = vmatprep.subr.mxu0 0.0
    %3192 = vmatpush1.msra.mxu0 0.0
    %3193 = vmatprep.subr.mxu0 0.0
    %3194 = vmatpush1.msra.mxu0 0.0
    %3195 = vmatprep.subr.mxu0 0.0
    %3196 = vmatpush1.msra.mxu0 0.0
    %3197 = vmatprep.subr.mxu0 0.0
    %3198 = vmatpush1.msra.mxu0 0.0
    %3199 = vmatprep.subr.mxu0 0.0
    %3200 = vmatpush1.msra.mxu0 0.0
    %3201 = vmatprep.subr.mxu0 0.0
    %3202 = vmatpush1.msra.mxu0 0.0
    %3203 = vmatprep.subr.mxu0 0.0
    %3204 = vmatpush1.msra.mxu0 0.0
    %3205 = vmatprep.subr.mxu0 0.0
    %3206 = vmatpush1.msra.mxu0 0.0
    %3207 = vmatprep.mubr.f32.mxu0 0.0
    %3208 = vmatmul.mubr.f32.gmra.mrb[0].mxu0 %v3071
    %v3209 = vpop.f32.mrb[0].mxu0
    %v3210 = vadd.f32 0.0, %v3209
    %v3211 = vpop.f32.mrb[0].mxu0
    %3212 = vdwg.mxu0
    %v3213 = vrcp.pop %v3210
    %v3214 = vmul.f32 %v3140, %v3213
    %v3215 = vmax.f32 %v3214, 0.0
    %v3216 = vld [vmem:[#allocation9] sm:$0xff]
    %v3217 = vld [vmem:[#allocation9 + $0x8] sm:$0xff]
    %v3218 = vld [vmem:[#allocation9 + $0x10] sm:$0xff]
    %v3219 = vld [vmem:[#allocation9 + $0x18] sm:$0xff]
    %v3220 = vld [vmem:[#allocation9 + $0x20] sm:$0xff]
    %v3221 = vld [vmem:[#allocation9 + $0x28] sm:$0xff]
    %v3222 = vld [vmem:[#allocation9 + $0x30] sm:$0xff]
    %v3223 = vld [vmem:[#allocation9 + $0x38] sm:$0xff]
    %v3224 = vld [vmem:[%s10] sm:$0x1]
    %v3226 = vlaneseq
    %v3227 = vshrl.u32 %v3226, 7
    %v3228 = vsub.s32 0, %v3227
    %v3229 = vrot.slane %v3224, %v3228
    %v3232 = vsel %vm368, %v3215, 0
    %3234 = vmatprep.subr.mxu0 0.0
    %3235 = vmatpush1.msra.mxu0 %v3216
    %3236 = vmatprep.subr.mxu0 0.0
    %3237 = vmatpush1.msra.mxu0 %v3217
    %3238 = vmatprep.subr.mxu0 0.0
    %3239 = vmatpush1.msra.mxu0 %v3218
    %3240 = vmatprep.subr.mxu0 0.0
    %3241 = vmatpush1.msra.mxu0 %v3219
    %3242 = vmatprep.subr.mxu0 0.0
    %3243 = vmatpush1.msra.mxu0 %v3220
    %3244 = vmatprep.subr.mxu0 0.0
    %3245 = vmatpush1.msra.mxu0 %v3221
    %3246 = vmatprep.subr.mxu0 0.0
    %3247 = vmatpush1.msra.mxu0 %v3222
    %3248 = vmatprep.subr.mxu0 0.0
    %3249 = vmatpush1.msra.mxu0 %v3223
    %3250 = vmatprep.subr.mxu0 0.0
    %3251 = vmatpush1.msra.mxu0 0.0
    %3252 = vmatprep.subr.mxu0 0.0
    %3253 = vmatpush1.msra.mxu0 0.0
    %3254 = vmatprep.subr.mxu0 0.0
    %3255 = vmatpush1.msra.mxu0 0.0
    %3256 = vmatprep.subr.mxu0 0.0
    %3257 = vmatpush1.msra.mxu0 0.0
    %3258 = vmatprep.subr.mxu0 0.0
    %3259 = vmatpush1.msra.mxu0 0.0
    %3260 = vmatprep.subr.mxu0 0.0
    %3261 = vmatpush1.msra.mxu0 0.0
    %3262 = vmatprep.subr.mxu0 0.0
    %3263 = vmatpush1.msra.mxu0 0.0
    %3264 = vmatprep.subr.mxu0 0.0
    %3265 = vmatpush1.msra.mxu0 0.0
    %3266 = vmatprep.subr.mxu0 0.0
    %3267 = vmatpush1.msra.mxu0 0.0
    %3268 = vmatprep.subr.mxu0 0.0
    %3269 = vmatpush1.msra.mxu0 0.0
    %3270 = vmatprep.subr.mxu0 0.0
    %3271 = vmatpush1.msra.mxu0 0.0
    %3272 = vmatprep.subr.mxu0 0.0
    %3273 = vmatpush1.msra.mxu0 0.0
    %3274 = vmatprep.subr.mxu0 0.0
    %3275 = vmatpush1.msra.mxu0 0.0
    %3276 = vmatprep.subr.mxu0 0.0
    %3277 = vmatpush1.msra.mxu0 0.0
    %3278 = vmatprep.subr.mxu0 0.0
    %3279 = vmatpush1.msra.mxu0 0.0
    %3280 = vmatprep.subr.mxu0 0.0
    %3281 = vmatpush1.msra.mxu0 0.0
    %3282 = vmatprep.subr.mxu0 0.0
    %3283 = vmatpush1.msra.mxu0 0.0
    %3284 = vmatprep.subr.mxu0 0.0
    %3285 = vmatpush1.msra.mxu0 0.0
    %3286 = vmatprep.subr.mxu0 0.0
    %3287 = vmatpush1.msra.mxu0 0.0
    %3288 = vmatprep.subr.mxu0 0.0
    %3289 = vmatpush1.msra.mxu0 0.0
    %3290 = vmatprep.subr.mxu0 0.0
    %3291 = vmatpush1.msra.mxu0 0.0
    %3292 = vmatprep.subr.mxu0 0.0
    %3293 = vmatpush1.msra.mxu0 0.0
    %3294 = vmatprep.subr.mxu0 0.0
    %3295 = vmatpush1.msra.mxu0 0.0
    %3296 = vmatprep.subr.mxu0 0.0
    %3297 = vmatpush1.msra.mxu0 0.0
    %3298 = vmatprep.mubr.f32.mxu0 0.0
    %3299 = vmatmul.mubr.f32.gmra.mrb[0].mxu0 %v3232
    %v3300 = vpop.f32.mrb[0].mxu0
    %v3301 = vadd.f32 %v3229, %v3300
    %v3302 = vpop.f32.mrb[0].mxu0
    %3303 = vdwg.mxu0
    %v3304 = vld [vmem:[%s11] sm:$0xff]
    %v3305 = vld [vmem:[%s11 + $0x8] sm:$0xff]
    %v3306 = vld [vmem:[%s11 + $0x10] sm:$0xff]
    %v3307 = vld [vmem:[%s11 + $0x18] sm:$0xff]
    %v3308 = vld [vmem:[%s11 + $0x20] sm:$0xff]
    %v3309 = vld [vmem:[%s11 + $0x28] sm:$0xff]
    %v3310 = vld [vmem:[%s11 + $0x30] sm:$0xff]
    %v3311 = vld [vmem:[%s11 + $0x38] sm:$0xff]
    %v3312 = vld [vmem:[%s12] sm:$0x1]
    %v3314 = vlaneseq
    %v3315 = vshrl.u32 %v3314, 7
    %v3316 = vsub.s32 0, %v3315
    %v3317 = vrot.slane %v3312, %v3316
    %v3320 = vsel %vm368, %v3301, 0
    %3322 = vmatprep.subr.mxu0 0.0
    %3323 = vmatpush1.msra.mxu0 %v3304
    %3324 = vmatprep.subr.mxu0 0.0
    %3325 = vmatpush1.msra.mxu0 %v3305
    %3326 = vmatprep.subr.mxu0 0.0
    %3327 = vmatpush1.msra.mxu0 %v3306
    %3328 = vmatprep.subr.mxu0 0.0
    %3329 = vmatpush1.msra.mxu0 %v3307
    %3330 = vmatprep.subr.mxu0 0.0
    %3331 = vmatpush1.msra.mxu0 %v3308
    %3332 = vmatprep.subr.mxu0 0.0
    %3333 = vmatpush1.msra.mxu0 %v3309
    %3334 = vmatprep.subr.mxu0 0.0
    %3335 = vmatpush1.msra.mxu0 %v3310
    %3336 = vmatprep.subr.mxu0 0.0
    %3337 = vmatpush1.msra.mxu0 %v3311
    %3338 = vmatprep.subr.mxu0 0.0
    %3339 = vmatpush1.msra.mxu0 0.0
    %3340 = vmatprep.subr.mxu0 0.0
    %3341 = vmatpush1.msra.mxu0 0.0
    %3342 = vmatprep.subr.mxu0 0.0
    %3343 = vmatpush1.msra.mxu0 0.0
    %3344 = vmatprep.subr.mxu0 0.0
    %3345 = vmatpush1.msra.mxu0 0.0
    %3346 = vmatprep.subr.mxu0 0.0
    %3347 = vmatpush1.msra.mxu0 0.0
    %3348 = vmatprep.subr.mxu0 0.0
    %3349 = vmatpush1.msra.mxu0 0.0
    %3350 = vmatprep.subr.mxu0 0.0
    %3351 = vmatpush1.msra.mxu0 0.0
    %3352 = vmatprep.subr.mxu0 0.0
    %3353 = vmatpush1.msra.mxu0 0.0
    %3354 = vmatprep.subr.mxu0 0.0
    %3355 = vmatpush1.msra.mxu0 0.0
    %3356 = vmatprep.subr.mxu0 0.0
    %3357 = vmatpush1.msra.mxu0 0.0
    %3358 = vmatprep.subr.mxu0 0.0
    %3359 = vmatpush1.msra.mxu0 0.0
    %3360 = vmatprep.subr.mxu0 0.0
    %3361 = vmatpush1.msra.mxu0 0.0
    %3362 = vmatprep.subr.mxu0 0.0
    %3363 = vmatpush1.msra.mxu0 0.0
    %3364 = vmatprep.subr.mxu0 0.0
    %3365 = vmatpush1.msra.mxu0 0.0
    %3366 = vmatprep.subr.mxu0 0.0
    %3367 = vmatpush1.msra.mxu0 0.0
    %3368 = vmatprep.subr.mxu0 0.0
    %3369 = vmatpush1.msra.mxu0 0.0
    %3370 = vmatprep.subr.mxu0 0.0
    %3371 = vmatpush1.msra.mxu0 0.0
    %3372 = vmatprep.subr.mxu0 0.0
    %3373 = vmatpush1.msra.mxu0 0.0
    %3374 = vmatprep.subr.mxu0 0.0
    %3375 = vmatpush1.msra.mxu0 0.0
    %3376 = vmatprep.subr.mxu0 0.0
    %3377 = vmatpush1.msra.mxu0 0.0
    %3378 = vmatprep.subr.mxu0 0.0
    %3379 = vmatpush1.msra.mxu0 0.0
    %3380 = vmatprep.subr.mxu0 0.0
    %3381 = vmatpush1.msra.mxu0 0.0
    %3382 = vmatprep.subr.mxu0 0.0
    %3383 = vmatpush1.msra.mxu0 0.0
    %3384 = vmatprep.subr.mxu0 0.0
    %3385 = vmatpush1.msra.mxu0 0.0
    %3386 = vmatprep.mubr.f32.mxu0 0.0
    %3387 = vmatmul.mubr.f32.gmra.mrb[0].mxu0 %v3320
    %v3388 = vpop.f32.mrb[0].mxu0
    %v3389 = vadd.f32 %v3317, %v3388
    %v3390 = vpop.f32.mrb[0].mxu0
    %3391 = vdwg.mxu0
    %vm3392 = vcmask 9216
    %3393 = vst.msk [vmem:[#allocation10] sm:$0x3] %vm3392, %v3389
    // Predicated region
    $region66: #{textrnn_att_forward.1} parent=1 // pred_check
      _
    $region67: #{textrnn_att_forward.1} parent=1 // pred_check_branch
      %3395 = sbr.rel (0) target = $region69
    $region68: #{textrnn_att_forward.1} parent=1 // pred_region
      %s3397 = ssub.s32 32, 32
      %3398 = vsyncadd [#allocation6], %s3397
      %s3400 = sshll.u32 [#allocation10], 4
      %s3401 = int_to_ptr.vmem [resolvable:$true] %s3400
      %3403 = dma.vmem_to_hbm [thread:$0]  %s3401, 32, %s13, [#allocation6]
    $region69: #{textrnn_att_forward.1} parent=1 // pred_fallthru
      _
    // Predicated region
    $region70: #{textrnn_att_forward.1} parent=1 // pred_check
      _
    $region71: #{textrnn_att_forward.1} parent=1 // pred_check_branch
      %3405 = sbr.rel (0) target = $region73
    $region72: #{textrnn_att_forward.1} parent=1 // pred_region
      %3406 = dma.done [#allocation6], 32
    $region73: #{textrnn_att_forward.1} parent=1 // pred_fallthru
      _
    %3407 = vsyncpa [#allocation5], 1
    %3408 = vsyncpa [#allocation8], 1
    %3409 = vsyncpa [#allocation6], 1

</llo_original>
